<compile_context>
chip_gen: v7x
topology: tpu7x:2x2x1
jax: 0.10.0
libtpu: 0.0.40
codegen_flags: <defaults>
</compile_context>

<pallas_src>
import functools
from math import sqrt

import jax
import jax.numpy as jnp
from jax.experimental import pallas as pl
from jax.experimental.pallas import tpu as pltpu

SQRT_HALF = sqrt(0.5)  # sqrt(normalization_constant), normalization_constant = 0.5


def _pick_tile(n, align, target):
    """Largest divisor-of-n tile that is a multiple of `align`, <= target, and (when
    possible) leaves at least 2 tiles on the axis."""
    if n % align != 0 or n <= align:
        return n
    t = min(target, (n // 2) // align * align)
    t = max(t, align)
    while n % t != 0:
        t -= align
    return t


def _pick_batch_block(B, T, target_rows=256):
    """Batch rows per grid block: aim for bb*T ~ target_rows (fills the 256-row MXU
    on v6e/v7x), but prefer >= 2 batch blocks (v7x megacore) if each block still
    keeps at least 128 matmul rows."""
    bb = max(1, min(B, target_rows // max(T, 1)))
    while B % bb != 0:
        bb -= 1
    if B // bb < 2:
        for cand in range(bb - 1, 0, -1):
            if B % cand == 0 and B // cand >= 2 and cand * T >= 128:
                bb = cand
                break
    return bb


# ---------------------------------------------------------------------------
# Kernel 1: fused decoder layers.
#   grid = (B//bb, L); the Y state is the output block, resident in VMEM across L.
# ---------------------------------------------------------------------------
def _fused_layer_kernel(x_ref, ekT_ref, ees_ref, akT_ref, aes_ref,
                        fc1w_ref, fc1b_ref,
                        cw_ref, cb_ref,
                        wi_ref, bi_ref,
                        awo_ref, abo_ref, ewo_ref, ebo_ref,
                        gw_ref, gb_ref,
                        y_ref,
                        *, bb, T, K, H, D, enc_scale, aux_scale):
    l = pl.program_id(1)
    M = bb * T
    bf = jnp.bfloat16

    x2 = x_ref[...].reshape(M, D)                       # (M, D) f32 target embedding

    # ---- fc1 only on the first layer step: initializes the resident Y state ----
    @pl.when(l == 0)
    def _():
        y0 = (jnp.dot(x2.astype(bf), fc1w_ref[...],
                      preferred_element_type=jnp.float32) + fc1b_ref[...])
        y_ref[...] = y0.reshape(bb, T, H)

    resid = y_ref[...].reshape(M, H)                    # (M, H) f32

    # ---- causal Conv1d(H -> 2H, K) + GLU: one (M, K*H) @ (K*H, 2H) dot ---------
    # Tap j multiplies Y shifted down by (K-1-j) rows (zeros above): roll along the
    # sublane axis (XLU) + iota mask for the causal pad rows of each batch element.
    if K > 1:
        t_in_seq = jax.lax.broadcasted_iota(jnp.int32, (bb, T, H), 1).reshape(M, H)
    taps = []
    for j in range(K):
        sh = K - 1 - j
        if sh == 0:
            taps.append(resid.astype(bf))
        else:
            tap = pltpu.roll(resid, shift=sh, axis=0)   # rows move to higher indices
            tap = jnp.where(t_in_seq >= sh, tap, 0.0)   # zero the left-pad rows
            taps.append(tap.astype(bf))
    xk = taps[0] if K == 1 else jnp.concatenate(taps, axis=-1)        # (M, K*H) bf16
    ag = jnp.dot(xk, cw_ref[0], preferred_element_type=jnp.float32) + cb_ref[0]
    yc = ag[:, :H] * jax.nn.sigmoid(ag[:, H:])          # GLU, (M, H) f32
    yc_bf = yc.astype(bf)

    # ---- fused attention in-projection for both paths ([aux | enc]) ------------
    q2 = jnp.dot(yc_bf, wi_ref[0], preferred_element_type=jnp.float32) + bi_ref[0]
    q_aux = (((q2[:, :D] + x2) * SQRT_HALF).reshape(bb, T, D)).astype(bf)
    q_enc = (((q2[:, D:] + x2) * SQRT_HALF).reshape(bb, T, D)).astype(bf)

    def attend(q3, kT, es, scale):
        # q3: (bb, T, D) bf16; kT: (bb, D, S) bf16 (keys pre-transposed); es: (bb, S, D) bf16
        s = jnp.einsum('btd,bds->bts', q3, kT,
                       preferred_element_type=jnp.float32)            # (bb, T, S)
        s = s - jnp.max(s, axis=-1, keepdims=True)
        p = jnp.exp(s)
        p = p * pl.reciprocal(jnp.sum(p, axis=-1, keepdims=True), approx=True)
        ctx = jnp.einsum('bts,bsd->btd', p.astype(bf), es,
                         preferred_element_type=jnp.float32)           # (bb, T, D)
        return (ctx * scale).reshape(M, D)

    acx_d = attend(q_aux, akT_ref[...], aes_ref[...], aux_scale)
    ctx_d = attend(q_enc, ekT_ref[...], ees_ref[...], enc_scale)

    acx = (jnp.dot(acx_d.astype(bf), awo_ref[0],
                   preferred_element_type=jnp.float32) + abo_ref[0])   # (M, H)
    ctx = (jnp.dot(ctx_d.astype(bf), ewo_ref[0],
                   preferred_element_type=jnp.float32) + ebo_ref[0])   # (M, H)

    # ---- context gate on concat([Yc, ctx]) + sqrt(0.5) residual chain (f32) ----
    gate_in = jnp.concatenate([yc_bf, ctx.astype(bf)], axis=-1)        # (M, 2H) bf16
    gate = jax.nn.sigmoid(
        jnp.dot(gate_in, gw_ref[0], preferred_element_type=jnp.float32) + gb_ref[0])
    out = (yc + ctx) * SQRT_HALF
    out = (out + gate * acx) * SQRT_HALF
    out = (out + resid) * SQRT_HALF
    y_ref[...] = out.reshape(bb, T, H)


def fused_layers(x, encKT, encES, auxKT, auxES, params):
    B, T, D = x.shape
    H = params["fc1_w"].shape[1]
    L, KH = params["conv_w"].shape[:2]
    K = KH // H
    Se = encKT.shape[2]
    Sa = auxKT.shape[2]
    enc_scale = Se * (1.0 / Se) ** 0.5                  # fairseq fconv scaling
    aux_scale = Sa * (1.0 / Sa) ** 0.5
    bb = _pick_batch_block(B, T)

    kern = functools.partial(_fused_layer_kernel, bb=bb, T=T, K=K, H=H, D=D,
                             enc_scale=enc_scale, aux_scale=aux_scale)

    def batch_spec(*dims):
        nz = (0,) * len(dims)
        return pl.BlockSpec((bb,) + dims, lambda b, l: (b,) + nz)

    def layer_spec(*dims):
        nz = (0,) * len(dims)
        return pl.BlockSpec((1,) + dims, lambda b, l: (l,) + nz)

    def shared_spec(*dims):
        nz = (0,) * len(dims)
        return pl.BlockSpec(dims, lambda b, l: nz)

    return pl.pallas_call(
        kern,
        out_shape=jax.ShapeDtypeStruct((B, T, H), jnp.float32),
        grid=(B // bb, L),
        in_specs=[
            batch_spec(T, D),            # x (target embedding, f32)
            batch_spec(D, Se),           # encoder keys, pre-transposed (bf16)
            batch_spec(Se, D),           # encoder values (bf16)
            batch_spec(D, Sa),           # auxencoder keys, pre-transposed (bf16)
            batch_spec(Sa, D),           # auxencoder values (bf16)
            shared_spec(D, H),           # fc1_w
            shared_spec(1, H),           # fc1_b
            layer_spec(K * H, 2 * H),    # conv W (taps stacked on rows, [a | g] cols)
            layer_spec(1, 2 * H),        # conv bias
            layer_spec(H, 2 * D),        # attention in-proj [aux | enc]
            layer_spec(1, 2 * D),        # attention in-proj bias
            layer_spec(D, H),            # aux out-proj W
            layer_spec(1, H),            # aux out-proj b
            layer_spec(D, H),            # enc out-proj W
            layer_spec(1, H),            # enc out-proj b
            layer_spec(2 * H, H),        # gate W on concat([Yc, ctx])
            layer_spec(1, H),            # gate b
        ],
        out_specs=pl.BlockSpec((bb, T, H), lambda b, l: (b, 0, 0)),
        compiler_params=pltpu.CompilerParams(
            dimension_semantics=("parallel", "arbitrary"),
            vmem_limit_bytes=32 * 1024 * 1024),
    )(x, encKT, encES, auxKT, auxES,
      params["fc1_w"], params["fc1_b"],
      params["conv_w"], params["conv_b"],
      params["attn_wi"], params["attn_bi"],
      params["aux_wo"], params["aux_bo"],
      params["enc_wo"], params["enc_bo"],
      params["gate_w"], params["gate_b"])


# ---------------------------------------------------------------------------
# Kernel 2a: fc2 — tiny matmul producing the bf16 (M, D) activation.
# ---------------------------------------------------------------------------
def _fc2_kernel(y_ref, w2_ref, b2_ref, h_ref):
    h = (jnp.dot(y_ref[...].astype(jnp.bfloat16), w2_ref[...],
                 preferred_element_type=jnp.float32) + b2_ref[...])
    h_ref[...] = h.astype(jnp.bfloat16)


def fc2_head(y2d, w2, b2):
    M, H = y2d.shape
    D = w2.shape[1]
    tm = _pick_tile(M, 8, 512)
    return pl.pallas_call(
        _fc2_kernel,
        out_shape=jax.ShapeDtypeStruct((M, D), jnp.bfloat16),
        grid=(M // tm,),
        in_specs=[pl.BlockSpec((tm, H), lambda i: (i, 0)),
                  pl.BlockSpec((H, D), lambda i: (0, 0)),
                  pl.BlockSpec((1, D), lambda i: (0, 0))],
        out_specs=pl.BlockSpec((tm, D), lambda i: (i, 0)),
        compiler_params=pltpu.CompilerParams(
            dimension_semantics=("parallel",)),
    )(y2d, w2, b2)


# ---------------------------------------------------------------------------
# Kernel 2b: fc3 — vocab projection.  Grid = (vocab outer, rows inner) so each
# fc3_w tile is DMA'd once and stays resident across the inner row axis; fc3_w
# (by far the largest array) therefore streams from HBM exactly once.
# ---------------------------------------------------------------------------
def _fc3_kernel(h_ref, w3_ref, b3_ref, o_ref):
    o_ref[...] = (jnp.dot(h_ref[...], w3_ref[...],
                          preferred_element_type=jnp.float32) + b3_ref[...])


def fc3_head(h2d, w3, b3):
    M, D = h2d.shape
    V = w3.shape[1]
    tm = _pick_tile(M, 8, 256)
    tn = _pick_tile(V, 128, 512)     # lane-dense vocab tile (multiple of 128)
    return pl.pallas_call(
        _fc3_kernel,
        out_shape=jax.ShapeDtypeStruct((M, V), jnp.float32),
        grid=(V // tn, M // tm),     # vocab outer, rows inner
        in_specs=[pl.BlockSpec((tm, D), lambda j, i: (i, 0)),
                  pl.BlockSpec((D, tn), lambda j, i: (0, j)),   # resident across rows
                  pl.BlockSpec((1, tn), lambda j, i: (0, j))],
        out_specs=pl.BlockSpec((tm, tn), lambda j, i: (i, j)),
        compiler_params=pltpu.CompilerParams(
            dimension_semantics=("parallel", "arbitrary"),
            vmem_limit_bytes=32 * 1024 * 1024),
    )(h2d, w3, b3)


# ---------------------------------------------------------------------------
# Parameter init (weights stored bf16, biases/embeddings f32, layers stacked on L,
# paired small weights pre-fused: conv [a|g], attention in-proj [aux|enc],
# gate on concat([Yc, ctx])).
# ---------------------------------------------------------------------------
def init_params(key, *, vocab, D, H, K, L, max_seq_len, padding_idx):
    kit = iter(jax.random.split(key, 24))
    bf = jnp.bfloat16

    def nrm(shape, dtype=jnp.float32, scale=0.1):
        return (scale * jax.random.normal(next(kit), shape, jnp.float32)).astype(dtype)

    return dict(
        padding_idx=padding_idx,
        embed_tokens=nrm((vocab, D)).at[padding_idx].set(0.0),
        embed_positions=nrm((max_seq_len, D)),
        fc1_w=nrm((D, H), bf), fc1_b=nrm((1, H)),
        fc2_w=nrm((H, D), bf), fc2_b=nrm((1, D)),
        fc3_w=nrm((D, vocab), bf), fc3_b=nrm((1, vocab)),
        conv_w=nrm((L, K * H, 2 * H), bf), conv_b=nrm((L, 1, 2 * H)),
        attn_wi=nrm((L, H, 2 * D), bf), attn_bi=nrm((L, 1, 2 * D)),
        aux_wo=nrm((L, D, H), bf), aux_bo=nrm((L, 1, H)),
        enc_wo=nrm((L, D, H), bf), enc_bo=nrm((L, 1, H)),
        gate_w=nrm((L, 2 * H, H), bf), gate_b=nrm((L, 1, H)),
    )


# ---------------------------------------------------------------------------
# Full forward (embedding gathers, key transpose and reshapes are plain-JAX glue)
# ---------------------------------------------------------------------------
def conv_decoder_forward(params, prev_output_tokens,
                         encoder_E, encoder_ES, auxencoder_E, auxencoder_ES):
    B, T = prev_output_tokens.shape
    H = params["fc1_w"].shape[1]
    bf = jnp.bfloat16

    tok = jnp.take(params["embed_tokens"], prev_output_tokens, axis=0)   # (B,T,D)
    positions = params["padding_idx"] + 1 + jnp.arange(T)
    pos = jnp.take(params["embed_positions"], positions, axis=0)[None]   # (1,T,D)
    x = tok + pos                                                        # target emb

    # Pre-transpose attention keys once in HBM (lane-major contraction in-kernel).
    encKT = jnp.swapaxes(encoder_E, 1, 2).astype(bf)                     # (B, D, Se)
    auxKT = jnp.swapaxes(auxencoder_E, 1, 2).astype(bf)                  # (B, D, Sa)

    Y = fused_layers(x, encKT, encoder_ES.astype(bf),
                     auxKT, auxencoder_ES.astype(bf), params)            # (B,T,H) f32

    h = fc2_head(Y.reshape(B * T, H), params["fc2_w"], params["fc2_b"])  # (B*T,D) bf16
    logits = fc3_head(h, params["fc3_w"], params["fc3_b"])               # (B*T,V) f32
    return logits.reshape(B, T, -1)


if __name__ == "__main__":
    # Small but TPU-friendly shapes: lane-dense feature dims (128 / 256),
    # sublane-aligned sequence length.
    vocab, D, H, K, L = 256, 128, 128, 3, 2
    max_seq_len, padding_idx = 64, 0
    B, T, S_enc, S_aux = 2, 16, 16, 8

    key = jax.random.PRNGKey(0)
    k_param, k_tok, k_e1, k_e2, k_a1, k_a2 = jax.random.split(key, 6)

    params = init_params(k_param, vocab=vocab, D=D, H=H, K=K, L=L,
                         max_seq_len=max_seq_len, padding_idx=padding_idx)

    prev_output_tokens = jax.random.randint(k_tok, (B, T), 1, vocab)
    encoder_E = jax.random.normal(k_e1, (B, S_enc, D), jnp.float32)
    encoder_ES = jax.random.normal(k_e2, (B, S_enc, D), jnp.float32)
    auxencoder_E = jax.random.normal(k_a1, (B, S_aux, D), jnp.float32)
    auxencoder_ES = jax.random.normal(k_a2, (B, S_aux, D), jnp.float32)

    fwd = jax.jit(conv_decoder_forward)
    out = fwd(params, prev_output_tokens, encoder_E, encoder_ES,
              auxencoder_E, auxencoder_ES)
    out = jax.block_until_ready(out)
    assert out.shape == (B, T, vocab) and out.dtype == jnp.float32
    print("KERNEL_OK")
</pallas_src>

<mosaic_0001>
module attributes {stable_mosaic.version = 11 : i64} {
  func.func @_fc3_kernel(%arg0: i32, %arg1: i32, %arg2: memref<16x128xbf16, #tpu.memory_space<vmem>>, %arg3: memref<128x128xbf16, #tpu.memory_space<vmem>>, %arg4: memref<1x128xf32, #tpu.memory_space<vmem>>, %arg5: memref<16x128xf32, #tpu.memory_space<vmem>>) attributes {dimension_semantics = [#tpu.dimension_semantics<parallel>, #tpu.dimension_semantics<arbitrary>], iteration_bounds = array<i64: 2, 2>, scalar_prefetch = 0 : i64, scratch_operands = 0 : i64, tpu.core_type = #tpu.core_type<tc>, window_params = [{transform_indices = @transform_0, window_bounds = array<i64: 16, 128>}, {transform_indices = @transform_1, window_bounds = array<i64: 128, 128>}, {transform_indices = @transform_2, window_bounds = array<i64: 1, 128>}, {transform_indices = @transform_3, window_bounds = array<i64: 16, 128>}]} {
    %c0 = arith.constant 0 : index
    %c0_0 = arith.constant 0 : index
    %0 = vector.load %arg2[%c0, %c0_0] : memref<16x128xbf16, #tpu.memory_space<vmem>>, vector<16x128xbf16>
    %c0_1 = arith.constant 0 : index
    %c0_2 = arith.constant 0 : index
    %1 = vector.load %arg3[%c0_1, %c0_2] : memref<128x128xbf16, #tpu.memory_space<vmem>>, vector<128x128xbf16>
    %cst = arith.constant dense<0.000000e+00> : vector<16x128xf32>
    %2 = tpu.matmul %0, %1, %cst {dimension_numbers = #tpu.dot_dimension_numbers<[1], [0], [0], [1], [0, 0, 1, 1], [], []>} : vector<16x128xbf16>, vector<128x128xbf16>, vector<16x128xf32> -> vector<16x128xf32>
    %c0_3 = arith.constant 0 : index
    %c0_4 = arith.constant 0 : index
    %3 = vector.load %arg4[%c0_3, %c0_4] : memref<1x128xf32, #tpu.memory_space<vmem>>, vector<1x128xf32>
    %4 = vector.broadcast %3 : vector<1x128xf32> to vector<16x128xf32>
    %5 = arith.addf %2, %4 : vector<16x128xf32>
    %c0_5 = arith.constant 0 : index
    %c0_6 = arith.constant 0 : index
    %6 = vector.load %arg5[%c0_5, %c0_6] : memref<16x128xf32, #tpu.memory_space<vmem>>, vector<16x128xf32>
    tpu.vector_store %arg5[%c0_5, %c0_6], %5 {strides = array<i32>} : memref<16x128xf32, #tpu.memory_space<vmem>>, vector<16x128xf32>,
    return
  }
  func.func @transform_0(%arg0: i32, %arg1: i32) -> (i32, i32) {
    %c0_i32 = arith.constant 0 : i32
    %c0_i32_0 = arith.constant 0 : i32
    return %arg1, %c0_i32 : i32, i32
  }
  func.func @transform_1(%arg0: i32, %arg1: i32) -> (i32, i32) {
    %c0_i32 = arith.constant 0 : i32
    %c0_i32_0 = arith.constant 0 : i32
    return %c0_i32, %arg0 : i32, i32
  }
  func.func @transform_2(%arg0: i32, %arg1: i32) -> (i32, i32) {
    %c0_i32 = arith.constant 0 : i32
    %c0_i32_0 = arith.constant 0 : i32
    return %c0_i32, %arg0 : i32, i32
  }
  func.func @transform_3(%arg0: i32, %arg1: i32) -> (i32, i32) {
    %c0_i32 = arith.constant 0 : i32
    return %arg1, %arg0 : i32, i32
  }
}

module attributes {stable_mosaic.version = 11 : i64} {
  func.func @_fused_layer_kernel(%arg0: i32, %arg1: i32, %arg2: memref<2x16x128xf32, #tpu.memory_space<vmem>>, %arg3: memref<2x128x16xbf16, #tpu.memory_space<vmem>>, %arg4: memref<2x16x128xbf16, #tpu.memory_space<vmem>>, %arg5: memref<2x128x8xbf16, #tpu.memory_space<vmem>>, %arg6: memref<2x8x128xbf16, #tpu.memory_space<vmem>>, %arg7: memref<128x128xbf16, #tpu.memory_space<vmem>>, %arg8: memref<1x128xf32, #tpu.memory_space<vmem>>, %arg9: memref<1x384x256xbf16, #tpu.memory_space<vmem>>, %arg10: memref<1x1x256xf32, #tpu.memory_space<vmem>>, %arg11: memref<1x128x256xbf16, #tpu.memory_space<vmem>>, %arg12: memref<1x1x256xf32, #tpu.memory_space<vmem>>, %arg13: memref<1x128x128xbf16, #tpu.memory_space<vmem>>, %arg14: memref<1x1x128xf32, #tpu.memory_space<vmem>>, %arg15: memref<1x128x128xbf16, #tpu.memory_space<vmem>>, %arg16: memref<1x1x128xf32, #tpu.memory_space<vmem>>, %arg17: memref<1x256x128xbf16, #tpu.memory_space<vmem>>, %arg18: memref<1x1x128xf32, #tpu.memory_space<vmem>>, %arg19: memref<2x16x128xf32, #tpu.memory_space<vmem>>) attributes {dimension_semantics = [#tpu.dimension_semantics<parallel>, #tpu.dimension_semantics<arbitrary>], iteration_bounds = array<i64: 1, 2>, scalar_prefetch = 0 : i64, scratch_operands = 0 : i64, tpu.core_type = #tpu.core_type<tc>, window_params = [{transform_indices = @transform_0, window_bounds = array<i64: 2, 16, 128>}, {transform_indices = @transform_1, window_bounds = array<i64: 2, 128, 16>}, {transform_indices = @transform_2, window_bounds = array<i64: 2, 16, 128>}, {transform_indices = @transform_3, window_bounds = array<i64: 2, 128, 8>}, {transform_indices = @transform_4, window_bounds = array<i64: 2, 8, 128>}, {pipeline_mode = #tpu.pipeline_mode<synchronous>, transform_indices = @transform_5, window_bounds = array<i64: 128, 128>}, {pipeline_mode = #tpu.pipeline_mode<synchronous>, transform_indices = @transform_6, window_bounds = array<i64: 1, 128>}, {transform_indices = @transform_7, window_bounds = array<i64: 1, 384, 256>}, {transform_indices = @transform_8, window_bounds = array<i64: 1, 1, 256>}, {transform_indices = @transform_9, window_bounds = array<i64: 1, 128, 256>}, {transform_indices = @transform_10, window_bounds = array<i64: 1, 1, 256>}, {transform_indices = @transform_11, window_bounds = array<i64: 1, 128, 128>}, {transform_indices = @transform_12, window_bounds = array<i64: 1, 1, 128>}, {transform_indices = @transform_13, window_bounds = array<i64: 1, 128, 128>}, {transform_indices = @transform_14, window_bounds = array<i64: 1, 1, 128>}, {transform_indices = @transform_15, window_bounds = array<i64: 1, 256, 128>}, {transform_indices = @transform_16, window_bounds = array<i64: 1, 1, 128>}, {transform_indices = @transform_17, window_bounds = array<i64: 2, 16, 128>}]} {
    %c0 = arith.constant 0 : index
    %c0_0 = arith.constant 0 : index
    %c0_1 = arith.constant 0 : index
    %0 = vector.load %arg2[%c0, %c0_0, %c0_1] : memref<2x16x128xf32, #tpu.memory_space<vmem>>, vector<2x16x128xf32>
    %1 = vector.shape_cast %0 : vector<2x16x128xf32> to vector<32x128xf32>
    %c0_i32 = arith.constant 0 : i32
    %2 = arith.cmpi eq, %arg1, %c0_i32 : i32
    %3 = arith.extui %2 : i1 to i32
    %c0_i32_2 = arith.constant 0 : i32
    %4 = arith.cmpi ne, %3, %c0_i32_2 : i32
    scf.if %4 {
      %136 = arith.truncf %1 : vector<32x128xf32> to vector<32x128xbf16>
      %c0_76 = arith.constant 0 : index
      %c0_77 = arith.constant 0 : index
      %137 = vector.load %arg7[%c0_76, %c0_77] : memref<128x128xbf16, #tpu.memory_space<vmem>>, vector<128x128xbf16>
      %cst_78 = arith.constant dense<0.000000e+00> : vector<32x128xf32>
      %138 = tpu.matmul %136, %137, %cst_78 {dimension_numbers = #tpu.dot_dimension_numbers<[1], [0], [0], [1], [0, 0, 1, 1], [], []>} : vector<32x128xbf16>, vector<128x128xbf16>, vector<32x128xf32> -> vector<32x128xf32>
      %c0_79 = arith.constant 0 : index
      %c0_80 = arith.constant 0 : index
      %139 = vector.load %arg8[%c0_79, %c0_80] : memref<1x128xf32, #tpu.memory_space<vmem>>, vector<1x128xf32>
      %140 = vector.broadcast %139 : vector<1x128xf32> to vector<32x128xf32>
      %141 = arith.addf %138, %140 : vector<32x128xf32>
      %142 = vector.shape_cast %141 : vector<32x128xf32> to vector<2x16x128xf32>
      %c0_81 = arith.constant 0 : index
      %c0_82 = arith.constant 0 : index
      %c0_83 = arith.constant 0 : index
      %143 = vector.load %arg19[%c0_81, %c0_82, %c0_83] : memref<2x16x128xf32, #tpu.memory_space<vmem>>, vector<2x16x128xf32>
      tpu.vector_store %arg19[%c0_81, %c0_82, %c0_83], %142 {strides = array<i32>} : memref<2x16x128xf32, #tpu.memory_space<vmem>>, vector<2x16x128xf32>,
    } else {
    }
    %c0_3 = arith.constant 0 : index
    %c0_4 = arith.constant 0 : index
    %c0_5 = arith.constant 0 : index
    %5 = vector.load %arg19[%c0_3, %c0_4, %c0_5] : memref<2x16x128xf32, #tpu.memory_space<vmem>>, vector<2x16x128xf32>
    %6 = vector.shape_cast %5 : vector<2x16x128xf32> to vector<32x128xf32>
    %7 = tpu.iota {dimensions = array<i32: 1>} : vector<2x16x128xi32>
    %8 = vector.shape_cast %7 : vector<2x16x128xi32> to vector<32x128xi32>
    %c2_i32 = arith.constant 2 : i32
    %9 = tpu.dynamic_rotate %6 by %c2_i32 dim 0 : vector<32x128xf32>, i32 -> vector<32x128xf32>
    %c2_i32_6 = arith.constant 2 : i32
    %10 = vector.broadcast %c2_i32_6 : i32 to vector<32x128xi32>
    %11 = arith.cmpi sge, %8, %10 : vector<32x128xi32>
    %cst = arith.constant 0.000000e+00 : f32
    %12 = vector.broadcast %cst : f32 to vector<32x128xf32>
    %13 = arith.select %11, %9, %12 : vector<32x128xi1>, vector<32x128xf32>
    %14 = arith.truncf %13 : vector<32x128xf32> to vector<32x128xbf16>
    %c1_i32 = arith.constant 1 : i32
    %15 = tpu.dynamic_rotate %6 by %c1_i32 dim 0 : vector<32x128xf32>, i32 -> vector<32x128xf32>
    %c1_i32_7 = arith.constant 1 : i32
    %16 = vector.broadcast %c1_i32_7 : i32 to vector<32x128xi32>
    %17 = arith.cmpi sge, %8, %16 : vector<32x128xi32>
    %cst_8 = arith.constant 0.000000e+00 : f32
    %18 = vector.broadcast %cst_8 : f32 to vector<32x128xf32>
    %19 = arith.select %17, %15, %18 : vector<32x128xi1>, vector<32x128xf32>
    %20 = arith.truncf %19 : vector<32x128xf32> to vector<32x128xbf16>
    %21 = arith.truncf %6 : vector<32x128xf32> to vector<32x128xbf16>
    %22 = tpu.concatenate %14, %20, %21 in 1 : vector<32x128xbf16>, vector<32x128xbf16>, vector<32x128xbf16> -> vector<32x384xbf16>
    %c0_9 = arith.constant 0 : index
    %c0_10 = arith.constant 0 : index
    %c0_11 = arith.constant 0 : index
    %23 = vector.load %arg9[%c0_9, %c0_10, %c0_11] : memref<1x384x256xbf16, #tpu.memory_space<vmem>>, vector<1x384x256xbf16>
    %24 = vector.shape_cast %23 : vector<1x384x256xbf16> to vector<384x256xbf16>
    %cst_12 = arith.constant dense<0.000000e+00> : vector<32x256xf32>
    %25 = tpu.matmul %22, %24, %cst_12 {dimension_numbers = #tpu.dot_dimension_numbers<[1], [0], [0], [1], [0, 0, 1, 1], [], []>} : vector<32x384xbf16>, vector<384x256xbf16>, vector<32x256xf32> -> vector<32x256xf32>
    %c0_13 = arith.constant 0 : index
    %c0_14 = arith.constant 0 : index
    %c0_15 = arith.constant 0 : index
    %26 = vector.load %arg10[%c0_13, %c0_14, %c0_15] : memref<1x1x256xf32, #tpu.memory_space<vmem>>, vector<1x1x256xf32>
    %27 = vector.shape_cast %26 : vector<1x1x256xf32> to vector<1x256xf32>
    %28 = vector.broadcast %27 : vector<1x256xf32> to vector<32x256xf32>
    %29 = arith.addf %25, %28 : vector<32x256xf32>
    %30 = vector.extract_strided_slice %29 {offsets = [0, 0], sizes = [32, 128], strides = [1, 1]} : vector<32x256xf32> to vector<32x128xf32>
    %31 = vector.extract_strided_slice %29 {offsets = [0, 128], sizes = [32, 128], strides = [1, 1]} : vector<32x256xf32> to vector<32x128xf32>
    %32 = arith.negf %31 : vector<32x128xf32>
    %33 = math.exp %32 : vector<32x128xf32>
    %cst_16 = arith.constant 1.000000e+00 : f32
    %34 = vector.broadcast %cst_16 : f32 to vector<32x128xf32>
    %35 = arith.addf %34, %33 : vector<32x128xf32>
    %36 = arith.divf %34, %35 : vector<32x128xf32>
    %37 = arith.mulf %30, %36 : vector<32x128xf32>
    %38 = arith.truncf %37 : vector<32x128xf32> to vector<32x128xbf16>
    %c0_17 = arith.constant 0 : index
    %c0_18 = arith.constant 0 : index
    %c0_19 = arith.constant 0 : index
    %39 = vector.load %arg11[%c0_17, %c0_18, %c0_19] : memref<1x128x256xbf16, #tpu.memory_space<vmem>>, vector<1x128x256xbf16>
    %40 = vector.shape_cast %39 : vector<1x128x256xbf16> to vector<128x256xbf16>
    %cst_20 = arith.constant dense<0.000000e+00> : vector<32x256xf32>
    %41 = tpu.matmul %38, %40, %cst_20 {dimension_numbers = #tpu.dot_dimension_numbers<[1], [0], [0], [1], [0, 0, 1, 1], [], []>} : vector<32x128xbf16>, vector<128x256xbf16>, vector<32x256xf32> -> vector<32x256xf32>
    %c0_21 = arith.constant 0 : index
    %c0_22 = arith.constant 0 : index
    %c0_23 = arith.constant 0 : index
    %42 = vector.load %arg12[%c0_21, %c0_22, %c0_23] : memref<1x1x256xf32, #tpu.memory_space<vmem>>, vector<1x1x256xf32>
    %43 = vector.shape_cast %42 : vector<1x1x256xf32> to vector<1x256xf32>
    %44 = vector.broadcast %43 : vector<1x256xf32> to vector<32x256xf32>
    %45 = arith.addf %41, %44 : vector<32x256xf32>
    %46 = vector.extract_strided_slice %45 {offsets = [0, 0], sizes = [32, 128], strides = [1, 1]} : vector<32x256xf32> to vector<32x128xf32>
    %47 = arith.addf %46, %1 : vector<32x128xf32>
    %cst_24 = arith.constant 0.707106769 : f32
    %48 = vector.broadcast %cst_24 : f32 to vector<32x128xf32>
    %49 = arith.mulf %47, %48 : vector<32x128xf32>
    %50 = vector.shape_cast %49 : vector<32x128xf32> to vector<2x16x128xf32>
    %51 = arith.truncf %50 : vector<2x16x128xf32> to vector<2x16x128xbf16>
    %52 = vector.extract_strided_slice %45 {offsets = [0, 128], sizes = [32, 128], strides = [1, 1]} : vector<32x256xf32> to vector<32x128xf32>
    %53 = arith.addf %52, %1 : vector<32x128xf32>
    %cst_25 = arith.constant 0.707106769 : f32
    %54 = vector.broadcast %cst_25 : f32 to vector<32x128xf32>
    %55 = arith.mulf %53, %54 : vector<32x128xf32>
    %56 = vector.shape_cast %55 : vector<32x128xf32> to vector<2x16x128xf32>
    %57 = arith.truncf %56 : vector<2x16x128xf32> to vector<2x16x128xbf16>
    %c0_26 = arith.constant 0 : index
    %c0_27 = arith.constant 0 : index
    %c0_28 = arith.constant 0 : index
    %58 = vector.load %arg5[%c0_26, %c0_27, %c0_28] : memref<2x128x8xbf16, #tpu.memory_space<vmem>>, vector<2x128x8xbf16>
    %c0_29 = arith.constant 0 : index
    %c0_30 = arith.constant 0 : index
    %c0_31 = arith.constant 0 : index
    %59 = vector.load %arg6[%c0_29, %c0_30, %c0_31] : memref<2x8x128xbf16, #tpu.memory_space<vmem>>, vector<2x8x128xbf16>
    "tpu.trace_start"() <{level = 10 : i32, message = "btd,bds->bts"}> : () -> ()
    %cst_32 = arith.constant dense<0.000000e+00> : vector<2x16x8xf32>
    %60 = tpu.matmul %51, %58, %cst_32 {dimension_numbers = #tpu.dot_dimension_numbers<[2], [1], [1], [2], [0, 0, 0, 1, 1, 2], [0], [0]>} : vector<2x16x128xbf16>, vector<2x128x8xbf16>, vector<2x16x8xf32> -> vector<2x16x8xf32>
    "tpu.trace_stop"() : () -> ()
    %cst_33 = arith.constant dense<0xFF800000> : vector<2x16xf32>
    %61 = vector.multi_reduction <maximumf>, %60, %cst_33 [2] : vector<2x16x8xf32> to vector<2x16xf32>
    %62 = vector.shape_cast %61 : vector<2x16xf32> to vector<2x16x1xf32>
    %63 = vector.broadcast %62 : vector<2x16x1xf32> to vector<2x16x8xf32>
    %64 = arith.subf %60, %63 : vector<2x16x8xf32>
    %65 = math.exp %64 : vector<2x16x8xf32>
    %cst_34 = arith.constant dense<0.000000e+00> : vector<2x16xf32>
    %66 = vector.multi_reduction <add>, %65, %cst_34 [2] : vector<2x16x8xf32> to vector<2x16xf32>
    %67 = vector.shape_cast %66 : vector<2x16xf32> to vector<2x16x1xf32>
    %68 = tpu.reciprocal %67 {approx = true} : vector<2x16x1xf32> -> vector<2x16x1xf32>
    %69 = vector.broadcast %68 : vector<2x16x1xf32> to vector<2x16x8xf32>
    %70 = arith.mulf %65, %69 : vector<2x16x8xf32>
    %71 = arith.truncf %70 : vector<2x16x8xf32> to vector<2x16x8xbf16>
    "tpu.trace_start"() <{level = 10 : i32, message = "bts,bsd->btd"}> : () -> ()
    %cst_35 = arith.constant dense<0.000000e+00> : vector<2x16x128xf32>
    %72 = tpu.matmul %71, %59, %cst_35 {dimension_numbers = #tpu.dot_dimension_numbers<[2], [1], [1], [2], [0, 0, 0, 1, 1, 2], [0], [0]>} : vector<2x16x8xbf16>, vector<2x8x128xbf16>, vector<2x16x128xf32> -> vector<2x16x128xf32>
    "tpu.trace_stop"() : () -> ()
    %cst_36 = arith.constant 2.82842708 : f32
    %73 = vector.broadcast %cst_36 : f32 to vector<2x16x128xf32>
    %74 = arith.mulf %72, %73 : vector<2x16x128xf32>
    %75 = vector.shape_cast %74 : vector<2x16x128xf32> to vector<32x128xf32>
    %c0_37 = arith.constant 0 : index
    %c0_38 = arith.constant 0 : index
    %c0_39 = arith.constant 0 : index
    %76 = vector.load %arg3[%c0_37, %c0_38, %c0_39] : memref<2x128x16xbf16, #tpu.memory_space<vmem>>, vector<2x128x16xbf16>
    %c0_40 = arith.constant 0 : index
    %c0_41 = arith.constant 0 : index
    %c0_42 = arith.constant 0 : index
    %77 = vector.load %arg4[%c0_40, %c0_41, %c0_42] : memref<2x16x128xbf16, #tpu.memory_space<vmem>>, vector<2x16x128xbf16>
    "tpu.trace_start"() <{level = 10 : i32, message = "btd,bds->bts"}> : () -> ()
    %cst_43 = arith.constant dense<0.000000e+00> : vector<2x16x16xf32>
    %78 = tpu.matmul %57, %76, %cst_43 {dimension_numbers = #tpu.dot_dimension_numbers<[2], [1], [1], [2], [0, 0, 0, 1, 1, 2], [0], [0]>} : vector<2x16x128xbf16>, vector<2x128x16xbf16>, vector<2x16x16xf32> -> vector<2x16x16xf32>
    "tpu.trace_stop"() : () -> ()
    %cst_44 = arith.constant dense<0xFF800000> : vector<2x16xf32>
    %79 = vector.multi_reduction <maximumf>, %78, %cst_44 [2] : vector<2x16x16xf32> to vector<2x16xf32>
    %80 = vector.shape_cast %79 : vector<2x16xf32> to vector<2x16x1xf32>
    %81 = vector.broadcast %80 : vector<2x16x1xf32> to vector<2x16x16xf32>
    %82 = arith.subf %78, %81 : vector<2x16x16xf32>
    %83 = math.exp %82 : vector<2x16x16xf32>
    %cst_45 = arith.constant dense<0.000000e+00> : vector<2x16xf32>
    %84 = vector.multi_reduction <add>, %83, %cst_45 [2] : vector<2x16x16xf32> to vector<2x16xf32>
    %85 = vector.shape_cast %84 : vector<2x16xf32> to vector<2x16x1xf32>
    %86 = tpu.reciprocal %85 {approx = true} : vector<2x16x1xf32> -> vector<2x16x1xf32>
    %87 = vector.broadcast %86 : vector<2x16x1xf32> to vector<2x16x16xf32>
    %88 = arith.mulf %83, %87 : vector<2x16x16xf32>
    %89 = arith.truncf %88 : vector<2x16x16xf32> to vector<2x16x16xbf16>
    "tpu.trace_start"() <{level = 10 : i32, message = "bts,bsd->btd"}> : () -> ()
    %cst_46 = arith.constant dense<0.000000e+00> : vector<2x16x128xf32>
    %90 = tpu.matmul %89, %77, %cst_46 {dimension_numbers = #tpu.dot_dimension_numbers<[2], [1], [1], [2], [0, 0, 0, 1, 1, 2], [0], [0]>} : vector<2x16x16xbf16>, vector<2x16x128xbf16>, vector<2x16x128xf32> -> vector<2x16x128xf32>
    "tpu.trace_stop"() : () -> ()
    %cst_47 = arith.constant 4.000000e+00 : f32
    %91 = vector.broadcast %cst_47 : f32 to vector<2x16x128xf32>
    %92 = arith.mulf %90, %91 : vector<2x16x128xf32>
    %93 = vector.shape_cast %92 : vector<2x16x128xf32> to vector<32x128xf32>
    %94 = arith.truncf %75 : vector<32x128xf32> to vector<32x128xbf16>
    %c0_48 = arith.constant 0 : index
    %c0_49 = arith.constant 0 : index
    %c0_50 = arith.constant 0 : index
    %95 = vector.load %arg13[%c0_48, %c0_49, %c0_50] : memref<1x128x128xbf16, #tpu.memory_space<vmem>>, vector<1x128x128xbf16>
    %96 = vector.shape_cast %95 : vector<1x128x128xbf16> to vector<128x128xbf16>
    %cst_51 = arith.constant dense<0.000000e+00> : vector<32x128xf32>
    %97 = tpu.matmul %94, %96, %cst_51 {dimension_numbers = #tpu.dot_dimension_numbers<[1], [0], [0], [1], [0, 0, 1, 1], [], []>} : vector<32x128xbf16>, vector<128x128xbf16>, vector<32x128xf32> -> vector<32x128xf32>
    %c0_52 = arith.constant 0 : index
    %c0_53 = arith.constant 0 : index
    %c0_54 = arith.constant 0 : index
    %98 = vector.load %arg14[%c0_52, %c0_53, %c0_54] : memref<1x1x128xf32, #tpu.memory_space<vmem>>, vector<1x1x128xf32>
    %99 = vector.shape_cast %98 : vector<1x1x128xf32> to vector<1x128xf32>
    %100 = vector.broadcast %99 : vector<1x128xf32> to vector<32x128xf32>
    %101 = arith.addf %97, %100 : vector<32x128xf32>
    %102 = arith.truncf %93 : vector<32x128xf32> to vector<32x128xbf16>
    %c0_55 = arith.constant 0 : index
    %c0_56 = arith.constant 0 : index
    %c0_57 = arith.constant 0 : index
    %103 = vector.load %arg15[%c0_55, %c0_56, %c0_57] : memref<1x128x128xbf16, #tpu.memory_space<vmem>>, vector<1x128x128xbf16>
    %104 = vector.shape_cast %103 : vector<1x128x128xbf16> to vector<128x128xbf16>
    %cst_58 = arith.constant dense<0.000000e+00> : vector<32x128xf32>
    %105 = tpu.matmul %102, %104, %cst_58 {dimension_numbers = #tpu.dot_dimension_numbers<[1], [0], [0], [1], [0, 0, 1, 1], [], []>} : vector<32x128xbf16>, vector<128x128xbf16>, vector<32x128xf32> -> vector<32x128xf32>
    %c0_59 = arith.constant 0 : index
    %c0_60 = arith.constant 0 : index
    %c0_61 = arith.constant 0 : index
    %106 = vector.load %arg16[%c0_59, %c0_60, %c0_61] : memref<1x1x128xf32, #tpu.memory_space<vmem>>, vector<1x1x128xf32>
    %107 = vector.shape_cast %106 : vector<1x1x128xf32> to vector<1x128xf32>
    %108 = vector.broadcast %107 : vector<1x128xf32> to vector<32x128xf32>
    %109 = arith.addf %105, %108 : vector<32x128xf32>
    %110 = arith.truncf %109 : vector<32x128xf32> to vector<32x128xbf16>
    %111 = tpu.concatenate %38, %110 in 1 : vector<32x128xbf16>, vector<32x128xbf16> -> vector<32x256xbf16>
    %c0_62 = arith.constant 0 : index
    %c0_63 = arith.constant 0 : index
    %c0_64 = arith.constant 0 : index
    %112 = vector.load %arg17[%c0_62, %c0_63, %c0_64] : memref<1x256x128xbf16, #tpu.memory_space<vmem>>, vector<1x256x128xbf16>
    %113 = vector.shape_cast %112 : vector<1x256x128xbf16> to vector<256x128xbf16>
    %cst_65 = arith.constant dense<0.000000e+00> : vector<32x128xf32>
    %114 = tpu.matmul %111, %113, %cst_65 {dimension_numbers = #tpu.dot_dimension_numbers<[1], [0], [0], [1], [0, 0, 1, 1], [], []>} : vector<32x256xbf16>, vector<256x128xbf16>, vector<32x128xf32> -> vector<32x128xf32>
    %c0_66 = arith.constant 0 : index
    %c0_67 = arith.constant 0 : index
    %c0_68 = arith.constant 0 : index
    %115 = vector.load %arg18[%c0_66, %c0_67, %c0_68] : memref<1x1x128xf32, #tpu.memory_space<vmem>>, vector<1x1x128xf32>
    %116 = vector.shape_cast %115 : vector<1x1x128xf32> to vector<1x128xf32>
    %117 = vector.broadcast %116 : vector<1x128xf32> to vector<32x128xf32>
    %118 = arith.addf %114, %117 : vector<32x128xf32>
    %119 = arith.negf %118 : vector<32x128xf32>
    %120 = math.exp %119 : vector<32x128xf32>
    %cst_69 = arith.constant 1.000000e+00 : f32
    %121 = vector.broadcast %cst_69 : f32 to vector<32x128xf32>
    %122 = arith.addf %121, %120 : vector<32x128xf32>
    %123 = arith.divf %121, %122 : vector<32x128xf32>
    %124 = arith.addf %37, %109 : vector<32x128xf32>
    %cst_70 = arith.constant 0.707106769 : f32
    %125 = vector.broadcast %cst_70 : f32 to vector<32x128xf32>
    %126 = arith.mulf %124, %125 : vector<32x128xf32>
    %127 = arith.mulf %123, %101 : vector<32x128xf32>
    %128 = arith.addf %126, %127 : vector<32x128xf32>
    %cst_71 = arith.constant 0.707106769 : f32
    %129 = vector.broadcast %cst_71 : f32 to vector<32x128xf32>
    %130 = arith.mulf %128, %129 : vector<32x128xf32>
    %131 = arith.addf %130, %6 : vector<32x128xf32>
    %cst_72 = arith.constant 0.707106769 : f32
    %132 = vector.broadcast %cst_72 : f32 to vector<32x128xf32>
    %133 = arith.mulf %131, %132 : vector<32x128xf32>
    %134 = vector.shape_cast %133 : vector<32x128xf32> to vector<2x16x128xf32>
    %c0_73 = arith.constant 0 : index
    %c0_74 = arith.constant 0 : index
    %c0_75 = arith.constant 0 : index
    %135 = vector.load %arg19[%c0_73, %c0_74, %c0_75] : memref<2x16x128xf32, #tpu.memory_space<vmem>>, vector<2x16x128xf32>
    tpu.vector_store %arg19[%c0_73, %c0_74, %c0_75], %134 {strides = array<i32>} : memref<2x16x128xf32, #tpu.memory_space<vmem>>, vector<2x16x128xf32>,
    return
  }
  func.func @transform_0(%arg0: i32, %arg1: i32) -> (i32, i32, i32) {
    %c0_i32 = arith.constant 0 : i32
    %c0_i32_0 = arith.constant 0 : i32
    %c0_i32_1 = arith.constant 0 : i32
    return %arg0, %c0_i32, %c0_i32_0 : i32, i32, i32
  }
  func.func @transform_1(%arg0: i32, %arg1: i32) -> (i32, i32, i32) {
    %c0_i32 = arith.constant 0 : i32
    %c0_i32_0 = arith.constant 0 : i32
    %c0_i32_1 = arith.constant 0 : i32
    return %arg0, %c0_i32, %c0_i32_0 : i32, i32, i32
  }
  func.func @transform_2(%arg0: i32, %arg1: i32) -> (i32, i32, i32) {
    %c0_i32 = arith.constant 0 : i32
    %c0_i32_0 = arith.constant 0 : i32
    %c0_i32_1 = arith.constant 0 : i32
    return %arg0, %c0_i32, %c0_i32_0 : i32, i32, i32
  }
  func.func @transform_3(%arg0: i32, %arg1: i32) -> (i32, i32, i32) {
    %c0_i32 = arith.constant 0 : i32
    %c0_i32_0 = arith.constant 0 : i32
    %c0_i32_1 = arith.constant 0 : i32
    return %arg0, %c0_i32, %c0_i32_0 : i32, i32, i32
  }
  func.func @transform_4(%arg0: i32, %arg1: i32) -> (i32, i32, i32) {
    %c0_i32 = arith.constant 0 : i32
    %c0_i32_0 = arith.constant 0 : i32
    %c0_i32_1 = arith.constant 0 : i32
    return %arg0, %c0_i32, %c0_i32_0 : i32, i32, i32
  }
  func.func @transform_5(%arg0: i32, %arg1: i32) -> (i32, i32) {
    %c0_i32 = arith.constant 0 : i32
    %c0_i32_0 = arith.constant 0 : i32
    %c0_i32_1 = arith.constant 0 : i32
    return %c0_i32, %c0_i32_0 : i32, i32
  }
  func.func @transform_6(%arg0: i32, %arg1: i32) -> (i32, i32) {
    %c0_i32 = arith.constant 0 : i32
    %c0_i32_0 = arith.constant 0 : i32
    %c0_i32_1 = arith.constant 0 : i32
    return %c0_i32, %c0_i32_0 : i32, i32
  }
  func.func @transform_7(%arg0: i32, %arg1: i32) -> (i32, i32, i32) {
    %c0_i32 = arith.constant 0 : i32
    %c0_i32_0 = arith.constant 0 : i32
    %c0_i32_1 = arith.constant 0 : i32
    return %arg1, %c0_i32, %c0_i32_0 : i32, i32, i32
  }
  func.func @transform_8(%arg0: i32, %arg1: i32) -> (i32, i32, i32) {
    %c0_i32 = arith.constant 0 : i32
    %c0_i32_0 = arith.constant 0 : i32
    %c0_i32_1 = arith.constant 0 : i32
    return %arg1, %c0_i32, %c0_i32_0 : i32, i32, i32
  }
  func.func @transform_9(%arg0: i32, %arg1: i32) -> (i32, i32, i32) {
    %c0_i32 = arith.constant 0 : i32
    %c0_i32_0 = arith.constant 0 : i32
    %c0_i32_1 = arith.constant 0 : i32
    return %arg1, %c0_i32, %c0_i32_0 : i32, i32, i32
  }
  func.func @transform_10(%arg0: i32, %arg1: i32) -> (i32, i32, i32) {
    %c0_i32 = arith.constant 0 : i32
    %c0_i32_0 = arith.constant 0 : i32
    %c0_i32_1 = arith.constant 0 : i32
    return %arg1, %c0_i32, %c0_i32_0 : i32, i32, i32
  }
  func.func @transform_11(%arg0: i32, %arg1: i32) -> (i32, i32, i32) {
    %c0_i32 = arith.constant 0 : i32
    %c0_i32_0 = arith.constant 0 : i32
    %c0_i32_1 = arith.constant 0 : i32
    return %arg1, %c0_i32, %c0_i32_0 : i32, i32, i32
  }
  func.func @transform_12(%arg0: i32, %arg1: i32) -> (i32, i32, i32) {
    %c0_i32 = arith.constant 0 : i32
    %c0_i32_0 = arith.constant 0 : i32
    %c0_i32_1 = arith.constant 0 : i32
    return %arg1, %c0_i32, %c0_i32_0 : i32, i32, i32
  }
  func.func @transform_13(%arg0: i32, %arg1: i32) -> (i32, i32, i32) {
    %c0_i32 = arith.constant 0 : i32
    %c0_i32_0 = arith.constant 0 : i32
    %c0_i32_1 = arith.constant 0 : i32
    return %arg1, %c0_i32, %c0_i32_0 : i32, i32, i32
  }
  func.func @transform_14(%arg0: i32, %arg1: i32) -> (i32, i32, i32) {
    %c0_i32 = arith.constant 0 : i32
    %c0_i32_0 = arith.constant 0 : i32
    %c0_i32_1 = arith.constant 0 : i32
    return %arg1, %c0_i32, %c0_i32_0 : i32, i32, i32
  }
  func.func @transform_15(%arg0: i32, %arg1: i32) -> (i32, i32, i32) {
    %c0_i32 = arith.constant 0 : i32
    %c0_i32_0 = arith.constant 0 : i32
    %c0_i32_1 = arith.constant 0 : i32
    return %arg1, %c0_i32, %c0_i32_0 : i32, i32, i32
  }
  func.func @transform_16(%arg0: i32, %arg1: i32) -> (i32, i32, i32) {
    %c0_i32 = arith.constant 0 : i32
    %c0_i32_0 = arith.constant 0 : i32
    %c0_i32_1 = arith.constant 0 : i32
    return %arg1, %c0_i32, %c0_i32_0 : i32, i32, i32
  }
  func.func @transform_17(%arg0: i32, %arg1: i32) -> (i32, i32, i32) {
    %c0_i32 = arith.constant 0 : i32
    %c0_i32_0 = arith.constant 0 : i32
    %c0_i32_1 = arith.constant 0 : i32
    return %arg0, %c0_i32, %c0_i32_0 : i32, i32, i32
  }
}

module attributes {stable_mosaic.version = 11 : i64} {
  func.func @_fc2_kernel(%arg0: i32, %arg1: memref<16x128xf32, #tpu.memory_space<vmem>>, %arg2: memref<128x128xbf16, #tpu.memory_space<vmem>>, %arg3: memref<1x128xf32, #tpu.memory_space<vmem>>, %arg4: memref<16x128xbf16, #tpu.memory_space<vmem>>) attributes {dimension_semantics = [#tpu.dimension_semantics<parallel>], iteration_bounds = array<i64: 2>, scalar_prefetch = 0 : i64, scratch_operands = 0 : i64, tpu.core_type = #tpu.core_type<tc>, window_params = [{transform_indices = @transform_0, window_bounds = array<i64: 16, 128>}, {pipeline_mode = #tpu.pipeline_mode<synchronous>, transform_indices = @transform_1, window_bounds = array<i64: 128, 128>}, {pipeline_mode = #tpu.pipeline_mode<synchronous>, transform_indices = @transform_2, window_bounds = array<i64: 1, 128>}, {transform_indices = @transform_3, window_bounds = array<i64: 16, 128>}]} {
    %c0 = arith.constant 0 : index
    %c0_0 = arith.constant 0 : index
    %0 = vector.load %arg1[%c0, %c0_0] : memref<16x128xf32, #tpu.memory_space<vmem>>, vector<16x128xf32>
    %1 = arith.truncf %0 : vector<16x128xf32> to vector<16x128xbf16>
    %c0_1 = arith.constant 0 : index
    %c0_2 = arith.constant 0 : index
    %2 = vector.load %arg2[%c0_1, %c0_2] : memref<128x128xbf16, #tpu.memory_space<vmem>>, vector<128x128xbf16>
    %cst = arith.constant dense<0.000000e+00> : vector<16x128xf32>
    %3 = tpu.matmul %1, %2, %cst {dimension_numbers = #tpu.dot_dimension_numbers<[1], [0], [0], [1], [0, 0, 1, 1], [], []>} : vector<16x128xbf16>, vector<128x128xbf16>, vector<16x128xf32> -> vector<16x128xf32>
    %c0_3 = arith.constant 0 : index
    %c0_4 = arith.constant 0 : index
    %4 = vector.load %arg3[%c0_3, %c0_4] : memref<1x128xf32, #tpu.memory_space<vmem>>, vector<1x128xf32>
    %5 = vector.broadcast %4 : vector<1x128xf32> to vector<16x128xf32>
    %6 = arith.addf %3, %5 : vector<16x128xf32>
    %7 = arith.truncf %6 : vector<16x128xf32> to vector<16x128xbf16>
    %c0_5 = arith.constant 0 : index
    %c0_6 = arith.constant 0 : index
    %8 = vector.load %arg4[%c0_5, %c0_6] : memref<16x128xbf16, #tpu.memory_space<vmem>>, vector<16x128xbf16>
    tpu.vector_store %arg4[%c0_5, %c0_6], %7 {strides = array<i32>} : memref<16x128xbf16, #tpu.memory_space<vmem>>, vector<16x128xbf16>,
    return
  }
  func.func @transform_0(%arg0: i32) -> (i32, i32) {
    %c0_i32 = arith.constant 0 : i32
    %c0_i32_0 = arith.constant 0 : i32
    return %arg0, %c0_i32 : i32, i32
  }
  func.func @transform_1(%arg0: i32) -> (i32, i32) {
    %c0_i32 = arith.constant 0 : i32
    %c0_i32_0 = arith.constant 0 : i32
    %c0_i32_1 = arith.constant 0 : i32
    return %c0_i32, %c0_i32_0 : i32, i32
  }
  func.func @transform_2(%arg0: i32) -> (i32, i32) {
    %c0_i32 = arith.constant 0 : i32
    %c0_i32_0 = arith.constant 0 : i32
    %c0_i32_1 = arith.constant 0 : i32
    return %c0_i32, %c0_i32_0 : i32, i32
  }
  func.func @transform_3(%arg0: i32) -> (i32, i32) {
    %c0_i32 = arith.constant 0 : i32
    %c0_i32_0 = arith.constant 0 : i32
    return %arg0, %c0_i32 : i32, i32
  }
}

</mosaic_0001>

<llo_original>
// kernel: conv_decoder_forward.5
$region0: #{conv_decoder_forward.5}
  #allocation0 [shape = 'u32[]', space=smem, size = 0x4, offset = 0x4, fixed_abs, tag = 'smem constant byte address 0x4 - core index']
  #allocation1 [shape = 'u32[144,128]{1,0:T(1,128)}', space=vmem, size = 0x12000, scoped, tag = 'internal scratch']
  %s0 = inlined_call_operand.vmem [shape: bf16[32,128], index: 0, kind: input, shape index: {}]
  %s1 = inlined_call_operand.vmem [shape: bf16[128,256], index: 1, kind: input, shape index: {}]
  %s2 = inlined_call_operand.vmem [shape: f32[1,256], index: 2, kind: input, shape index: {}]
  %s3 = inlined_call_operand.hbm [shape: f32[32,256], index: 3, kind: output, shape index: {}]
  %s4 = sld [smem:[#allocation0]]
  $region86: #{conv_decoder_forward.5} parent=0
    _
  %s6 = ssub.s32 1, %s4
  %s7 = scalar_select 0, %s6, %s4
  $region1: #{conv_decoder_forward.5} parent=0
    #allocation2 [shape = 'u8[65536]{0}', space=vmem, size = 0x10000, scoped, tag = 'input window, operand 1']
    #allocation3 [shape = 'u8[16384]{0}', space=vmem, size = 0x4000, scoped, tag = 'output window, operand 0']
    #allocation4 [shape = 's32[2]{0}', space=sflag, size = 0x8, scoped, tag = 'scoped memory for conv_decoder_forward.5']
    %8 = vsyncpa [#allocation4], 0
    %s9 = scalar_lea.sflag [#allocation4], 1
    %10 = vsyncpa %s9, 0
    loop: start=0, step=1, limit=6
    $region2: #{conv_decoder_forward.5} parent=1 // loop_pre_header
      _
    $region3: #{conv_decoder_forward.5} parent=1 // loop_header
      %s12 = sphi 0, %s16
      %p13 = scmp.ge.s32.totalorder %s12, 6
      %s19 = sphi 0, %s31
      %s20 = sphi 0, %s27
      %s21 = sphi 0, %s19
      %s22 = sphi 0, %s20
      %s23 = sphi 0, %s21
      %s24 = sphi 0, %s22
      %s34 = sphi 0, %s36
      %s37 = sphi 0, %s34
      %s38 = sphi 0, %s37
      %s54 = sphi 0, %s38
      %s60 = sphi 0, %s62
      %s63 = sphi 0, %s60
      %s64 = sphi 0, %s63
      %s80 = sphi 0, %s64
      %s86 = sphi 0, %s88
      %s89 = sphi 0, %s86
      %s90 = sphi 0, %s89
      %s106 = sphi 0, %s90
      %s114 = sphi 0, %s116
      %s117 = sphi 0, %s114
      %s118 = sphi 0, %s117
      %s134 = sphi 0, %s118
    $region4: #{conv_decoder_forward.5} parent=1 // loop_header_branch
      %15 = sbr.rel (%p13) target = $region8
    $region5: #{conv_decoder_forward.5} parent=1 // loop_body
      %s17 = ssub.s32 %s12, 1
      %s18 = ssub.s32 %s12, 2
      %s25 = sadd.s32 1, %s20
      %p26 = scmp.ge.s32.totalorder %s25, 2
      %s27 = scalar_select %p26, 0, %s25
      %s28 = sadd.s32 1, %s19
      %s29 = scalar_select %p26, %s28, %s19
      %p30 = scmp.ge.s32.totalorder %s29, 2
      %s31 = scalar_select %p30, 0, %s29
      %s32 = ssub.s32 %s20, %s27
      %p33 = scmp.eq.s32.totalorder %s32, 0
      %s35 = sadd.s32 %s34, 1
      %s36 = scalar_select %p33, %s34, %s35
      %p39 = pneg %p33
      %p40 = scmp.eq.s32.totalorder %s12, 3
      %p41 = por %p39, %p40
      %p42 = scmp.ne.s32.totalorder %s34, %s37
      %p43 = scmp.eq.s32.totalorder %s12, 0
      %p44 = por %p42, %p43
      %p45 = scmp.ne.s32.totalorder %s34, %s37
      %p46 = scmp.eq.s32.totalorder %s17, 3
      %p47 = por %p45, %p46
      %p48 = scmp.ne.s32.totalorder %s37, %s38
      %p49 = scmp.eq.s32.totalorder %s17, 0
      %p50 = por %p48, %p49
      %p51 = scmp.ne.s32.totalorder %s37, %s38
      %p52 = scmp.eq.s32.totalorder %s18, 3
      %p53 = por %p51, %p52
      %p55 = scmp.ne.s32.totalorder %s38, %s54
      %p56 = scmp.eq.s32.totalorder %s18, 0
      %p57 = por %p55, %p56
      %s58 = ssub.s32 %s19, %s31
      %p59 = scmp.eq.s32.totalorder %s58, 0
      %s61 = sadd.s32 %s60, 1
      %s62 = scalar_select %p59, %s60, %s61
      %p65 = pneg %p59
      %p66 = scmp.eq.s32.totalorder %s12, 3
      %p67 = por %p65, %p66
      %p68 = scmp.ne.s32.totalorder %s60, %s63
      %p69 = scmp.eq.s32.totalorder %s12, 0
      %p70 = por %p68, %p69
      %p71 = scmp.ne.s32.totalorder %s60, %s63
      %p72 = scmp.eq.s32.totalorder %s17, 3
      %p73 = por %p71, %p72
      %p74 = scmp.ne.s32.totalorder %s63, %s64
      %p75 = scmp.eq.s32.totalorder %s17, 0
      %p76 = por %p74, %p75
      %p77 = scmp.ne.s32.totalorder %s63, %s64
      %p78 = scmp.eq.s32.totalorder %s18, 3
      %p79 = por %p77, %p78
      %p81 = scmp.ne.s32.totalorder %s64, %s80
      %p82 = scmp.eq.s32.totalorder %s18, 0
      %p83 = por %p81, %p82
      %s84 = ssub.s32 %s19, %s31
      %p85 = scmp.eq.s32.totalorder %s84, 0
      %s87 = sadd.s32 %s86, 1
      %s88 = scalar_select %p85, %s86, %s87
      %p91 = pneg %p85
      %p92 = scmp.eq.s32.totalorder %s12, 3
      %p93 = por %p91, %p92
      %p94 = scmp.ne.s32.totalorder %s86, %s89
      %p95 = scmp.eq.s32.totalorder %s12, 0
      %p96 = por %p94, %p95
      %p97 = scmp.ne.s32.totalorder %s86, %s89
      %p98 = scmp.eq.s32.totalorder %s17, 3
      %p99 = por %p97, %p98
      %p100 = scmp.ne.s32.totalorder %s89, %s90
      %p101 = scmp.eq.s32.totalorder %s17, 0
      %p102 = por %p100, %p101
      %p103 = scmp.ne.s32.totalorder %s89, %s90
      %p104 = scmp.eq.s32.totalorder %s18, 3
      %p105 = por %p103, %p104
      %p107 = scmp.ne.s32.totalorder %s90, %s106
      %p108 = scmp.eq.s32.totalorder %s18, 0
      %p109 = por %p107, %p108
      %s110 = ssub.s32 %s20, %s27
      %s111 = ssub.s32 %s19, %s31
      %s112 = sor.u32 %s110, %s111
      %p113 = scmp.eq.s32.totalorder %s112, 0
      %s115 = sadd.s32 %s114, 1
      %s116 = scalar_select %p113, %s114, %s115
      %p119 = pneg %p113
      %p120 = scmp.eq.s32.totalorder %s12, 3
      %p121 = por %p119, %p120
      %p122 = scmp.ne.s32.totalorder %s114, %s117
      %p123 = scmp.eq.s32.totalorder %s12, 0
      %p124 = por %p122, %p123
      %p125 = scmp.ne.s32.totalorder %s114, %s117
      %p126 = scmp.eq.s32.totalorder %s17, 3
      %p127 = por %p125, %p126
      %p128 = scmp.ne.s32.totalorder %s117, %s118
      %p129 = scmp.eq.s32.totalorder %s17, 0
      %p130 = por %p128, %p129
      %p131 = scmp.ne.s32.totalorder %s117, %s118
      %p132 = scmp.eq.s32.totalorder %s18, 3
      %p133 = por %p131, %p132
      %p135 = scmp.ne.s32.totalorder %s118, %s134
      %p136 = scmp.eq.s32.totalorder %s18, 0
      %p137 = por %p135, %p136
      %p138 = scmp.le.s32.totalorder 1, %s12
      %p139 = scmp.lt.s32.totalorder %s12, 5
      %p140 = pnand %p138, %p139
      %p141 = pneg %p140
      // Predicated region
      $region9: #{conv_decoder_forward.5} parent=5 // pred_check
        _
      $region10: #{conv_decoder_forward.5} parent=5 // pred_check_branch
        %143 = sbr.rel (%p140) target = $region12
      $region11: #{conv_decoder_forward.5} parent=5 // pred_region
        %s144 = ssub.s32 %s12, 1
      $region12: #{conv_decoder_forward.5} parent=5 // pred_fallthru
        _
      %p145 = scmp.lt.s32.totalorder %s12, 4
      // Predicated region
      $region13: #{conv_decoder_forward.5} parent=5 // pred_check
        %p146 = pneg %p145
      $region14: #{conv_decoder_forward.5} parent=5 // pred_check_branch
        %148 = sbr.rel (%p146) target = $region16
      $region15: #{conv_decoder_forward.5} parent=5 // pred_region
        // Predicated region
        $region17: #{conv_decoder_forward.5} parent=15 // pred_check
          %p149 = pneg %p44
        $region18: #{conv_decoder_forward.5} parent=15 // pred_check_branch
          %151 = sbr.rel (%p149) target = $region20
        $region19: #{conv_decoder_forward.5} parent=15 // pred_region
          %s152 = smul.u32 2, %s20
          %p153 = scmp.lt.s32.totalorder %s152, 3
          %s154 = scalar_select %p153, %s152, 3
          %s155 = smul.addr %s154, 4
          %s156 = scalar_lea.vmem %s0, %s155
          %s157 = smul.u32 2, %s20
        $region20: #{conv_decoder_forward.5} parent=15 // pred_fallthru
          _
        // Predicated region
        $region21: #{conv_decoder_forward.5} parent=15 // pred_check
          %p158 = pneg %p70
        $region22: #{conv_decoder_forward.5} parent=15 // pred_check_branch
          %160 = sbr.rel (%p158) target = $region24
        $region23: #{conv_decoder_forward.5} parent=15 // pred_region
          %s161 = sand.u32 %s60, 1
          %s162 = sand.u32 %s60, 1
          %s163 = smul.addr %s162, 64
          %s164 = scalar_lea.vmem [#allocation2], %s163
          %s165 = smul.addr %s19, 4
          %s166 = scalar_lea.vmem %s1, %s165
          // Predicated region
          $region25: #{conv_decoder_forward.5} parent=23 // pred_check
            _
          $region26: #{conv_decoder_forward.5} parent=23 // pred_check_branch
            %168 = sbr.rel (0) target = $region28
          $region27: #{conv_decoder_forward.5} parent=23 // pred_region
            // Predicated region
            $region29: #{conv_decoder_forward.5} parent=27 // pred_check
              _
            $region30: #{conv_decoder_forward.5} parent=27 // pred_check_branch
              %170 = sbr.rel target = $region32
            $region31: #{conv_decoder_forward.5} parent=27 // pred_region
              // Predicated region
              $region44: #{conv_decoder_forward.5} parent=31 // pred_check
                _
              $region45: #{conv_decoder_forward.5} parent=31 // pred_check_branch
                %215 = sbr.rel (0) target = $region47
              $region46: #{conv_decoder_forward.5} parent=31 // pred_region
                loop: start=0, step=1, limit=1
                $region48: #{conv_decoder_forward.5} parent=46 // loop_pre_header
                  _
                $region49: #{conv_decoder_forward.5} parent=46 // loop_header
                  %s217 = sphi 0, %s221
                  %p218 = scmp.ge.s32.totalorder %s217, 1
                  %s222 = sphi %s166, %s166
                  %s223 = sphi %s164, %s164
                $region50: #{conv_decoder_forward.5} parent=46 // loop_header_branch
                  %220 = sbr.rel (%p218) target = $region54
                $region51: #{conv_decoder_forward.5} parent=46 // loop_body
                  _
                $region52: #{conv_decoder_forward.5} parent=46 // loop_footer
                  %s221 = sadd.s32 1, %s217
                $region53: #{conv_decoder_forward.5} parent=46 // loop_footer_branch
                  %216 = sbr.rel target = $region49
                $region54: #{conv_decoder_forward.5} parent=46 // loop_exit
                  _
                loop: start=0, step=1, limit=1
                $region55: #{conv_decoder_forward.5} parent=46 // loop_pre_header
                  _
                $region56: #{conv_decoder_forward.5} parent=46 // loop_header
                  %s226 = sphi 0, %s230
                  %p227 = scmp.ge.s32.totalorder %s226, 1
                  %s231 = sphi %s166, %s166
                  %s232 = sphi %s164, %s164
                $region57: #{conv_decoder_forward.5} parent=46 // loop_header_branch
                  %229 = sbr.rel (%p227) target = $region61
                $region58: #{conv_decoder_forward.5} parent=46 // loop_body
                  %v233 = vld [vmem:[%s231] sm:$0xf]
                  %234 = vst [vmem:[%s232] sm:$0xf] %v233
                  %v235 = vld [vmem:[%s231 + $0x8] sm:$0xf]
                  %236 = vst [vmem:[%s232 + $0x4] sm:$0xf] %v235
                  %v237 = vld [vmem:[%s231 + $0x10] sm:$0xf]
                  %238 = vst [vmem:[%s232 + $0x8] sm:$0xf] %v237
                  %v239 = vld [vmem:[%s231 + $0x18] sm:$0xf]
                  %240 = vst [vmem:[%s232 + $0xc] sm:$0xf] %v239
                  %v241 = vld [vmem:[%s231 + $0x20] sm:$0xf]
                  %242 = vst [vmem:[%s232 + $0x10] sm:$0xf] %v241
                  %v243 = vld [vmem:[%s231 + $0x28] sm:$0xf]
                  %244 = vst [vmem:[%s232 + $0x14] sm:$0xf] %v243
                  %v245 = vld [vmem:[%s231 + $0x30] sm:$0xf]
                  %246 = vst [vmem:[%s232 + $0x18] sm:$0xf] %v245
                  %v247 = vld [vmem:[%s231 + $0x38] sm:$0xf]
                  %248 = vst [vmem:[%s232 + $0x1c] sm:$0xf] %v247
                  %v249 = vld [vmem:[%s231 + $0x40] sm:$0xf]
                  %250 = vst [vmem:[%s232 + $0x20] sm:$0xf] %v249
                  %v251 = vld [vmem:[%s231 + $0x48] sm:$0xf]
                  %252 = vst [vmem:[%s232 + $0x24] sm:$0xf] %v251
                  %v253 = vld [vmem:[%s231 + $0x50] sm:$0xf]
                  %254 = vst [vmem:[%s232 + $0x28] sm:$0xf] %v253
                  %v255 = vld [vmem:[%s231 + $0x58] sm:$0xf]
                  %256 = vst [vmem:[%s232 + $0x2c] sm:$0xf] %v255
                  %v257 = vld [vmem:[%s231 + $0x60] sm:$0xf]
                  %258 = vst [vmem:[%s232 + $0x30] sm:$0xf] %v257
                  %v259 = vld [vmem:[%s231 + $0x68] sm:$0xf]
                  %260 = vst [vmem:[%s232 + $0x34] sm:$0xf] %v259
                  %v261 = vld [vmem:[%s231 + $0x70] sm:$0xf]
                  %262 = vst [vmem:[%s232 + $0x38] sm:$0xf] %v261
                  %v263 = vld [vmem:[%s231 + $0x78] sm:$0xf]
                  %264 = vst [vmem:[%s232 + $0x3c] sm:$0xf] %v263
                $region59: #{conv_decoder_forward.5} parent=46 // loop_footer
                  %s230 = sadd.s32 1, %s226
                $region60: #{conv_decoder_forward.5} parent=46 // loop_footer_branch
                  %225 = sbr.rel target = $region56
                $region61: #{conv_decoder_forward.5} parent=46 // loop_exit
                  _
              $region47: #{conv_decoder_forward.5} parent=31 // pred_fallthru
                _
            $region32: #{conv_decoder_forward.5} parent=27 // pred_fallthru
              _
            // Predicated region
            $region33: #{conv_decoder_forward.5} parent=27 // pred_check
              _
            $region34: #{conv_decoder_forward.5} parent=27 // pred_check_branch
              %172 = sbr.rel (0) target = $region36
            $region35: #{conv_decoder_forward.5} parent=27 // pred_region
              loop: start=0, step=1, limit=1
              $region37: #{conv_decoder_forward.5} parent=35 // loop_pre_header
                _
              $region38: #{conv_decoder_forward.5} parent=35 // loop_header
                %s175 = sphi 0, %s179
                %p176 = scmp.ge.s32.totalorder %s175, 1
                %s180 = sphi %s166, %s166
                %s181 = sphi %s164, %s164
              $region39: #{conv_decoder_forward.5} parent=35 // loop_header_branch
                %178 = sbr.rel (%p176) target = $region43
              $region40: #{conv_decoder_forward.5} parent=35 // loop_body
                %v182 = vld [vmem:[%s180] sm:$0xf]
                %183 = vst [vmem:[%s181] sm:$0xf] %v182
                %v184 = vld [vmem:[%s180 + $0x8] sm:$0xf]
                %185 = vst [vmem:[%s181 + $0x4] sm:$0xf] %v184
                %v186 = vld [vmem:[%s180 + $0x10] sm:$0xf]
                %187 = vst [vmem:[%s181 + $0x8] sm:$0xf] %v186
                %v188 = vld [vmem:[%s180 + $0x18] sm:$0xf]
                %189 = vst [vmem:[%s181 + $0xc] sm:$0xf] %v188
                %v190 = vld [vmem:[%s180 + $0x20] sm:$0xf]
                %191 = vst [vmem:[%s181 + $0x10] sm:$0xf] %v190
                %v192 = vld [vmem:[%s180 + $0x28] sm:$0xf]
                %193 = vst [vmem:[%s181 + $0x14] sm:$0xf] %v192
                %v194 = vld [vmem:[%s180 + $0x30] sm:$0xf]
                %195 = vst [vmem:[%s181 + $0x18] sm:$0xf] %v194
                %v196 = vld [vmem:[%s180 + $0x38] sm:$0xf]
                %197 = vst [vmem:[%s181 + $0x1c] sm:$0xf] %v196
                %v198 = vld [vmem:[%s180 + $0x40] sm:$0xf]
                %199 = vst [vmem:[%s181 + $0x20] sm:$0xf] %v198
                %v200 = vld [vmem:[%s180 + $0x48] sm:$0xf]
                %201 = vst [vmem:[%s181 + $0x24] sm:$0xf] %v200
                %v202 = vld [vmem:[%s180 + $0x50] sm:$0xf]
                %203 = vst [vmem:[%s181 + $0x28] sm:$0xf] %v202
                %v204 = vld [vmem:[%s180 + $0x58] sm:$0xf]
                %205 = vst [vmem:[%s181 + $0x2c] sm:$0xf] %v204
                %v206 = vld [vmem:[%s180 + $0x60] sm:$0xf]
                %207 = vst [vmem:[%s181 + $0x30] sm:$0xf] %v206
                %v208 = vld [vmem:[%s180 + $0x68] sm:$0xf]
                %209 = vst [vmem:[%s181 + $0x34] sm:$0xf] %v208
                %v210 = vld [vmem:[%s180 + $0x70] sm:$0xf]
                %211 = vst [vmem:[%s181 + $0x38] sm:$0xf] %v210
                %v212 = vld [vmem:[%s180 + $0x78] sm:$0xf]
                %213 = vst [vmem:[%s181 + $0x3c] sm:$0xf] %v212
              $region41: #{conv_decoder_forward.5} parent=35 // loop_footer
                %s179 = sadd.s32 1, %s175
              $region42: #{conv_decoder_forward.5} parent=35 // loop_footer_branch
                %174 = sbr.rel target = $region38
              $region43: #{conv_decoder_forward.5} parent=35 // loop_exit
                _
            $region36: #{conv_decoder_forward.5} parent=27 // pred_fallthru
              _
          $region28: #{conv_decoder_forward.5} parent=23 // pred_fallthru
            _
          %265 = vnop
        $region24: #{conv_decoder_forward.5} parent=15 // pred_fallthru
          _
        // Predicated region
        $region62: #{conv_decoder_forward.5} parent=15 // pred_check
          %p266 = pneg %p96
        $region63: #{conv_decoder_forward.5} parent=15 // pred_check_branch
          %268 = sbr.rel (%p266) target = $region65
        $region64: #{conv_decoder_forward.5} parent=15 // pred_region
          %p269 = scmp.lt.s32.totalorder %s19, 1
          %s270 = scalar_select %p269, %s19, 1
          %s271 = scalar_lea.vmem %s2, %s270
        $region65: #{conv_decoder_forward.5} parent=15 // pred_fallthru
          _
      $region16: #{conv_decoder_forward.5} parent=5 // pred_fallthru
        _
      %p272 = scmp.le.s32.totalorder 1, %s12
      %p273 = scmp.lt.s32.totalorder %s12, 5
      %p274 = pnand %p272, %p273
      %p275 = pneg %p274
      // Predicated region
      $region66: #{conv_decoder_forward.5} parent=5 // pred_check
        _
      $region67: #{conv_decoder_forward.5} parent=5 // pred_check_branch
        %277 = sbr.rel (%p274) target = $region69
      $region68: #{conv_decoder_forward.5} parent=5 // pred_region
        %s278 = ssub.s32 %s12, 1
        %s279 = sand.u32 %s63, 1
        %s280 = sand.u32 %s63, 1
        %s281 = smul.addr %s280, 64
        %s282 = scalar_lea.vmem [#allocation2], %s281
        // Predicated region
        $region70: #{conv_decoder_forward.5} parent=68 // pred_check
          %p283 = pneg %p76
        $region71: #{conv_decoder_forward.5} parent=68 // pred_check_branch
          %285 = sbr.rel (%p283) target = $region73
        $region72: #{conv_decoder_forward.5} parent=68 // pred_region
          _
        $region73: #{conv_decoder_forward.5} parent=68 // pred_fallthru
          _
        %s286 = smul.u32 2, %s22
        %p287 = scmp.lt.s32.totalorder %s286, 3
        %s288 = scalar_select %p287, %s286, 3
        %s289 = smul.addr %s288, 4
        %s290 = scalar_lea.vmem %s0, %s289
        %p291 = pneg %p50
        %p292 = pneg %p47
        %s293 = sand.u32 %s63, 1
        %s294 = sand.u32 %s63, 1
        %s295 = smul.addr %s294, 64
        %s296 = scalar_lea.vmem [#allocation2], %s295
        %p297 = pneg %p76
        %p298 = pneg %p73
        %p299 = scmp.lt.s32.totalorder %s21, 1
        %s300 = scalar_select %p299, %s21, 1
        %s301 = scalar_lea.vmem %s2, %s300
        %p302 = pneg %p102
        %p303 = pneg %p99
        %p304 = pneg %p130
        %p305 = pneg %p127
        %s306 = sand.u32 %s117, 1
        %s307 = scalar_lea.sflag [#allocation4], %s306
        %s308 = sand.u32 %s117, 1
        %s309 = smul.addr %s308, 16
        %s310 = scalar_lea.vmem [#allocation3], %s309
        %s311 = smul.u32 2, %s22
        %p312 = scmp.lt.s32.totalorder %s311, 3
        %s313 = scalar_select %p312, %s311, 3
        %s314 = smul.addr %s313, 4
        %s315 = scalar_lea.vmem %s0, %s314
        %s316 = smul.u32 2, %s22
        %p317 = scmp.lt.s32.totalorder %s21, 1
        %s318 = scalar_select %p317, %s21, 1
        %s319 = scalar_lea.vmem %s2, %s318
        %s320 = smul.u32 2, %s22
        %v322 = vld [vmem:[%s315] sm:$0xf]
        %v323 = vld [vmem:[%s315 + $0x4] sm:$0xf]
        %v324 = vld [vmem:[%s282] sm:$0xf]
        %v325 = vld [vmem:[%s282 + $0x4] sm:$0xf]
        %v326 = vld [vmem:[%s282 + $0x8] sm:$0xf]
        %v327 = vld [vmem:[%s282 + $0xc] sm:$0xf]
        %v328 = vld [vmem:[%s282 + $0x10] sm:$0xf]
        %v329 = vld [vmem:[%s282 + $0x14] sm:$0xf]
        %v330 = vld [vmem:[%s282 + $0x18] sm:$0xf]
        %v331 = vld [vmem:[%s282 + $0x1c] sm:$0xf]
        %v332 = vld [vmem:[%s282 + $0x20] sm:$0xf]
        %v333 = vld [vmem:[%s282 + $0x24] sm:$0xf]
        %v334 = vld [vmem:[%s282 + $0x28] sm:$0xf]
        %v335 = vld [vmem:[%s282 + $0x2c] sm:$0xf]
        %v336 = vld [vmem:[%s282 + $0x30] sm:$0xf]
        %v337 = vld [vmem:[%s282 + $0x34] sm:$0xf]
        %v338 = vld [vmem:[%s282 + $0x38] sm:$0xf]
        %v339 = vld [vmem:[%s282 + $0x3c] sm:$0xf]
        %v340 = vld [vmem:[%s319] sm:$0x1]
        %v342 = vlaneseq
        %v343 = vshrl.u32 %v342, 7
        %v344 = vsub.s32 0, %v343
        %v345 = vrot.slane %v340, %v344
        %v349 = vunpack.c.l.b16 %v322
        %v350 = vunpack.c.l.b16 %v323
        %v351 = vpack.c.b16 %v350, %v349
        %v369 = vunpack.c.l.b16 %v324
        %v370 = vunpack.c.l.b16 %v325
        %v371 = vunpack.c.l.b16 %v326
        %v372 = vunpack.c.l.b16 %v327
        %v373 = vunpack.c.l.b16 %v328
        %v374 = vunpack.c.l.b16 %v329
        %v375 = vunpack.c.l.b16 %v330
        %v376 = vunpack.c.l.b16 %v331
        %v377 = vunpack.c.l.b16 %v332
        %v378 = vunpack.c.l.b16 %v333
        %v379 = vunpack.c.l.b16 %v334
        %v380 = vunpack.c.l.b16 %v335
        %v381 = vunpack.c.l.b16 %v336
        %v382 = vunpack.c.l.b16 %v337
        %v383 = vunpack.c.l.b16 %v338
        %v384 = vunpack.c.l.b16 %v339
        %v385 = vpack.c.b16 %v370, %v369
        %v386 = vpack.c.b16 %v372, %v371
        %v387 = vpack.c.b16 %v374, %v373
        %v388 = vpack.c.b16 %v376, %v375
        %v389 = vpack.c.b16 %v378, %v377
        %v390 = vpack.c.b16 %v380, %v379
        %v391 = vpack.c.b16 %v382, %v381
        %v392 = vpack.c.b16 %v384, %v383
        %401 = vmatprep.subr.bf16.mxu0 0
        %402 = vmatpush1.bf16.msra.mxu0 %v385
        %403 = vmatprep.subr.bf16.mxu0 0
        %404 = vmatpush1.bf16.msra.mxu0 %v386
        %405 = vmatprep.subr.bf16.mxu0 0
        %406 = vmatpush1.bf16.msra.mxu0 %v387
        %407 = vmatprep.subr.bf16.mxu0 0
        %408 = vmatpush1.bf16.msra.mxu0 %v388
        %409 = vmatprep.subr.bf16.mxu0 0
        %410 = vmatpush1.bf16.msra.mxu0 %v389
        %411 = vmatprep.subr.bf16.mxu0 0
        %412 = vmatpush1.bf16.msra.mxu0 %v390
        %413 = vmatprep.subr.bf16.mxu0 0
        %414 = vmatpush1.bf16.msra.mxu0 %v391
        %415 = vmatprep.subr.bf16.mxu0 0
        %416 = vmatpush1.bf16.msra.mxu0 %v392
        %417 = vmatprep.subr.bf16.mxu0 0
        %418 = vmatpush1.bf16.msra.mxu0 0
        %419 = vmatprep.subr.bf16.mxu0 0
        %420 = vmatpush1.bf16.msra.mxu0 0
        %421 = vmatprep.subr.bf16.mxu0 0
        %422 = vmatpush1.bf16.msra.mxu0 0
        %423 = vmatprep.subr.bf16.mxu0 0
        %424 = vmatpush1.bf16.msra.mxu0 0
        %425 = vmatprep.subr.bf16.mxu0 0
        %426 = vmatpush1.bf16.msra.mxu0 0
        %427 = vmatprep.subr.bf16.mxu0 0
        %428 = vmatpush1.bf16.msra.mxu0 0
        %429 = vmatprep.subr.bf16.mxu0 0
        %430 = vmatpush1.bf16.msra.mxu0 0
        %431 = vmatprep.subr.bf16.mxu0 0
        %432 = vmatpush1.bf16.msra.mxu0 0
        %433 = vmatprep.mubr.bf16.mxu0 0
        %434 = vmatmul.mubr.bf16.gmra.mrb[0].mxu0 %v351
        %v435 = vpop.f32.mrb[0].mxu0
        %v436 = vadd.f32 %v345, %v435
        %v437 = vpop.f32.mrb[0].mxu0
        %v438 = vpop.f32.mrb[0].mxu0
        %v439 = vadd.f32 %v345, %v438
        %v440 = vpop.f32.mrb[0].mxu0
        %441 = vdwg.mxu0
        %442 = vst [vmem:[%s310] sm:$0xff] %v436
        %443 = vst [vmem:[%s310 + $0x8] sm:$0xff] %v439
        %s444 = sand.u32 %s117, 1
        %s445 = scalar_lea.sflag [#allocation4], %s444
        %s446 = sand.u32 %s117, 1
        %s447 = smul.addr %s446, 16
        %s448 = scalar_lea.vmem [#allocation3], %s447
        // Predicated region
        $region74: #{conv_decoder_forward.5} parent=68 // pred_check
          %p449 = pneg %p127
        $region75: #{conv_decoder_forward.5} parent=68 // pred_check_branch
          %451 = sbr.rel (%p449) target = $region77
        $region76: #{conv_decoder_forward.5} parent=68 // pred_region
          %s452 = smul.u32 2, %s22
          %s454 = ssub.s32 256, 256
          %455 = vsyncadd %s445, %s454
          %s456 = smul.addr %s452, 2
          %s457 = sadd.s32 %s21, %s456
          %s458 = smul.addr %s457, 128
          %s459 = scalar_lea.hbm %s3, %s458
          %s460 = sshll.u32 %s448, 4
          %s461 = int_to_ptr.vmem [resolvable:$true] %s460
          %466 = dma.vmem_to_hbm [thread:$0]  %s461, 256, %s459, %s445, 128, 256, 8
        $region77: #{conv_decoder_forward.5} parent=68 // pred_fallthru
          _
      $region69: #{conv_decoder_forward.5} parent=5 // pred_fallthru
        _
      %p467 = scmp.le.s32.totalorder 2, %s12
      // Predicated region
      $region78: #{conv_decoder_forward.5} parent=5 // pred_check
        %p468 = pneg %p467
      $region79: #{conv_decoder_forward.5} parent=5 // pred_check_branch
        %470 = sbr.rel (%p468) target = $region81
      $region80: #{conv_decoder_forward.5} parent=5 // pred_region
        %s471 = ssub.s32 %s12, 2
        // Predicated region
        $region82: #{conv_decoder_forward.5} parent=80 // pred_check
          %p472 = pneg %p133
        $region83: #{conv_decoder_forward.5} parent=80 // pred_check_branch
          %474 = sbr.rel (%p472) target = $region85
        $region84: #{conv_decoder_forward.5} parent=80 // pred_region
          %s475 = sand.u32 %s118, 1
          %s476 = scalar_lea.sflag [#allocation4], %s475
          %s477 = sand.u32 %s118, 1
          %s478 = smul.addr %s477, 16
          %s479 = scalar_lea.vmem [#allocation3], %s478
          %480 = dma.done %s476, 256
        $region85: #{conv_decoder_forward.5} parent=80 // pred_fallthru
          _
      $region81: #{conv_decoder_forward.5} parent=5 // pred_fallthru
        _
    $region6: #{conv_decoder_forward.5} parent=1 // loop_footer
      %s16 = sadd.s32 1, %s12
    $region7: #{conv_decoder_forward.5} parent=1 // loop_footer_branch
      %11 = sbr.rel target = $region3
    $region8: #{conv_decoder_forward.5} parent=1 // loop_exit
      _
    %481 = vsyncpa [#allocation4], 1
    %s482 = scalar_lea.sflag [#allocation4], 1
    %483 = vsyncpa %s482, 1

// kernel: conv_decoder_forward.4
$region0: #{conv_decoder_forward.4}
  #allocation0 [shape = 'u32[]', space=smem, size = 0x4, offset = 0x4, fixed_abs, tag = 'smem constant byte address 0x4 - core index']
  #allocation1 [shape = 'u32[144,128]{1,0:T(1,128)}', space=vmem, size = 0x12000, scoped, tag = 'internal scratch']
  %s0 = inlined_call_operand.vmem [shape: f32[32,128], index: 0, kind: input, shape index: {}]
  %s1 = inlined_call_operand.vmem [shape: bf16[128,128], index: 1, kind: input, shape index: {}]
  %s2 = inlined_call_operand.vmem [shape: f32[1,128], index: 2, kind: input, shape index: {}]
  %s3 = inlined_call_operand.vmem [shape: bf16[32,128], index: 3, kind: output, shape index: {}]
  %s4 = sld [smem:[#allocation0]]
  $region45: #{conv_decoder_forward.4} parent=0
    _
  %s6 = ssub.s32 1, %s4
  %s7 = scalar_select 0, %s6, %s4
  loop: start=0, step=1, limit=4
  $region2: #{conv_decoder_forward.4} parent=0 // loop_pre_header
    _
  $region3: #{conv_decoder_forward.4} parent=0 // loop_header
    %s9 = sphi 0, %s13
    %p10 = scmp.ge.s32.totalorder %s9, 4
    %s19 = sphi 0, %s21
    %s22 = sphi 0, %s19
    %s23 = sphi 0, %s22
    %s39 = sphi 0, %s23
    %s43 = sphi 0, %s43
    %s45 = sphi 0, %s43
    %s46 = sphi 0, %s45
    %s60 = sphi 0, %s46
    %s64 = sphi 0, %s64
    %s66 = sphi 0, %s64
    %s67 = sphi 0, %s66
    %s81 = sphi 0, %s67
    %s87 = sphi 0, %s89
    %s90 = sphi 0, %s87
    %s91 = sphi 0, %s90
    %s107 = sphi 0, %s91
  $region4: #{conv_decoder_forward.4} parent=0 // loop_header_branch
    %12 = sbr.rel (%p10) target = $region8
  $region5: #{conv_decoder_forward.4} parent=0 // loop_body
    %s14 = ssub.s32 %s9, 1
    %s15 = ssub.s32 %s9, 2
    %s16 = sadd.s32 %s9, 1
    %s17 = ssub.s32 %s9, %s16
    %p18 = scmp.eq.s32.totalorder %s17, 0
    %s20 = sadd.s32 %s19, 1
    %s21 = scalar_select %p18, %s19, %s20
    %p24 = pneg %p18
    %p25 = scmp.eq.s32.totalorder %s9, 1
    %p26 = por %p24, %p25
    %p27 = scmp.ne.s32.totalorder %s19, %s22
    %p28 = scmp.eq.s32.totalorder %s9, 0
    %p29 = por %p27, %p28
    %p30 = scmp.ne.s32.totalorder %s19, %s22
    %p31 = scmp.eq.s32.totalorder %s14, 1
    %p32 = por %p30, %p31
    %p33 = scmp.ne.s32.totalorder %s22, %s23
    %p34 = scmp.eq.s32.totalorder %s14, 0
    %p35 = por %p33, %p34
    %p36 = scmp.ne.s32.totalorder %s22, %s23
    %p37 = scmp.eq.s32.totalorder %s15, 1
    %p38 = por %p36, %p37
    %p40 = scmp.ne.s32.totalorder %s23, %s39
    %p41 = scmp.eq.s32.totalorder %s15, 0
    %p42 = por %p40, %p41
    %s44 = sadd.s32 %s43, 1
    %p47 = scmp.eq.s32.totalorder %s9, 1
    %p48 = scmp.ne.s32.totalorder %s43, %s45
    %p49 = scmp.eq.s32.totalorder %s9, 0
    %p50 = por %p48, %p49
    %p51 = scmp.ne.s32.totalorder %s43, %s45
    %p52 = scmp.eq.s32.totalorder %s14, 1
    %p53 = por %p51, %p52
    %p54 = scmp.ne.s32.totalorder %s45, %s46
    %p55 = scmp.eq.s32.totalorder %s14, 0
    %p56 = por %p54, %p55
    %p57 = scmp.ne.s32.totalorder %s45, %s46
    %p58 = scmp.eq.s32.totalorder %s15, 1
    %p59 = por %p57, %p58
    %p61 = scmp.ne.s32.totalorder %s46, %s60
    %p62 = scmp.eq.s32.totalorder %s15, 0
    %p63 = por %p61, %p62
    %s65 = sadd.s32 %s64, 1
    %p68 = scmp.eq.s32.totalorder %s9, 1
    %p69 = scmp.ne.s32.totalorder %s64, %s66
    %p70 = scmp.eq.s32.totalorder %s9, 0
    %p71 = por %p69, %p70
    %p72 = scmp.ne.s32.totalorder %s64, %s66
    %p73 = scmp.eq.s32.totalorder %s14, 1
    %p74 = por %p72, %p73
    %p75 = scmp.ne.s32.totalorder %s66, %s67
    %p76 = scmp.eq.s32.totalorder %s14, 0
    %p77 = por %p75, %p76
    %p78 = scmp.ne.s32.totalorder %s66, %s67
    %p79 = scmp.eq.s32.totalorder %s15, 1
    %p80 = por %p78, %p79
    %p82 = scmp.ne.s32.totalorder %s67, %s81
    %p83 = scmp.eq.s32.totalorder %s15, 0
    %p84 = por %p82, %p83
    %s85 = ssub.s32 %s9, %s16
    %p86 = scmp.eq.s32.totalorder %s85, 0
    %s88 = sadd.s32 %s87, 1
    %s89 = scalar_select %p86, %s87, %s88
    %p92 = pneg %p86
    %p93 = scmp.eq.s32.totalorder %s9, 1
    %p94 = por %p92, %p93
    %p95 = scmp.ne.s32.totalorder %s87, %s90
    %p96 = scmp.eq.s32.totalorder %s9, 0
    %p97 = por %p95, %p96
    %p98 = scmp.ne.s32.totalorder %s87, %s90
    %p99 = scmp.eq.s32.totalorder %s14, 1
    %p100 = por %p98, %p99
    %p101 = scmp.ne.s32.totalorder %s90, %s91
    %p102 = scmp.eq.s32.totalorder %s14, 0
    %p103 = por %p101, %p102
    %p104 = scmp.ne.s32.totalorder %s90, %s91
    %p105 = scmp.eq.s32.totalorder %s15, 1
    %p106 = por %p104, %p105
    %p108 = scmp.ne.s32.totalorder %s91, %s107
    %p109 = scmp.eq.s32.totalorder %s15, 0
    %p110 = por %p108, %p109
    %p111 = scmp.le.s32.totalorder 1, %s9
    %p112 = scmp.lt.s32.totalorder %s9, 3
    %p113 = pnand %p111, %p112
    %p114 = pneg %p113
    // Predicated region
    $region9: #{conv_decoder_forward.4} parent=5 // pred_check
      _
    $region10: #{conv_decoder_forward.4} parent=5 // pred_check_branch
      %116 = sbr.rel (%p113) target = $region12
    $region11: #{conv_decoder_forward.4} parent=5 // pred_region
      %s117 = ssub.s32 %s9, 1
      // Predicated region
      $region13: #{conv_decoder_forward.4} parent=11 // pred_check
        %p118 = pneg %p56
      $region14: #{conv_decoder_forward.4} parent=11 // pred_check_branch
        %120 = sbr.rel (%p118) target = $region16
      $region15: #{conv_decoder_forward.4} parent=11 // pred_region
        _
      $region16: #{conv_decoder_forward.4} parent=11 // pred_fallthru
        _
      // Predicated region
      $region17: #{conv_decoder_forward.4} parent=11 // pred_check
        %p121 = pneg %p77
      $region18: #{conv_decoder_forward.4} parent=11 // pred_check_branch
        %123 = sbr.rel (%p121) target = $region20
      $region19: #{conv_decoder_forward.4} parent=11 // pred_region
        _
      $region20: #{conv_decoder_forward.4} parent=11 // pred_fallthru
        _
    $region12: #{conv_decoder_forward.4} parent=5 // pred_fallthru
      _
    %p124 = scmp.lt.s32.totalorder %s9, 2
    // Predicated region
    $region21: #{conv_decoder_forward.4} parent=5 // pred_check
      %p125 = pneg %p124
    $region22: #{conv_decoder_forward.4} parent=5 // pred_check_branch
      %127 = sbr.rel (%p125) target = $region24
    $region23: #{conv_decoder_forward.4} parent=5 // pred_region
      // Predicated region
      $region25: #{conv_decoder_forward.4} parent=23 // pred_check
        %p128 = pneg %p29
      $region26: #{conv_decoder_forward.4} parent=23 // pred_check_branch
        %130 = sbr.rel (%p128) target = $region28
      $region27: #{conv_decoder_forward.4} parent=23 // pred_region
        %s131 = smul.u32 2, %s9
        %p132 = scmp.lt.s32.totalorder %s131, 3
        %s133 = scalar_select %p132, %s131, 3
        %s134 = smul.addr %s133, 8
        %s135 = scalar_lea.vmem %s0, %s134
        %s136 = smul.u32 2, %s9
      $region28: #{conv_decoder_forward.4} parent=23 // pred_fallthru
        _
    $region24: #{conv_decoder_forward.4} parent=5 // pred_fallthru
      _
    %p137 = scmp.le.s32.totalorder 1, %s9
    %p138 = scmp.lt.s32.totalorder %s9, 3
    %p139 = pnand %p137, %p138
    %p140 = pneg %p139
    // Predicated region
    $region29: #{conv_decoder_forward.4} parent=5 // pred_check
      _
    $region30: #{conv_decoder_forward.4} parent=5 // pred_check_branch
      %142 = sbr.rel (%p139) target = $region32
    $region31: #{conv_decoder_forward.4} parent=5 // pred_region
      %s143 = ssub.s32 %s9, 1
      %s144 = smul.u32 2, %s14
      %p145 = scmp.lt.s32.totalorder %s144, 3
      %s146 = scalar_select %p145, %s144, 3
      %s147 = smul.addr %s146, 8
      %s148 = scalar_lea.vmem %s0, %s147
      %p149 = pneg %p35
      %p150 = pneg %p32
      %p151 = pneg %p56
      %p152 = pneg %p53
      %p153 = pneg %p77
      %p154 = pneg %p74
      %p155 = pneg %p103
      %p156 = pneg %p100
      %s157 = smul.u32 2, %s14
      %p158 = scmp.lt.s32.totalorder %s157, 3
      %s159 = scalar_select %p158, %s157, 3
      %s160 = smul.addr %s159, 4
      %s161 = scalar_lea.vmem %s3, %s160
      %s162 = smul.u32 2, %s14
      %p163 = scmp.lt.s32.totalorder %s162, 3
      %s164 = scalar_select %p163, %s162, 3
      %s165 = smul.addr %s164, 8
      %s166 = scalar_lea.vmem %s0, %s165
      %s167 = smul.u32 2, %s14
      %s168 = smul.u32 2, %s14
      %p169 = scmp.lt.s32.totalorder %s168, 3
      %s170 = scalar_select %p169, %s168, 3
      %s171 = smul.addr %s170, 4
      %s172 = scalar_lea.vmem %s3, %s171
      %s173 = smul.u32 2, %s14
      %v175 = vld [vmem:[%s166] sm:$0xff]
      %v176 = vld [vmem:[%s166 + $0x8] sm:$0xff]
      %v177 = vpack.c.bf16 %v176, %v175
      %v178 = vld [vmem:[%s1] sm:$0xf]
      %v179 = vld [vmem:[%s1 + $0x4] sm:$0xf]
      %v180 = vld [vmem:[%s1 + $0x8] sm:$0xf]
      %v181 = vld [vmem:[%s1 + $0xc] sm:$0xf]
      %v182 = vld [vmem:[%s1 + $0x10] sm:$0xf]
      %v183 = vld [vmem:[%s1 + $0x14] sm:$0xf]
      %v184 = vld [vmem:[%s1 + $0x18] sm:$0xf]
      %v185 = vld [vmem:[%s1 + $0x1c] sm:$0xf]
      %v186 = vld [vmem:[%s1 + $0x20] sm:$0xf]
      %v187 = vld [vmem:[%s1 + $0x24] sm:$0xf]
      %v188 = vld [vmem:[%s1 + $0x28] sm:$0xf]
      %v189 = vld [vmem:[%s1 + $0x2c] sm:$0xf]
      %v190 = vld [vmem:[%s1 + $0x30] sm:$0xf]
      %v191 = vld [vmem:[%s1 + $0x34] sm:$0xf]
      %v192 = vld [vmem:[%s1 + $0x38] sm:$0xf]
      %v193 = vld [vmem:[%s1 + $0x3c] sm:$0xf]
      %v194 = vld [vmem:[%s2] sm:$0x1]
      %v196 = vlaneseq
      %v197 = vshrl.u32 %v196, 7
      %v198 = vsub.s32 0, %v197
      %v199 = vrot.slane %v194, %v198
      %v217 = vunpack.c.l.b16 %v178
      %v218 = vunpack.c.l.b16 %v179
      %v219 = vunpack.c.l.b16 %v180
      %v220 = vunpack.c.l.b16 %v181
      %v221 = vunpack.c.l.b16 %v182
      %v222 = vunpack.c.l.b16 %v183
      %v223 = vunpack.c.l.b16 %v184
      %v224 = vunpack.c.l.b16 %v185
      %v225 = vunpack.c.l.b16 %v186
      %v226 = vunpack.c.l.b16 %v187
      %v227 = vunpack.c.l.b16 %v188
      %v228 = vunpack.c.l.b16 %v189
      %v229 = vunpack.c.l.b16 %v190
      %v230 = vunpack.c.l.b16 %v191
      %v231 = vunpack.c.l.b16 %v192
      %v232 = vunpack.c.l.b16 %v193
      %v233 = vpack.c.b16 %v218, %v217
      %v234 = vpack.c.b16 %v220, %v219
      %v235 = vpack.c.b16 %v222, %v221
      %v236 = vpack.c.b16 %v224, %v223
      %v237 = vpack.c.b16 %v226, %v225
      %v238 = vpack.c.b16 %v228, %v227
      %v239 = vpack.c.b16 %v230, %v229
      %v240 = vpack.c.b16 %v232, %v231
      %249 = vmatprep.subr.bf16.mxu0 0
      %250 = vmatpush1.bf16.msra.mxu0 %v233
      %251 = vmatprep.subr.bf16.mxu0 0
      %252 = vmatpush1.bf16.msra.mxu0 %v234
      %253 = vmatprep.subr.bf16.mxu0 0
      %254 = vmatpush1.bf16.msra.mxu0 %v235
      %255 = vmatprep.subr.bf16.mxu0 0
      %256 = vmatpush1.bf16.msra.mxu0 %v236
      %257 = vmatprep.subr.bf16.mxu0 0
      %258 = vmatpush1.bf16.msra.mxu0 %v237
      %259 = vmatprep.subr.bf16.mxu0 0
      %260 = vmatpush1.bf16.msra.mxu0 %v238
      %261 = vmatprep.subr.bf16.mxu0 0
      %262 = vmatpush1.bf16.msra.mxu0 %v239
      %263 = vmatprep.subr.bf16.mxu0 0
      %264 = vmatpush1.bf16.msra.mxu0 %v240
      %265 = vmatprep.subr.bf16.mxu0 0
      %266 = vmatpush1.bf16.msra.mxu0 0
      %267 = vmatprep.subr.bf16.mxu0 0
      %268 = vmatpush1.bf16.msra.mxu0 0
      %269 = vmatprep.subr.bf16.mxu0 0
      %270 = vmatpush1.bf16.msra.mxu0 0
      %271 = vmatprep.subr.bf16.mxu0 0
      %272 = vmatpush1.bf16.msra.mxu0 0
      %273 = vmatprep.subr.bf16.mxu0 0
      %274 = vmatpush1.bf16.msra.mxu0 0
      %275 = vmatprep.subr.bf16.mxu0 0
      %276 = vmatpush1.bf16.msra.mxu0 0
      %277 = vmatprep.subr.bf16.mxu0 0
      %278 = vmatpush1.bf16.msra.mxu0 0
      %279 = vmatprep.subr.bf16.mxu0 0
      %280 = vmatpush1.bf16.msra.mxu0 0
      %281 = vmatprep.mubr.bf16.mxu0 0
      %282 = vmatmul.mubr.bf16.gmra.mrb[0].mxu0 %v177
      %v283 = vpop.f32.mrb[0].mxu0
      %v284 = vadd.f32 %v199, %v283
      %v285 = vpop.f32.mrb[0].mxu0
      %v286 = vpop.f32.mrb[0].mxu0
      %v287 = vadd.f32 %v199, %v286
      %v288 = vpop.f32.mrb[0].mxu0
      %289 = vdwg.mxu0
      %v290 = vpack.c.bf16 %v287, %v284
      %v292 = vunpack.c.l.b16 %v290
      %v293 = vunpack.c.h.b16 %v290
      %v294 = vpack.c.b16 %v292, %v292
      %v295 = vpack.c.b16 %v293, %v293
      %298 = vst [vmem:[%s172] sm:$0xf] %v294
      %299 = vst [vmem:[%s172 + $0x4] sm:$0xf] %v295
      %s300 = smul.u32 2, %s14
      %p301 = scmp.lt.s32.totalorder %s300, 3
      %s302 = scalar_select %p301, %s300, 3
      %s303 = smul.addr %s302, 4
      %s304 = scalar_lea.vmem %s3, %s303
      // Predicated region
      $region33: #{conv_decoder_forward.4} parent=31 // pred_check
        %p305 = pneg %p100
      $region34: #{conv_decoder_forward.4} parent=31 // pred_check_branch
        %307 = sbr.rel (%p305) target = $region36
      $region35: #{conv_decoder_forward.4} parent=31 // pred_region
        %s308 = smul.u32 2, %s14
      $region36: #{conv_decoder_forward.4} parent=31 // pred_fallthru
        _
    $region32: #{conv_decoder_forward.4} parent=5 // pred_fallthru
      _
    %p309 = scmp.le.s32.totalorder 2, %s9
    // Predicated region
    $region37: #{conv_decoder_forward.4} parent=5 // pred_check
      %p310 = pneg %p309
    $region38: #{conv_decoder_forward.4} parent=5 // pred_check_branch
      %312 = sbr.rel (%p310) target = $region40
    $region39: #{conv_decoder_forward.4} parent=5 // pred_region
      %s313 = ssub.s32 %s9, 2
      // Predicated region
      $region41: #{conv_decoder_forward.4} parent=39 // pred_check
        %p314 = pneg %p106
      $region42: #{conv_decoder_forward.4} parent=39 // pred_check_branch
        %316 = sbr.rel (%p314) target = $region44
      $region43: #{conv_decoder_forward.4} parent=39 // pred_region
        %s317 = smul.u32 2, %s15
        %p318 = scmp.lt.s32.totalorder %s317, 3
        %s319 = scalar_select %p318, %s317, 3
        %s320 = smul.addr %s319, 4
        %s321 = scalar_lea.vmem %s3, %s320
      $region44: #{conv_decoder_forward.4} parent=39 // pred_fallthru
        _
    $region40: #{conv_decoder_forward.4} parent=5 // pred_fallthru
      _
  $region6: #{conv_decoder_forward.4} parent=0 // loop_footer
    %s13 = sadd.s32 1, %s9
  $region7: #{conv_decoder_forward.4} parent=0 // loop_footer_branch
    %8 = sbr.rel target = $region3
  $region8: #{conv_decoder_forward.4} parent=0 // loop_exit
    _

// kernel: conv_decoder_forward.3
$region0: #{conv_decoder_forward.3}
  #allocation0 [shape = 'u32[]', space=smem, size = 0x4, offset = 0x4, fixed_abs, tag = 'smem constant byte address 0x4 - core index']
  #allocation1 [shape = 'u32[144,128]{1,0:T(1,128)}', space=vmem, size = 0x12000, scoped, tag = 'internal scratch']
  %s0 = inlined_call_operand.vmem [shape: f32[2,16,128], index: 0, kind: input, shape index: {}]
  %s1 = inlined_call_operand.vmem [shape: bf16[2,128,16], index: 1, kind: input, shape index: {}]
  %s2 = inlined_call_operand.vmem [shape: bf16[2,16,128], index: 2, kind: input, shape index: {}]
  %s3 = inlined_call_operand.vmem [shape: bf16[2,128,8], index: 3, kind: input, shape index: {}]
  %s4 = inlined_call_operand.vmem [shape: bf16[2,8,128], index: 4, kind: input, shape index: {}]
  %s5 = inlined_call_operand.hbm [shape: bf16[128,128], index: 5, kind: input, shape index: {}]
  %s6 = inlined_call_operand.hbm [shape: f32[1,128], index: 6, kind: input, shape index: {}]
  %s7 = inlined_call_operand.vmem [shape: bf16[2,384,256], index: 7, kind: input, shape index: {}]
  %s8 = inlined_call_operand.hbm [shape: f32[2,1,256], index: 8, kind: input, shape index: {}]
  %s9 = inlined_call_operand.vmem [shape: bf16[2,128,256], index: 9, kind: input, shape index: {}]
  %s10 = inlined_call_operand.hbm [shape: f32[2,1,256], index: 10, kind: input, shape index: {}]
  %s11 = inlined_call_operand.hbm [shape: bf16[2,128,128], index: 11, kind: input, shape index: {}]
  %s12 = inlined_call_operand.hbm [shape: f32[2,1,128], index: 12, kind: input, shape index: {}]
  %s13 = inlined_call_operand.hbm [shape: bf16[2,128,128], index: 13, kind: input, shape index: {}]
  %s14 = inlined_call_operand.hbm [shape: f32[2,1,128], index: 14, kind: input, shape index: {}]
  %s15 = inlined_call_operand.hbm [shape: bf16[2,256,128], index: 15, kind: input, shape index: {}]
  %s16 = inlined_call_operand.hbm [shape: f32[2,1,128], index: 16, kind: input, shape index: {}]
  %s17 = inlined_call_operand.vmem [shape: f32[2,16,128], index: 17, kind: output, shape index: {}]
  %s18 = sld [smem:[#allocation0]]
  $region145: #{conv_decoder_forward.3} parent=0
    _
  %s20 = ssub.s32 1, %s18
  %s21 = scalar_select 0, %s20, %s18
  $region1: #{conv_decoder_forward.3} parent=0
    #allocation2 [shape = 'u8[32768]{0}', space=vmem, size = 0x8000, scoped, tag = 'input window, operand 5, single buffered']
    #allocation3 [shape = 's32[2]{0}', space=sflag, size = 0x8, scoped, tag = 'scoped memory for conv_decoder_forward.3']
    #allocation4 [shape = 'u8[512]{0}', space=vmem, size = 0x400, scoped, tag = 'input window, operand 6, single buffered']
    #allocation5 [shape = 's32[1]{0}', space=sflag, size = 0x4, scoped, tag = 'scoped memory for conv_decoder_forward.3']
    #allocation6 [shape = 'u8[2048]{0}', space=vmem, size = 0x800, scoped, tag = 'input window, operand 8']
    #allocation7 [shape = 'u8[2048]{0}', space=vmem, size = 0x800, scoped, tag = 'input window, operand 10']
    #allocation8 [shape = 'u8[65536]{0}', space=vmem, size = 0x10000, scoped, tag = 'input window, operand 11']
    #allocation9 [shape = 'u8[1024]{0}', space=vmem, size = 0x400, scoped, tag = 'input window, operand 12']
    #allocation10 [shape = 'u8[65536]{0}', space=vmem, size = 0x10000, scoped, tag = 'input window, operand 13']
    #allocation11 [shape = 'u8[1024]{0}', space=vmem, size = 0x400, scoped, tag = 'input window, operand 14']
    #allocation12 [shape = 'u8[131072]{0}', space=vmem, size = 0x20000, scoped, tag = 'input window, operand 15']
    #allocation13 [shape = 'u8[1024]{0}', space=vmem, size = 0x400, scoped, tag = 'input window, operand 16']
    %22 = vsyncpa [#allocation3], 0
    %23 = vsyncpa [#allocation5], 0
    loop: start=0, step=1, limit=4
    $region2: #{conv_decoder_forward.3} parent=1 // loop_pre_header
      _
    $region3: #{conv_decoder_forward.3} parent=1 // loop_header
      %s25 = sphi 0, %s29
      %p26 = scmp.ge.s32.totalorder %s25, 4
      %s32 = sphi 0, %s44
      %s33 = sphi 0, %s40
      %s34 = sphi 0, %s32
      %s35 = sphi 0, %s33
      %s36 = sphi 0, %s34
      %s37 = sphi 0, %s35
      %s47 = sphi 0, %s49
      %s50 = sphi 0, %s47
      %s51 = sphi 0, %s50
      %s67 = sphi 0, %s51
      %s73 = sphi 0, %s75
      %s76 = sphi 0, %s73
      %s77 = sphi 0, %s76
      %s93 = sphi 0, %s77
      %s99 = sphi 0, %s101
      %s102 = sphi 0, %s99
      %s103 = sphi 0, %s102
      %s119 = sphi 0, %s103
      %s125 = sphi 0, %s127
      %s128 = sphi 0, %s125
      %s129 = sphi 0, %s128
      %s145 = sphi 0, %s129
      %s151 = sphi 0, %s153
      %s154 = sphi 0, %s151
      %s155 = sphi 0, %s154
      %s171 = sphi 0, %s155
      %s175 = sphi 0, %s175
      %s177 = sphi 0, %s175
      %s178 = sphi 0, %s177
      %s192 = sphi 0, %s178
      %s196 = sphi 0, %s196
      %s198 = sphi 0, %s196
      %s199 = sphi 0, %s198
      %s213 = sphi 0, %s199
      %s219 = sphi 0, %s221
      %s222 = sphi 0, %s219
      %s223 = sphi 0, %s222
      %s239 = sphi 0, %s223
      %s245 = sphi 0, %s247
      %s248 = sphi 0, %s245
      %s249 = sphi 0, %s248
      %s265 = sphi 0, %s249
      %s271 = sphi 0, %s273
      %s274 = sphi 0, %s271
      %s275 = sphi 0, %s274
      %s291 = sphi 0, %s275
      %s297 = sphi 0, %s299
      %s300 = sphi 0, %s297
      %s301 = sphi 0, %s300
      %s317 = sphi 0, %s301
      %s323 = sphi 0, %s325
      %s326 = sphi 0, %s323
      %s327 = sphi 0, %s326
      %s343 = sphi 0, %s327
      %s349 = sphi 0, %s351
      %s352 = sphi 0, %s349
      %s353 = sphi 0, %s352
      %s369 = sphi 0, %s353
      %s375 = sphi 0, %s377
      %s378 = sphi 0, %s375
      %s379 = sphi 0, %s378
      %s395 = sphi 0, %s379
      %s401 = sphi 0, %s403
      %s404 = sphi 0, %s401
      %s405 = sphi 0, %s404
      %s421 = sphi 0, %s405
      %s427 = sphi 0, %s429
      %s430 = sphi 0, %s427
      %s431 = sphi 0, %s430
      %s447 = sphi 0, %s431
      %s453 = sphi 0, %s455
      %s456 = sphi 0, %s453
      %s457 = sphi 0, %s456
      %s473 = sphi 0, %s457
      %s479 = sphi 0, %s481
      %s482 = sphi 0, %s479
      %s483 = sphi 0, %s482
      %s499 = sphi 0, %s483
    $region4: #{conv_decoder_forward.3} parent=1 // loop_header_branch
      %28 = sbr.rel (%p26) target = $region8
    $region5: #{conv_decoder_forward.3} parent=1 // loop_body
      %s30 = ssub.s32 %s25, 1
      %s31 = ssub.s32 %s25, 2
      %s38 = sadd.s32 1, %s33
      %p39 = scmp.ge.s32.totalorder %s38, 2
      %s40 = scalar_select %p39, 0, %s38
      %s41 = sadd.s32 1, %s32
      %s42 = scalar_select %p39, %s41, %s32
      %p43 = scmp.ge.s32.totalorder %s42, 1
      %s44 = scalar_select %p43, 0, %s42
      %s45 = ssub.s32 %s32, %s44
      %p46 = scmp.eq.s32.totalorder %s45, 0
      %s48 = sadd.s32 %s47, 1
      %s49 = scalar_select %p46, %s47, %s48
      %p52 = pneg %p46
      %p53 = scmp.eq.s32.totalorder %s25, 1
      %p54 = por %p52, %p53
      %p55 = scmp.ne.s32.totalorder %s47, %s50
      %p56 = scmp.eq.s32.totalorder %s25, 0
      %p57 = por %p55, %p56
      %p58 = scmp.ne.s32.totalorder %s47, %s50
      %p59 = scmp.eq.s32.totalorder %s30, 1
      %p60 = por %p58, %p59
      %p61 = scmp.ne.s32.totalorder %s50, %s51
      %p62 = scmp.eq.s32.totalorder %s30, 0
      %p63 = por %p61, %p62
      %p64 = scmp.ne.s32.totalorder %s50, %s51
      %p65 = scmp.eq.s32.totalorder %s31, 1
      %p66 = por %p64, %p65
      %p68 = scmp.ne.s32.totalorder %s51, %s67
      %p69 = scmp.eq.s32.totalorder %s31, 0
      %p70 = por %p68, %p69
      %s71 = ssub.s32 %s32, %s44
      %p72 = scmp.eq.s32.totalorder %s71, 0
      %s74 = sadd.s32 %s73, 1
      %s75 = scalar_select %p72, %s73, %s74
      %p78 = pneg %p72
      %p79 = scmp.eq.s32.totalorder %s25, 1
      %p80 = por %p78, %p79
      %p81 = scmp.ne.s32.totalorder %s73, %s76
      %p82 = scmp.eq.s32.totalorder %s25, 0
      %p83 = por %p81, %p82
      %p84 = scmp.ne.s32.totalorder %s73, %s76
      %p85 = scmp.eq.s32.totalorder %s30, 1
      %p86 = por %p84, %p85
      %p87 = scmp.ne.s32.totalorder %s76, %s77
      %p88 = scmp.eq.s32.totalorder %s30, 0
      %p89 = por %p87, %p88
      %p90 = scmp.ne.s32.totalorder %s76, %s77
      %p91 = scmp.eq.s32.totalorder %s31, 1
      %p92 = por %p90, %p91
      %p94 = scmp.ne.s32.totalorder %s77, %s93
      %p95 = scmp.eq.s32.totalorder %s31, 0
      %p96 = por %p94, %p95
      %s97 = ssub.s32 %s32, %s44
      %p98 = scmp.eq.s32.totalorder %s97, 0
      %s100 = sadd.s32 %s99, 1
      %s101 = scalar_select %p98, %s99, %s100
      %p104 = pneg %p98
      %p105 = scmp.eq.s32.totalorder %s25, 1
      %p106 = por %p104, %p105
      %p107 = scmp.ne.s32.totalorder %s99, %s102
      %p108 = scmp.eq.s32.totalorder %s25, 0
      %p109 = por %p107, %p108
      %p110 = scmp.ne.s32.totalorder %s99, %s102
      %p111 = scmp.eq.s32.totalorder %s30, 1
      %p112 = por %p110, %p111
      %p113 = scmp.ne.s32.totalorder %s102, %s103
      %p114 = scmp.eq.s32.totalorder %s30, 0
      %p115 = por %p113, %p114
      %p116 = scmp.ne.s32.totalorder %s102, %s103
      %p117 = scmp.eq.s32.totalorder %s31, 1
      %p118 = por %p116, %p117
      %p120 = scmp.ne.s32.totalorder %s103, %s119
      %p121 = scmp.eq.s32.totalorder %s31, 0
      %p122 = por %p120, %p121
      %s123 = ssub.s32 %s32, %s44
      %p124 = scmp.eq.s32.totalorder %s123, 0
      %s126 = sadd.s32 %s125, 1
      %s127 = scalar_select %p124, %s125, %s126
      %p130 = pneg %p124
      %p131 = scmp.eq.s32.totalorder %s25, 1
      %p132 = por %p130, %p131
      %p133 = scmp.ne.s32.totalorder %s125, %s128
      %p134 = scmp.eq.s32.totalorder %s25, 0
      %p135 = por %p133, %p134
      %p136 = scmp.ne.s32.totalorder %s125, %s128
      %p137 = scmp.eq.s32.totalorder %s30, 1
      %p138 = por %p136, %p137
      %p139 = scmp.ne.s32.totalorder %s128, %s129
      %p140 = scmp.eq.s32.totalorder %s30, 0
      %p141 = por %p139, %p140
      %p142 = scmp.ne.s32.totalorder %s128, %s129
      %p143 = scmp.eq.s32.totalorder %s31, 1
      %p144 = por %p142, %p143
      %p146 = scmp.ne.s32.totalorder %s129, %s145
      %p147 = scmp.eq.s32.totalorder %s31, 0
      %p148 = por %p146, %p147
      %s149 = ssub.s32 %s32, %s44
      %p150 = scmp.eq.s32.totalorder %s149, 0
      %s152 = sadd.s32 %s151, 1
      %s153 = scalar_select %p150, %s151, %s152
      %p156 = pneg %p150
      %p157 = scmp.eq.s32.totalorder %s25, 1
      %p158 = por %p156, %p157
      %p159 = scmp.ne.s32.totalorder %s151, %s154
      %p160 = scmp.eq.s32.totalorder %s25, 0
      %p161 = por %p159, %p160
      %p162 = scmp.ne.s32.totalorder %s151, %s154
      %p163 = scmp.eq.s32.totalorder %s30, 1
      %p164 = por %p162, %p163
      %p165 = scmp.ne.s32.totalorder %s154, %s155
      %p166 = scmp.eq.s32.totalorder %s30, 0
      %p167 = por %p165, %p166
      %p168 = scmp.ne.s32.totalorder %s154, %s155
      %p169 = scmp.eq.s32.totalorder %s31, 1
      %p170 = por %p168, %p169
      %p172 = scmp.ne.s32.totalorder %s155, %s171
      %p173 = scmp.eq.s32.totalorder %s31, 0
      %p174 = por %p172, %p173
      %s176 = sadd.s32 %s175, 1
      %p179 = scmp.eq.s32.totalorder %s25, 1
      %p180 = scmp.ne.s32.totalorder %s175, %s177
      %p181 = scmp.eq.s32.totalorder %s25, 0
      %p182 = por %p180, %p181
      %p183 = scmp.ne.s32.totalorder %s175, %s177
      %p184 = scmp.eq.s32.totalorder %s30, 1
      %p185 = por %p183, %p184
      %p186 = scmp.ne.s32.totalorder %s177, %s178
      %p187 = scmp.eq.s32.totalorder %s30, 0
      %p188 = por %p186, %p187
      %p189 = scmp.ne.s32.totalorder %s177, %s178
      %p190 = scmp.eq.s32.totalorder %s31, 1
      %p191 = por %p189, %p190
      %p193 = scmp.ne.s32.totalorder %s178, %s192
      %p194 = scmp.eq.s32.totalorder %s31, 0
      %p195 = por %p193, %p194
      %s197 = sadd.s32 %s196, 1
      %p200 = scmp.eq.s32.totalorder %s25, 1
      %p201 = scmp.ne.s32.totalorder %s196, %s198
      %p202 = scmp.eq.s32.totalorder %s25, 0
      %p203 = por %p201, %p202
      %p204 = scmp.ne.s32.totalorder %s196, %s198
      %p205 = scmp.eq.s32.totalorder %s30, 1
      %p206 = por %p204, %p205
      %p207 = scmp.ne.s32.totalorder %s198, %s199
      %p208 = scmp.eq.s32.totalorder %s30, 0
      %p209 = por %p207, %p208
      %p210 = scmp.ne.s32.totalorder %s198, %s199
      %p211 = scmp.eq.s32.totalorder %s31, 1
      %p212 = por %p210, %p211
      %p214 = scmp.ne.s32.totalorder %s199, %s213
      %p215 = scmp.eq.s32.totalorder %s31, 0
      %p216 = por %p214, %p215
      %s217 = ssub.s32 %s33, %s40
      %p218 = scmp.eq.s32.totalorder %s217, 0
      %s220 = sadd.s32 %s219, 1
      %s221 = scalar_select %p218, %s219, %s220
      %p224 = pneg %p218
      %p225 = scmp.eq.s32.totalorder %s25, 1
      %p226 = por %p224, %p225
      %p227 = scmp.ne.s32.totalorder %s219, %s222
      %p228 = scmp.eq.s32.totalorder %s25, 0
      %p229 = por %p227, %p228
      %p230 = scmp.ne.s32.totalorder %s219, %s222
      %p231 = scmp.eq.s32.totalorder %s30, 1
      %p232 = por %p230, %p231
      %p233 = scmp.ne.s32.totalorder %s222, %s223
      %p234 = scmp.eq.s32.totalorder %s30, 0
      %p235 = por %p233, %p234
      %p236 = scmp.ne.s32.totalorder %s222, %s223
      %p237 = scmp.eq.s32.totalorder %s31, 1
      %p238 = por %p236, %p237
      %p240 = scmp.ne.s32.totalorder %s223, %s239
      %p241 = scmp.eq.s32.totalorder %s31, 0
      %p242 = por %p240, %p241
      %s243 = ssub.s32 %s33, %s40
      %p244 = scmp.eq.s32.totalorder %s243, 0
      %s246 = sadd.s32 %s245, 1
      %s247 = scalar_select %p244, %s245, %s246
      %p250 = pneg %p244
      %p251 = scmp.eq.s32.totalorder %s25, 1
      %p252 = por %p250, %p251
      %p253 = scmp.ne.s32.totalorder %s245, %s248
      %p254 = scmp.eq.s32.totalorder %s25, 0
      %p255 = por %p253, %p254
      %p256 = scmp.ne.s32.totalorder %s245, %s248
      %p257 = scmp.eq.s32.totalorder %s30, 1
      %p258 = por %p256, %p257
      %p259 = scmp.ne.s32.totalorder %s248, %s249
      %p260 = scmp.eq.s32.totalorder %s30, 0
      %p261 = por %p259, %p260
      %p262 = scmp.ne.s32.totalorder %s248, %s249
      %p263 = scmp.eq.s32.totalorder %s31, 1
      %p264 = por %p262, %p263
      %p266 = scmp.ne.s32.totalorder %s249, %s265
      %p267 = scmp.eq.s32.totalorder %s31, 0
      %p268 = por %p266, %p267
      %s269 = ssub.s32 %s33, %s40
      %p270 = scmp.eq.s32.totalorder %s269, 0
      %s272 = sadd.s32 %s271, 1
      %s273 = scalar_select %p270, %s271, %s272
      %p276 = pneg %p270
      %p277 = scmp.eq.s32.totalorder %s25, 1
      %p278 = por %p276, %p277
      %p279 = scmp.ne.s32.totalorder %s271, %s274
      %p280 = scmp.eq.s32.totalorder %s25, 0
      %p281 = por %p279, %p280
      %p282 = scmp.ne.s32.totalorder %s271, %s274
      %p283 = scmp.eq.s32.totalorder %s30, 1
      %p284 = por %p282, %p283
      %p285 = scmp.ne.s32.totalorder %s274, %s275
      %p286 = scmp.eq.s32.totalorder %s30, 0
      %p287 = por %p285, %p286
      %p288 = scmp.ne.s32.totalorder %s274, %s275
      %p289 = scmp.eq.s32.totalorder %s31, 1
      %p290 = por %p288, %p289
      %p292 = scmp.ne.s32.totalorder %s275, %s291
      %p293 = scmp.eq.s32.totalorder %s31, 0
      %p294 = por %p292, %p293
      %s295 = ssub.s32 %s33, %s40
      %p296 = scmp.eq.s32.totalorder %s295, 0
      %s298 = sadd.s32 %s297, 1
      %s299 = scalar_select %p296, %s297, %s298
      %p302 = pneg %p296
      %p303 = scmp.eq.s32.totalorder %s25, 1
      %p304 = por %p302, %p303
      %p305 = scmp.ne.s32.totalorder %s297, %s300
      %p306 = scmp.eq.s32.totalorder %s25, 0
      %p307 = por %p305, %p306
      %p308 = scmp.ne.s32.totalorder %s297, %s300
      %p309 = scmp.eq.s32.totalorder %s30, 1
      %p310 = por %p308, %p309
      %p311 = scmp.ne.s32.totalorder %s300, %s301
      %p312 = scmp.eq.s32.totalorder %s30, 0
      %p313 = por %p311, %p312
      %p314 = scmp.ne.s32.totalorder %s300, %s301
      %p315 = scmp.eq.s32.totalorder %s31, 1
      %p316 = por %p314, %p315
      %p318 = scmp.ne.s32.totalorder %s301, %s317
      %p319 = scmp.eq.s32.totalorder %s31, 0
      %p320 = por %p318, %p319
      %s321 = ssub.s32 %s33, %s40
      %p322 = scmp.eq.s32.totalorder %s321, 0
      %s324 = sadd.s32 %s323, 1
      %s325 = scalar_select %p322, %s323, %s324
      %p328 = pneg %p322
      %p329 = scmp.eq.s32.totalorder %s25, 1
      %p330 = por %p328, %p329
      %p331 = scmp.ne.s32.totalorder %s323, %s326
      %p332 = scmp.eq.s32.totalorder %s25, 0
      %p333 = por %p331, %p332
      %p334 = scmp.ne.s32.totalorder %s323, %s326
      %p335 = scmp.eq.s32.totalorder %s30, 1
      %p336 = por %p334, %p335
      %p337 = scmp.ne.s32.totalorder %s326, %s327
      %p338 = scmp.eq.s32.totalorder %s30, 0
      %p339 = por %p337, %p338
      %p340 = scmp.ne.s32.totalorder %s326, %s327
      %p341 = scmp.eq.s32.totalorder %s31, 1
      %p342 = por %p340, %p341
      %p344 = scmp.ne.s32.totalorder %s327, %s343
      %p345 = scmp.eq.s32.totalorder %s31, 0
      %p346 = por %p344, %p345
      %s347 = ssub.s32 %s33, %s40
      %p348 = scmp.eq.s32.totalorder %s347, 0
      %s350 = sadd.s32 %s349, 1
      %s351 = scalar_select %p348, %s349, %s350
      %p354 = pneg %p348
      %p355 = scmp.eq.s32.totalorder %s25, 1
      %p356 = por %p354, %p355
      %p357 = scmp.ne.s32.totalorder %s349, %s352
      %p358 = scmp.eq.s32.totalorder %s25, 0
      %p359 = por %p357, %p358
      %p360 = scmp.ne.s32.totalorder %s349, %s352
      %p361 = scmp.eq.s32.totalorder %s30, 1
      %p362 = por %p360, %p361
      %p363 = scmp.ne.s32.totalorder %s352, %s353
      %p364 = scmp.eq.s32.totalorder %s30, 0
      %p365 = por %p363, %p364
      %p366 = scmp.ne.s32.totalorder %s352, %s353
      %p367 = scmp.eq.s32.totalorder %s31, 1
      %p368 = por %p366, %p367
      %p370 = scmp.ne.s32.totalorder %s353, %s369
      %p371 = scmp.eq.s32.totalorder %s31, 0
      %p372 = por %p370, %p371
      %s373 = ssub.s32 %s33, %s40
      %p374 = scmp.eq.s32.totalorder %s373, 0
      %s376 = sadd.s32 %s375, 1
      %s377 = scalar_select %p374, %s375, %s376
      %p380 = pneg %p374
      %p381 = scmp.eq.s32.totalorder %s25, 1
      %p382 = por %p380, %p381
      %p383 = scmp.ne.s32.totalorder %s375, %s378
      %p384 = scmp.eq.s32.totalorder %s25, 0
      %p385 = por %p383, %p384
      %p386 = scmp.ne.s32.totalorder %s375, %s378
      %p387 = scmp.eq.s32.totalorder %s30, 1
      %p388 = por %p386, %p387
      %p389 = scmp.ne.s32.totalorder %s378, %s379
      %p390 = scmp.eq.s32.totalorder %s30, 0
      %p391 = por %p389, %p390
      %p392 = scmp.ne.s32.totalorder %s378, %s379
      %p393 = scmp.eq.s32.totalorder %s31, 1
      %p394 = por %p392, %p393
      %p396 = scmp.ne.s32.totalorder %s379, %s395
      %p397 = scmp.eq.s32.totalorder %s31, 0
      %p398 = por %p396, %p397
      %s399 = ssub.s32 %s33, %s40
      %p400 = scmp.eq.s32.totalorder %s399, 0
      %s402 = sadd.s32 %s401, 1
      %s403 = scalar_select %p400, %s401, %s402
      %p406 = pneg %p400
      %p407 = scmp.eq.s32.totalorder %s25, 1
      %p408 = por %p406, %p407
      %p409 = scmp.ne.s32.totalorder %s401, %s404
      %p410 = scmp.eq.s32.totalorder %s25, 0
      %p411 = por %p409, %p410
      %p412 = scmp.ne.s32.totalorder %s401, %s404
      %p413 = scmp.eq.s32.totalorder %s30, 1
      %p414 = por %p412, %p413
      %p415 = scmp.ne.s32.totalorder %s404, %s405
      %p416 = scmp.eq.s32.totalorder %s30, 0
      %p417 = por %p415, %p416
      %p418 = scmp.ne.s32.totalorder %s404, %s405
      %p419 = scmp.eq.s32.totalorder %s31, 1
      %p420 = por %p418, %p419
      %p422 = scmp.ne.s32.totalorder %s405, %s421
      %p423 = scmp.eq.s32.totalorder %s31, 0
      %p424 = por %p422, %p423
      %s425 = ssub.s32 %s33, %s40
      %p426 = scmp.eq.s32.totalorder %s425, 0
      %s428 = sadd.s32 %s427, 1
      %s429 = scalar_select %p426, %s427, %s428
      %p432 = pneg %p426
      %p433 = scmp.eq.s32.totalorder %s25, 1
      %p434 = por %p432, %p433
      %p435 = scmp.ne.s32.totalorder %s427, %s430
      %p436 = scmp.eq.s32.totalorder %s25, 0
      %p437 = por %p435, %p436
      %p438 = scmp.ne.s32.totalorder %s427, %s430
      %p439 = scmp.eq.s32.totalorder %s30, 1
      %p440 = por %p438, %p439
      %p441 = scmp.ne.s32.totalorder %s430, %s431
      %p442 = scmp.eq.s32.totalorder %s30, 0
      %p443 = por %p441, %p442
      %p444 = scmp.ne.s32.totalorder %s430, %s431
      %p445 = scmp.eq.s32.totalorder %s31, 1
      %p446 = por %p444, %p445
      %p448 = scmp.ne.s32.totalorder %s431, %s447
      %p449 = scmp.eq.s32.totalorder %s31, 0
      %p450 = por %p448, %p449
      %s451 = ssub.s32 %s33, %s40
      %p452 = scmp.eq.s32.totalorder %s451, 0
      %s454 = sadd.s32 %s453, 1
      %s455 = scalar_select %p452, %s453, %s454
      %p458 = pneg %p452
      %p459 = scmp.eq.s32.totalorder %s25, 1
      %p460 = por %p458, %p459
      %p461 = scmp.ne.s32.totalorder %s453, %s456
      %p462 = scmp.eq.s32.totalorder %s25, 0
      %p463 = por %p461, %p462
      %p464 = scmp.ne.s32.totalorder %s453, %s456
      %p465 = scmp.eq.s32.totalorder %s30, 1
      %p466 = por %p464, %p465
      %p467 = scmp.ne.s32.totalorder %s456, %s457
      %p468 = scmp.eq.s32.totalorder %s30, 0
      %p469 = por %p467, %p468
      %p470 = scmp.ne.s32.totalorder %s456, %s457
      %p471 = scmp.eq.s32.totalorder %s31, 1
      %p472 = por %p470, %p471
      %p474 = scmp.ne.s32.totalorder %s457, %s473
      %p475 = scmp.eq.s32.totalorder %s31, 0
      %p476 = por %p474, %p475
      %s477 = ssub.s32 %s32, %s44
      %p478 = scmp.eq.s32.totalorder %s477, 0
      %s480 = sadd.s32 %s479, 1
      %s481 = scalar_select %p478, %s479, %s480
      %p484 = pneg %p478
      %p485 = scmp.eq.s32.totalorder %s25, 1
      %p486 = por %p484, %p485
      %p487 = scmp.ne.s32.totalorder %s479, %s482
      %p488 = scmp.eq.s32.totalorder %s25, 0
      %p489 = por %p487, %p488
      %p490 = scmp.ne.s32.totalorder %s479, %s482
      %p491 = scmp.eq.s32.totalorder %s30, 1
      %p492 = por %p490, %p491
      %p493 = scmp.ne.s32.totalorder %s482, %s483
      %p494 = scmp.eq.s32.totalorder %s30, 0
      %p495 = por %p493, %p494
      %p496 = scmp.ne.s32.totalorder %s482, %s483
      %p497 = scmp.eq.s32.totalorder %s31, 1
      %p498 = por %p496, %p497
      %p500 = scmp.ne.s32.totalorder %s483, %s499
      %p501 = scmp.eq.s32.totalorder %s31, 0
      %p502 = por %p500, %p501
      %p503 = scmp.le.s32.totalorder 1, %s25
      %p504 = scmp.lt.s32.totalorder %s25, 3
      %p505 = pnand %p503, %p504
      %p506 = pneg %p505
      // Predicated region
      $region9: #{conv_decoder_forward.3} parent=5 // pred_check
        _
      $region10: #{conv_decoder_forward.3} parent=5 // pred_check_branch
        %508 = sbr.rel (%p505) target = $region12
      $region11: #{conv_decoder_forward.3} parent=5 // pred_region
        %s509 = ssub.s32 %s25, 1
        // Predicated region
        $region13: #{conv_decoder_forward.3} parent=11 // pred_check
          %p510 = pneg %p63
        $region14: #{conv_decoder_forward.3} parent=11 // pred_check_branch
          %512 = sbr.rel (%p510) target = $region16
        $region15: #{conv_decoder_forward.3} parent=11 // pred_region
          %s513 = smul.u32 2, %s34
          %p514 = scmp.lt.s32.totalorder %s513, 1
          %s515 = scalar_select %p514, %s513, 1
          %s516 = smul.addr %s515, 2
          %s517 = smul.addr %s516, 8
          %s518 = scalar_lea.vmem %s0, %s517
          %s519 = smul.u32 2, %s34
        $region16: #{conv_decoder_forward.3} parent=11 // pred_fallthru
          _
        // Predicated region
        $region17: #{conv_decoder_forward.3} parent=11 // pred_check
          %p520 = pneg %p89
        $region18: #{conv_decoder_forward.3} parent=11 // pred_check_branch
          %522 = sbr.rel (%p520) target = $region20
        $region19: #{conv_decoder_forward.3} parent=11 // pred_region
          %s523 = smul.u32 2, %s34
          %p524 = scmp.lt.s32.totalorder %s523, 1
          %s525 = scalar_select %p524, %s523, 1
          %s526 = smul.addr %s525, 16
          %s527 = smul.addr %s526, 4
          %s528 = scalar_lea.vmem %s1, %s527
          %s529 = smul.u32 2, %s34
        $region20: #{conv_decoder_forward.3} parent=11 // pred_fallthru
          _
        // Predicated region
        $region21: #{conv_decoder_forward.3} parent=11 // pred_check
          %p530 = pneg %p115
        $region22: #{conv_decoder_forward.3} parent=11 // pred_check_branch
          %532 = sbr.rel (%p530) target = $region24
        $region23: #{conv_decoder_forward.3} parent=11 // pred_region
          %s533 = smul.u32 2, %s34
          %p534 = scmp.lt.s32.totalorder %s533, 1
          %s535 = scalar_select %p534, %s533, 1
          %s536 = smul.addr %s535, 2
          %s537 = smul.addr %s536, 4
          %s538 = scalar_lea.vmem %s2, %s537
          %s539 = smul.u32 2, %s34
        $region24: #{conv_decoder_forward.3} parent=11 // pred_fallthru
          _
        // Predicated region
        $region25: #{conv_decoder_forward.3} parent=11 // pred_check
          %p540 = pneg %p141
        $region26: #{conv_decoder_forward.3} parent=11 // pred_check_branch
          %542 = sbr.rel (%p540) target = $region28
        $region27: #{conv_decoder_forward.3} parent=11 // pred_region
          %s543 = smul.u32 2, %s34
          %p544 = scmp.lt.s32.totalorder %s543, 1
          %s545 = scalar_select %p544, %s543, 1
          %s546 = smul.addr %s545, 16
          %s547 = smul.addr %s546, 4
          %s548 = scalar_lea.vmem %s3, %s547
          %s549 = smul.u32 2, %s34
        $region28: #{conv_decoder_forward.3} parent=11 // pred_fallthru
          _
        // Predicated region
        $region29: #{conv_decoder_forward.3} parent=11 // pred_check
          %p550 = pneg %p167
        $region30: #{conv_decoder_forward.3} parent=11 // pred_check_branch
          %552 = sbr.rel (%p550) target = $region32
        $region31: #{conv_decoder_forward.3} parent=11 // pred_region
          %s553 = smul.u32 2, %s34
          %p554 = scmp.lt.s32.totalorder %s553, 1
          %s555 = scalar_select %p554, %s553, 1
          %s556 = smul.addr %s555, 4
          %s557 = scalar_lea.vmem %s4, %s556
          %s558 = smul.u32 2, %s34
        $region32: #{conv_decoder_forward.3} parent=11 // pred_fallthru
          _
        // Predicated region
        $region33: #{conv_decoder_forward.3} parent=11 // pred_check
          %p559 = pneg %p188
        $region34: #{conv_decoder_forward.3} parent=11 // pred_check_branch
          %561 = sbr.rel (%p559) target = $region36
        $region35: #{conv_decoder_forward.3} parent=11 // pred_region
          %s563 = ssub.s32 1024, 1024
          %564 = vsyncadd [#allocation3], %s563
          %s565 = sshll.u32 [#allocation2], 4
          %s566 = int_to_ptr.vmem [resolvable:$true] %s565
          %571 = dma.hbm_to_vmem [thread:$0]  %s5, 1024, %s566, [#allocation3], 64, 64, 4
        $region36: #{conv_decoder_forward.3} parent=11 // pred_fallthru
          _
        // Predicated region
        $region37: #{conv_decoder_forward.3} parent=11 // pred_check
          %p572 = pneg %p209
        $region38: #{conv_decoder_forward.3} parent=11 // pred_check_branch
          %574 = sbr.rel (%p572) target = $region40
        $region39: #{conv_decoder_forward.3} parent=11 // pred_region
          %s576 = ssub.s32 16, 16
          %577 = vsyncadd [#allocation5], %s576
          %s579 = sshll.u32 [#allocation4], 4
          %s580 = int_to_ptr.vmem [resolvable:$true] %s579
          %582 = dma.hbm_to_vmem [thread:$0]  %s6, 16, %s580, [#allocation5]
        $region40: #{conv_decoder_forward.3} parent=11 // pred_fallthru
          _
      $region12: #{conv_decoder_forward.3} parent=5 // pred_fallthru
        _
      %p583 = scmp.lt.s32.totalorder %s25, 2
      // Predicated region
      $region41: #{conv_decoder_forward.3} parent=5 // pred_check
        %p584 = pneg %p583
      $region42: #{conv_decoder_forward.3} parent=5 // pred_check_branch
        %586 = sbr.rel (%p584) target = $region44
      $region43: #{conv_decoder_forward.3} parent=5 // pred_region
        // Predicated region
        $region45: #{conv_decoder_forward.3} parent=43 // pred_check
          %p587 = pneg %p229
        $region46: #{conv_decoder_forward.3} parent=43 // pred_check_branch
          %589 = sbr.rel (%p587) target = $region48
        $region47: #{conv_decoder_forward.3} parent=43 // pred_region
          %p590 = scmp.lt.s32.totalorder %s33, 1
          %s591 = scalar_select %p590, %s33, 1
          %s592 = smul.addr %s591, 96
          %s593 = smul.addr %s592, 4
          %s594 = scalar_lea.vmem %s7, %s593
        $region48: #{conv_decoder_forward.3} parent=43 // pred_fallthru
          _
        // Predicated region
        $region49: #{conv_decoder_forward.3} parent=43 // pred_check
          %p595 = pneg %p255
        $region50: #{conv_decoder_forward.3} parent=43 // pred_check_branch
          %597 = sbr.rel (%p595) target = $region52
        $region51: #{conv_decoder_forward.3} parent=43 // pred_region
          %s598 = sand.u32 %s25, 1
          %s599 = scalar_lea.sflag [#allocation3], %s598
          %s600 = sand.u32 %s245, 1
          %s601 = smul.addr %s600, 2
          %s602 = scalar_lea.vmem [#allocation6], %s601
          %s604 = ssub.s32 32, 32
          %605 = vsyncadd %s599, %s604
          %s606 = smul.addr %s33, 2
          %s607 = smul.addr %s606, 16
          %s608 = scalar_lea.hbm %s8, %s607
          %s610 = sshll.u32 %s602, 4
          %s611 = int_to_ptr.vmem [resolvable:$true] %s610
          %613 = dma.hbm_to_vmem [thread:$0]  %s608, 32, %s611, %s599
        $region52: #{conv_decoder_forward.3} parent=43 // pred_fallthru
          _
        // Predicated region
        $region53: #{conv_decoder_forward.3} parent=43 // pred_check
          %p614 = pneg %p281
        $region54: #{conv_decoder_forward.3} parent=43 // pred_check_branch
          %616 = sbr.rel (%p614) target = $region56
        $region55: #{conv_decoder_forward.3} parent=43 // pred_region
          %p617 = scmp.lt.s32.totalorder %s33, 1
          %s618 = scalar_select %p617, %s33, 1
          %s619 = smul.addr %s618, 32
          %s620 = smul.addr %s619, 4
          %s621 = scalar_lea.vmem %s9, %s620
        $region56: #{conv_decoder_forward.3} parent=43 // pred_fallthru
          _
        // Predicated region
        $region57: #{conv_decoder_forward.3} parent=43 // pred_check
          %p622 = pneg %p307
        $region58: #{conv_decoder_forward.3} parent=43 // pred_check_branch
          %624 = sbr.rel (%p622) target = $region60
        $region59: #{conv_decoder_forward.3} parent=43 // pred_region
          %s625 = sand.u32 %s25, 1
          %s626 = scalar_lea.sflag [#allocation3], %s625
          %s627 = sand.u32 %s297, 1
          %s628 = smul.addr %s627, 2
          %s629 = scalar_lea.vmem [#allocation7], %s628
          %s631 = ssub.s32 32, 32
          %632 = vsyncadd %s626, %s631
          %s633 = smul.addr %s33, 2
          %s634 = smul.addr %s633, 16
          %s635 = scalar_lea.hbm %s10, %s634
          %s637 = sshll.u32 %s629, 4
          %s638 = int_to_ptr.vmem [resolvable:$true] %s637
          %640 = dma.hbm_to_vmem [thread:$0]  %s635, 32, %s638, %s626
        $region60: #{conv_decoder_forward.3} parent=43 // pred_fallthru
          _
        // Predicated region
        $region61: #{conv_decoder_forward.3} parent=43 // pred_check
          %p641 = pneg %p333
        $region62: #{conv_decoder_forward.3} parent=43 // pred_check_branch
          %643 = sbr.rel (%p641) target = $region64
        $region63: #{conv_decoder_forward.3} parent=43 // pred_region
          %s644 = sand.u32 %s25, 1
          %s645 = scalar_lea.sflag [#allocation3], %s644
          %s646 = sand.u32 %s323, 1
          %s647 = smul.addr %s646, 64
          %s648 = scalar_lea.vmem [#allocation8], %s647
          %s650 = ssub.s32 1024, 1024
          %651 = vsyncadd %s645, %s650
          %s652 = smul.addr %s33, 16
          %s653 = smul.addr %s652, 64
          %s654 = scalar_lea.hbm %s11, %s653
          %s655 = sshll.u32 %s648, 4
          %s656 = int_to_ptr.vmem [resolvable:$true] %s655
          %661 = dma.hbm_to_vmem [thread:$0]  %s654, 1024, %s656, %s645, 64, 64, 4
        $region64: #{conv_decoder_forward.3} parent=43 // pred_fallthru
          _
        // Predicated region
        $region65: #{conv_decoder_forward.3} parent=43 // pred_check
          %p662 = pneg %p359
        $region66: #{conv_decoder_forward.3} parent=43 // pred_check_branch
          %664 = sbr.rel (%p662) target = $region68
        $region67: #{conv_decoder_forward.3} parent=43 // pred_region
          %s665 = sand.u32 %s25, 1
          %s666 = scalar_lea.sflag [#allocation3], %s665
          %s667 = sand.u32 %s349, 1
          %s668 = scalar_lea.vmem [#allocation9], %s667
          %s670 = ssub.s32 16, 16
          %671 = vsyncadd %s666, %s670
          %s672 = smul.addr %s33, 16
          %s673 = scalar_lea.hbm %s12, %s672
          %s675 = sshll.u32 %s668, 4
          %s676 = int_to_ptr.vmem [resolvable:$true] %s675
          %678 = dma.hbm_to_vmem [thread:$0]  %s673, 16, %s676, %s666
        $region68: #{conv_decoder_forward.3} parent=43 // pred_fallthru
          _
        // Predicated region
        $region69: #{conv_decoder_forward.3} parent=43 // pred_check
          %p679 = pneg %p385
        $region70: #{conv_decoder_forward.3} parent=43 // pred_check_branch
          %681 = sbr.rel (%p679) target = $region72
        $region71: #{conv_decoder_forward.3} parent=43 // pred_region
          %s682 = sand.u32 %s25, 1
          %s683 = scalar_lea.sflag [#allocation3], %s682
          %s684 = sand.u32 %s375, 1
          %s685 = smul.addr %s684, 64
          %s686 = scalar_lea.vmem [#allocation10], %s685
          %s688 = ssub.s32 1024, 1024
          %689 = vsyncadd %s683, %s688
          %s690 = smul.addr %s33, 16
          %s691 = smul.addr %s690, 64
          %s692 = scalar_lea.hbm %s13, %s691
          %s693 = sshll.u32 %s686, 4
          %s694 = int_to_ptr.vmem [resolvable:$true] %s693
          %699 = dma.hbm_to_vmem [thread:$0]  %s692, 1024, %s694, %s683, 64, 64, 4
        $region72: #{conv_decoder_forward.3} parent=43 // pred_fallthru
          _
        // Predicated region
        $region73: #{conv_decoder_forward.3} parent=43 // pred_check
          %p700 = pneg %p411
        $region74: #{conv_decoder_forward.3} parent=43 // pred_check_branch
          %702 = sbr.rel (%p700) target = $region76
        $region75: #{conv_decoder_forward.3} parent=43 // pred_region
          %s703 = sand.u32 %s25, 1
          %s704 = scalar_lea.sflag [#allocation3], %s703
          %s705 = sand.u32 %s401, 1
          %s706 = scalar_lea.vmem [#allocation11], %s705
          %s708 = ssub.s32 16, 16
          %709 = vsyncadd %s704, %s708
          %s710 = smul.addr %s33, 16
          %s711 = scalar_lea.hbm %s14, %s710
          %s713 = sshll.u32 %s706, 4
          %s714 = int_to_ptr.vmem [resolvable:$true] %s713
          %716 = dma.hbm_to_vmem [thread:$0]  %s711, 16, %s714, %s704
        $region76: #{conv_decoder_forward.3} parent=43 // pred_fallthru
          _
        // Predicated region
        $region77: #{conv_decoder_forward.3} parent=43 // pred_check
          %p717 = pneg %p437
        $region78: #{conv_decoder_forward.3} parent=43 // pred_check_branch
          %719 = sbr.rel (%p717) target = $region80
        $region79: #{conv_decoder_forward.3} parent=43 // pred_region
          %s720 = sand.u32 %s25, 1
          %s721 = scalar_lea.sflag [#allocation3], %s720
          %s722 = sand.u32 %s427, 1
          %s723 = smul.addr %s722, 128
          %s724 = scalar_lea.vmem [#allocation12], %s723
          %s726 = ssub.s32 2048, 2048
          %727 = vsyncadd %s721, %s726
          %s728 = smul.addr %s33, 32
          %s729 = smul.addr %s728, 64
          %s730 = scalar_lea.hbm %s15, %s729
          %s731 = sshll.u32 %s724, 4
          %s732 = int_to_ptr.vmem [resolvable:$true] %s731
          %737 = dma.hbm_to_vmem [thread:$0]  %s730, 2048, %s732, %s721, 64, 64, 4
        $region80: #{conv_decoder_forward.3} parent=43 // pred_fallthru
          _
        // Predicated region
        $region81: #{conv_decoder_forward.3} parent=43 // pred_check
          %p738 = pneg %p463
        $region82: #{conv_decoder_forward.3} parent=43 // pred_check_branch
          %740 = sbr.rel (%p738) target = $region84
        $region83: #{conv_decoder_forward.3} parent=43 // pred_region
          %s741 = sand.u32 %s25, 1
          %s742 = scalar_lea.sflag [#allocation3], %s741
          %s743 = sand.u32 %s453, 1
          %s744 = scalar_lea.vmem [#allocation13], %s743
          %s746 = ssub.s32 16, 16
          %747 = vsyncadd %s742, %s746
          %s748 = smul.addr %s33, 16
          %s749 = scalar_lea.hbm %s16, %s748
          %s751 = sshll.u32 %s744, 4
          %s752 = int_to_ptr.vmem [resolvable:$true] %s751
          %754 = dma.hbm_to_vmem [thread:$0]  %s749, 16, %s752, %s742
        $region84: #{conv_decoder_forward.3} parent=43 // pred_fallthru
          _
      $region44: #{conv_decoder_forward.3} parent=5 // pred_fallthru
        _
      %p755 = scmp.le.s32.totalorder 1, %s25
      %p756 = scmp.lt.s32.totalorder %s25, 3
      %p757 = pnand %p755, %p756
      %p758 = pneg %p757
      // Predicated region
      $region85: #{conv_decoder_forward.3} parent=5 // pred_check
        _
      $region86: #{conv_decoder_forward.3} parent=5 // pred_check_branch
        %760 = sbr.rel (%p757) target = $region88
      $region87: #{conv_decoder_forward.3} parent=5 // pred_region
        %s761 = ssub.s32 %s25, 1
        // Predicated region
        $region89: #{conv_decoder_forward.3} parent=87 // pred_check
          %p762 = pneg %p188
        $region90: #{conv_decoder_forward.3} parent=87 // pred_check_branch
          %764 = sbr.rel (%p762) target = $region92
        $region91: #{conv_decoder_forward.3} parent=87 // pred_region
          %765 = dma.done [#allocation3], 1024
        $region92: #{conv_decoder_forward.3} parent=87 // pred_fallthru
          _
        // Predicated region
        $region93: #{conv_decoder_forward.3} parent=87 // pred_check
          %p766 = pneg %p209
        $region94: #{conv_decoder_forward.3} parent=87 // pred_check_branch
          %768 = sbr.rel (%p766) target = $region96
        $region95: #{conv_decoder_forward.3} parent=87 // pred_region
          %769 = dma.done [#allocation5], 16
        $region96: #{conv_decoder_forward.3} parent=87 // pred_fallthru
          _
        %s770 = sand.u32 %s30, 1
        %s771 = scalar_lea.sflag [#allocation3], %s770
        %s772 = sand.u32 %s248, 1
        %s773 = smul.addr %s772, 2
        %s774 = scalar_lea.vmem [#allocation6], %s773
        // Predicated region
        $region97: #{conv_decoder_forward.3} parent=87 // pred_check
          %p775 = pneg %p261
        $region98: #{conv_decoder_forward.3} parent=87 // pred_check_branch
          %777 = sbr.rel (%p775) target = $region100
        $region99: #{conv_decoder_forward.3} parent=87 // pred_region
          %778 = dma.done %s771, 32
        $region100: #{conv_decoder_forward.3} parent=87 // pred_fallthru
          _
        %s779 = sand.u32 %s30, 1
        %s780 = scalar_lea.sflag [#allocation3], %s779
        %s781 = sand.u32 %s300, 1
        %s782 = smul.addr %s781, 2
        %s783 = scalar_lea.vmem [#allocation7], %s782
        // Predicated region
        $region101: #{conv_decoder_forward.3} parent=87 // pred_check
          %p784 = pneg %p313
        $region102: #{conv_decoder_forward.3} parent=87 // pred_check_branch
          %786 = sbr.rel (%p784) target = $region104
        $region103: #{conv_decoder_forward.3} parent=87 // pred_region
          %787 = dma.done %s780, 32
        $region104: #{conv_decoder_forward.3} parent=87 // pred_fallthru
          _
        %s788 = sand.u32 %s30, 1
        %s789 = scalar_lea.sflag [#allocation3], %s788
        %s790 = sand.u32 %s326, 1
        %s791 = smul.addr %s790, 64
        %s792 = scalar_lea.vmem [#allocation8], %s791
        // Predicated region
        $region105: #{conv_decoder_forward.3} parent=87 // pred_check
          %p793 = pneg %p339
        $region106: #{conv_decoder_forward.3} parent=87 // pred_check_branch
          %795 = sbr.rel (%p793) target = $region108
        $region107: #{conv_decoder_forward.3} parent=87 // pred_region
          %796 = dma.done %s789, 1024
        $region108: #{conv_decoder_forward.3} parent=87 // pred_fallthru
          _
        %s797 = sand.u32 %s30, 1
        %s798 = scalar_lea.sflag [#allocation3], %s797
        %s799 = sand.u32 %s352, 1
        %s800 = scalar_lea.vmem [#allocation9], %s799
        // Predicated region
        $region109: #{conv_decoder_forward.3} parent=87 // pred_check
          %p801 = pneg %p365
        $region110: #{conv_decoder_forward.3} parent=87 // pred_check_branch
          %803 = sbr.rel (%p801) target = $region112
        $region111: #{conv_decoder_forward.3} parent=87 // pred_region
          %804 = dma.done %s798, 16
        $region112: #{conv_decoder_forward.3} parent=87 // pred_fallthru
          _
        %s805 = sand.u32 %s30, 1
        %s806 = scalar_lea.sflag [#allocation3], %s805
        %s807 = sand.u32 %s378, 1
        %s808 = smul.addr %s807, 64
        %s809 = scalar_lea.vmem [#allocation10], %s808
        // Predicated region
        $region113: #{conv_decoder_forward.3} parent=87 // pred_check
          %p810 = pneg %p391
        $region114: #{conv_decoder_forward.3} parent=87 // pred_check_branch
          %812 = sbr.rel (%p810) target = $region116
        $region115: #{conv_decoder_forward.3} parent=87 // pred_region
          %813 = dma.done %s806, 1024
        $region116: #{conv_decoder_forward.3} parent=87 // pred_fallthru
          _
        %s814 = sand.u32 %s30, 1
        %s815 = scalar_lea.sflag [#allocation3], %s814
        %s816 = sand.u32 %s404, 1
        %s817 = scalar_lea.vmem [#allocation11], %s816
        // Predicated region
        $region117: #{conv_decoder_forward.3} parent=87 // pred_check
          %p818 = pneg %p417
        $region118: #{conv_decoder_forward.3} parent=87 // pred_check_branch
          %820 = sbr.rel (%p818) target = $region120
        $region119: #{conv_decoder_forward.3} parent=87 // pred_region
          %821 = dma.done %s815, 16
        $region120: #{conv_decoder_forward.3} parent=87 // pred_fallthru
          _
        %s822 = sand.u32 %s30, 1
        %s823 = scalar_lea.sflag [#allocation3], %s822
        %s824 = sand.u32 %s430, 1
        %s825 = smul.addr %s824, 128
        %s826 = scalar_lea.vmem [#allocation12], %s825
        // Predicated region
        $region121: #{conv_decoder_forward.3} parent=87 // pred_check
          %p827 = pneg %p443
        $region122: #{conv_decoder_forward.3} parent=87 // pred_check_branch
          %829 = sbr.rel (%p827) target = $region124
        $region123: #{conv_decoder_forward.3} parent=87 // pred_region
          %830 = dma.done %s823, 2048
        $region124: #{conv_decoder_forward.3} parent=87 // pred_fallthru
          _
        %s831 = sand.u32 %s30, 1
        %s832 = scalar_lea.sflag [#allocation3], %s831
        %s833 = sand.u32 %s456, 1
        %s834 = scalar_lea.vmem [#allocation13], %s833
        // Predicated region
        $region125: #{conv_decoder_forward.3} parent=87 // pred_check
          %p835 = pneg %p469
        $region126: #{conv_decoder_forward.3} parent=87 // pred_check_branch
          %837 = sbr.rel (%p835) target = $region128
        $region127: #{conv_decoder_forward.3} parent=87 // pred_region
          %838 = dma.done %s832, 16
        $region128: #{conv_decoder_forward.3} parent=87 // pred_fallthru
          _
        %s839 = smul.u32 2, %s34
        %p840 = scmp.lt.s32.totalorder %s839, 1
        %s841 = scalar_select %p840, %s839, 1
        %s842 = smul.addr %s841, 2
        %s843 = smul.addr %s842, 8
        %s844 = scalar_lea.vmem %s0, %s843
        %p845 = pneg %p63
        %p846 = pneg %p60
        %s847 = smul.u32 2, %s34
        %p848 = scmp.lt.s32.totalorder %s847, 1
        %s849 = scalar_select %p848, %s847, 1
        %s850 = smul.addr %s849, 16
        %s851 = smul.addr %s850, 4
        %s852 = scalar_lea.vmem %s1, %s851
        %p853 = pneg %p89
        %p854 = pneg %p86
        %s855 = smul.u32 2, %s34
        %p856 = scmp.lt.s32.totalorder %s855, 1
        %s857 = scalar_select %p856, %s855, 1
        %s858 = smul.addr %s857, 2
        %s859 = smul.addr %s858, 4
        %s860 = scalar_lea.vmem %s2, %s859
        %p861 = pneg %p115
        %p862 = pneg %p112
        %s863 = smul.u32 2, %s34
        %p864 = scmp.lt.s32.totalorder %s863, 1
        %s865 = scalar_select %p864, %s863, 1
        %s866 = smul.addr %s865, 16
        %s867 = smul.addr %s866, 4
        %s868 = scalar_lea.vmem %s3, %s867
        %p869 = pneg %p141
        %p870 = pneg %p138
        %s871 = smul.u32 2, %s34
        %p872 = scmp.lt.s32.totalorder %s871, 1
        %s873 = scalar_select %p872, %s871, 1
        %s874 = smul.addr %s873, 4
        %s875 = scalar_lea.vmem %s4, %s874
        %p876 = pneg %p167
        %p877 = pneg %p164
        %p878 = pneg %p188
        %p879 = pneg %p185
        %p880 = pneg %p209
        %p881 = pneg %p206
        %p882 = scmp.lt.s32.totalorder %s35, 1
        %s883 = scalar_select %p882, %s35, 1
        %s884 = smul.addr %s883, 96
        %s885 = smul.addr %s884, 4
        %s886 = scalar_lea.vmem %s7, %s885
        %p887 = pneg %p235
        %p888 = pneg %p232
        %s889 = sand.u32 %s30, 1
        %s890 = scalar_lea.sflag [#allocation3], %s889
        %s891 = sand.u32 %s248, 1
        %s892 = smul.addr %s891, 2
        %s893 = scalar_lea.vmem [#allocation6], %s892
        %p894 = pneg %p261
        %p895 = pneg %p258
        %p896 = scmp.lt.s32.totalorder %s35, 1
        %s897 = scalar_select %p896, %s35, 1
        %s898 = smul.addr %s897, 32
        %s899 = smul.addr %s898, 4
        %s900 = scalar_lea.vmem %s9, %s899
        %p901 = pneg %p287
        %p902 = pneg %p284
        %s903 = sand.u32 %s30, 1
        %s904 = scalar_lea.sflag [#allocation3], %s903
        %s905 = sand.u32 %s300, 1
        %s906 = smul.addr %s905, 2
        %s907 = scalar_lea.vmem [#allocation7], %s906
        %p908 = pneg %p313
        %p909 = pneg %p310
        %s910 = sand.u32 %s30, 1
        %s911 = scalar_lea.sflag [#allocation3], %s910
        %s912 = sand.u32 %s326, 1
        %s913 = smul.addr %s912, 64
        %s914 = scalar_lea.vmem [#allocation8], %s913
        %p915 = pneg %p339
        %p916 = pneg %p336
        %s917 = sand.u32 %s30, 1
        %s918 = scalar_lea.sflag [#allocation3], %s917
        %s919 = sand.u32 %s352, 1
        %s920 = scalar_lea.vmem [#allocation9], %s919
        %p921 = pneg %p365
        %p922 = pneg %p362
        %s923 = sand.u32 %s30, 1
        %s924 = scalar_lea.sflag [#allocation3], %s923
        %s925 = sand.u32 %s378, 1
        %s926 = smul.addr %s925, 64
        %s927 = scalar_lea.vmem [#allocation10], %s926
        %p928 = pneg %p391
        %p929 = pneg %p388
        %s930 = sand.u32 %s30, 1
        %s931 = scalar_lea.sflag [#allocation3], %s930
        %s932 = sand.u32 %s404, 1
        %s933 = scalar_lea.vmem [#allocation11], %s932
        %p934 = pneg %p417
        %p935 = pneg %p414
        %s936 = sand.u32 %s30, 1
        %s937 = scalar_lea.sflag [#allocation3], %s936
        %s938 = sand.u32 %s430, 1
        %s939 = smul.addr %s938, 128
        %s940 = scalar_lea.vmem [#allocation12], %s939
        %p941 = pneg %p443
        %p942 = pneg %p440
        %s943 = sand.u32 %s30, 1
        %s944 = scalar_lea.sflag [#allocation3], %s943
        %s945 = sand.u32 %s456, 1
        %s946 = scalar_lea.vmem [#allocation13], %s945
        %p947 = pneg %p469
        %p948 = pneg %p466
        %p949 = pneg %p495
        %p950 = pneg %p492
        %s951 = smul.u32 2, %s34
        %p952 = scmp.lt.s32.totalorder %s951, 1
        %s953 = scalar_select %p952, %s951, 1
        %s954 = smul.addr %s953, 2
        %s955 = smul.addr %s954, 8
        %s956 = scalar_lea.vmem %s17, %s955
        %s957 = smul.u32 2, %s34
        %p958 = scmp.lt.s32.totalorder %s957, 1
        %s959 = scalar_select %p958, %s957, 1
        %s960 = smul.addr %s959, 2
        %s961 = smul.addr %s960, 8
        %s962 = scalar_lea.vmem %s0, %s961
        %s963 = smul.u32 2, %s34
        %s964 = smul.u32 2, %s34
        %p965 = scmp.lt.s32.totalorder %s964, 1
        %s966 = scalar_select %p965, %s964, 1
        %s967 = smul.addr %s966, 16
        %s968 = smul.addr %s967, 4
        %s969 = scalar_lea.vmem %s1, %s968
        %s970 = smul.u32 2, %s34
        %s971 = smul.u32 2, %s34
        %p972 = scmp.lt.s32.totalorder %s971, 1
        %s973 = scalar_select %p972, %s971, 1
        %s974 = smul.addr %s973, 2
        %s975 = smul.addr %s974, 4
        %s976 = scalar_lea.vmem %s2, %s975
        %s977 = smul.u32 2, %s34
        %s978 = smul.u32 2, %s34
        %p979 = scmp.lt.s32.totalorder %s978, 1
        %s980 = scalar_select %p979, %s978, 1
        %s981 = smul.addr %s980, 16
        %s982 = smul.addr %s981, 4
        %s983 = scalar_lea.vmem %s3, %s982
        %s984 = smul.u32 2, %s34
        %s985 = smul.u32 2, %s34
        %p986 = scmp.lt.s32.totalorder %s985, 1
        %s987 = scalar_select %p986, %s985, 1
        %s988 = smul.addr %s987, 4
        %s989 = scalar_lea.vmem %s4, %s988
        %s990 = smul.u32 2, %s34
        %p991 = scmp.lt.s32.totalorder %s35, 1
        %s992 = scalar_select %p991, %s35, 1
        %s993 = smul.addr %s992, 96
        %s994 = smul.addr %s993, 4
        %s995 = scalar_lea.vmem %s7, %s994
        %p996 = scmp.lt.s32.totalorder %s35, 1
        %s997 = scalar_select %p996, %s35, 1
        %s998 = smul.addr %s997, 32
        %s999 = smul.addr %s998, 4
        %s1000 = scalar_lea.vmem %s9, %s999
        %s1001 = smul.u32 2, %s34
        %p1002 = scmp.lt.s32.totalorder %s1001, 1
        %s1003 = scalar_select %p1002, %s1001, 1
        %s1004 = smul.addr %s1003, 2
        %s1005 = smul.addr %s1004, 8
        %s1006 = scalar_lea.vmem %s17, %s1005
        %s1007 = smul.u32 2, %s34
        %v1009 = vld [vmem:[%s962] sm:$0xff]
        %v1010 = vld [vmem:[%s962 + $0x8] sm:$0xff]
        %v1011 = vld [vmem:[%s962 + $0x10] sm:$0xff]
        %v1012 = vld [vmem:[%s962 + $0x18] sm:$0xff]
        %p1013 = scmp.eq.s32.totalorder %s35, 0
        // Predicated region
        $region129: #{conv_decoder_forward.3} parent=87 // pred_check
          %p1014 = pneg %p1013
        $region130: #{conv_decoder_forward.3} parent=87 // pred_check_branch
          %1016 = sbr.rel (%p1014) target = $region132
        $region131: #{conv_decoder_forward.3} parent=87 // pred_region
          %v1017 = vpack.c.bf16 %v1010, %v1009
          %v1018 = vpack.c.bf16 %v1012, %v1011
          %v1019 = vld [vmem:[#allocation2] sm:$0xf]
          %v1020 = vld [vmem:[#allocation2 + $0x4] sm:$0xf]
          %v1021 = vld [vmem:[#allocation2 + $0x8] sm:$0xf]
          %v1022 = vld [vmem:[#allocation2 + $0xc] sm:$0xf]
          %v1023 = vld [vmem:[#allocation2 + $0x10] sm:$0xf]
          %v1024 = vld [vmem:[#allocation2 + $0x14] sm:$0xf]
          %v1025 = vld [vmem:[#allocation2 + $0x18] sm:$0xf]
          %v1026 = vld [vmem:[#allocation2 + $0x1c] sm:$0xf]
          %v1027 = vld [vmem:[#allocation2 + $0x20] sm:$0xf]
          %v1028 = vld [vmem:[#allocation2 + $0x24] sm:$0xf]
          %v1029 = vld [vmem:[#allocation2 + $0x28] sm:$0xf]
          %v1030 = vld [vmem:[#allocation2 + $0x2c] sm:$0xf]
          %v1031 = vld [vmem:[#allocation2 + $0x30] sm:$0xf]
          %v1032 = vld [vmem:[#allocation2 + $0x34] sm:$0xf]
          %v1033 = vld [vmem:[#allocation2 + $0x38] sm:$0xf]
          %v1034 = vld [vmem:[#allocation2 + $0x3c] sm:$0xf]
          %v1035 = vld [vmem:[#allocation4] sm:$0x1]
          %v1037 = vlaneseq
          %v1038 = vshrl.u32 %v1037, 7
          %v1039 = vsub.s32 0, %v1038
          %v1040 = vrot.slane %v1035, %v1039
          %v1058 = vunpack.c.l.b16 %v1019
          %v1059 = vunpack.c.l.b16 %v1020
          %v1060 = vunpack.c.l.b16 %v1021
          %v1061 = vunpack.c.l.b16 %v1022
          %v1062 = vunpack.c.l.b16 %v1023
          %v1063 = vunpack.c.l.b16 %v1024
          %v1064 = vunpack.c.l.b16 %v1025
          %v1065 = vunpack.c.l.b16 %v1026
          %v1066 = vunpack.c.l.b16 %v1027
          %v1067 = vunpack.c.l.b16 %v1028
          %v1068 = vunpack.c.l.b16 %v1029
          %v1069 = vunpack.c.l.b16 %v1030
          %v1070 = vunpack.c.l.b16 %v1031
          %v1071 = vunpack.c.l.b16 %v1032
          %v1072 = vunpack.c.l.b16 %v1033
          %v1073 = vunpack.c.l.b16 %v1034
          %v1074 = vpack.c.b16 %v1059, %v1058
          %v1075 = vpack.c.b16 %v1061, %v1060
          %v1076 = vpack.c.b16 %v1063, %v1062
          %v1077 = vpack.c.b16 %v1065, %v1064
          %v1078 = vpack.c.b16 %v1067, %v1066
          %v1079 = vpack.c.b16 %v1069, %v1068
          %v1080 = vpack.c.b16 %v1071, %v1070
          %v1081 = vpack.c.b16 %v1073, %v1072
          %1090 = vmatprep.subr.bf16.mxu0 0
          %1091 = vmatpush1.bf16.msra.mxu0 %v1074
          %1092 = vmatprep.subr.bf16.mxu0 0
          %1093 = vmatpush1.bf16.msra.mxu0 %v1075
          %1094 = vmatprep.subr.bf16.mxu0 0
          %1095 = vmatpush1.bf16.msra.mxu0 %v1076
          %1096 = vmatprep.subr.bf16.mxu0 0
          %1097 = vmatpush1.bf16.msra.mxu0 %v1077
          %1098 = vmatprep.subr.bf16.mxu0 0
          %1099 = vmatpush1.bf16.msra.mxu0 %v1078
          %1100 = vmatprep.subr.bf16.mxu0 0
          %1101 = vmatpush1.bf16.msra.mxu0 %v1079
          %1102 = vmatprep.subr.bf16.mxu0 0
          %1103 = vmatpush1.bf16.msra.mxu0 %v1080
          %1104 = vmatprep.subr.bf16.mxu0 0
          %1105 = vmatpush1.bf16.msra.mxu0 %v1081
          %1106 = vmatprep.subr.bf16.mxu0 0
          %1107 = vmatpush1.bf16.msra.mxu0 0
          %1108 = vmatprep.subr.bf16.mxu0 0
          %1109 = vmatpush1.bf16.msra.mxu0 0
          %1110 = vmatprep.subr.bf16.mxu0 0
          %1111 = vmatpush1.bf16.msra.mxu0 0
          %1112 = vmatprep.subr.bf16.mxu0 0
          %1113 = vmatpush1.bf16.msra.mxu0 0
          %1114 = vmatprep.subr.bf16.mxu0 0
          %1115 = vmatpush1.bf16.msra.mxu0 0
          %1116 = vmatprep.subr.bf16.mxu0 0
          %1117 = vmatpush1.bf16.msra.mxu0 0
          %1118 = vmatprep.subr.bf16.mxu0 0
          %1119 = vmatpush1.bf16.msra.mxu0 0
          %1120 = vmatprep.subr.bf16.mxu0 0
          %1121 = vmatpush1.bf16.msra.mxu0 0
          %1122 = vmatprep.mubr.bf16.mxu0 0
          %1123 = vmatmul.mubr.bf16.gmra.mrb[0].mxu0 %v1017
          %v1124 = vpop.f32.mrb[0].mxu0
          %v1125 = vadd.f32 %v1040, %v1124
          %v1126 = vpop.f32.mrb[0].mxu0
          %v1127 = vpop.f32.mrb[0].mxu0
          %v1128 = vadd.f32 %v1040, %v1127
          %v1129 = vpop.f32.mrb[0].mxu0
          %1130 = vmatprep.mubr.bf16.mxu0 0
          %1131 = vmatmul.mubr.bf16.gmra.mrb[0].mxu0 %v1018
          %v1132 = vpop.f32.mrb[0].mxu0
          %v1133 = vadd.f32 %v1040, %v1132
          %v1134 = vpop.f32.mrb[0].mxu0
          %v1135 = vpop.f32.mrb[0].mxu0
          %v1136 = vadd.f32 %v1040, %v1135
          %v1137 = vpop.f32.mrb[0].mxu0
          %1138 = vdwg.mxu0
          %1139 = vst [vmem:[%s1006] sm:$0xff] %v1125
          %1140 = vst [vmem:[%s1006 + $0x8] sm:$0xff] %v1128
          %1141 = vst [vmem:[%s1006 + $0x10] sm:$0xff] %v1133
          %1142 = vst [vmem:[%s1006 + $0x18] sm:$0xff] %v1136
        $region132: #{conv_decoder_forward.3} parent=87 // pred_fallthru
          _
        %v1143 = vld [vmem:[%s1006] sm:$0xff]
        %v1144 = vld [vmem:[%s1006 + $0x8] sm:$0xff]
        %v1145 = vld [vmem:[%s1006 + $0x10] sm:$0xff]
        %v1146 = vld [vmem:[%s1006 + $0x18] sm:$0xff]
        %v1147 = vlaneseq
        %v1148 = vshrl.u32 %v1147, 7
        %v1149 = vadd.s32 %v1148, 8
        %v1150 = vrot.slane %v1143, 6
        %v1151 = vrot.slane %v1144, 6
        %v1152 = vrot.slane %v1145, 6
        %v1153 = vrot.slane %v1146, 6
        %vm1154 = vcmp.lt.s32.totalorder %v1148, 2
        %v1155 = vsel %vm1154, %v1152, %v1153
        %v1156 = vsel %vm1154, %v1151, %v1152
        %v1157 = vsel %vm1154, %v1150, %v1151
        %v1158 = vsel %vm1154, %v1153, %v1150
        %vm1159 = vcmp.ge.s32.totalorder %v1148, 2
        %vm1160 = vcmp.ge.s32.totalorder %v1149, 2
        %v1161 = vsel %vm1159, %v1158, 0.0
        %v1162 = vsel %vm1160, %v1157, 0.0
        %v1163 = vsel %vm1159, %v1156, 0.0
        %v1164 = vsel %vm1160, %v1155, 0.0
        %v1165 = vpack.c.bf16 %v1162, %v1161
        %v1166 = vpack.c.bf16 %v1164, %v1163
        %v1167 = vrot.slane %v1143, 7
        %v1168 = vrot.slane %v1144, 7
        %v1169 = vrot.slane %v1145, 7
        %v1170 = vrot.slane %v1146, 7
        %vm1171 = vcmp.lt.s32.totalorder %v1148, 1
        %v1172 = vsel %vm1171, %v1169, %v1170
        %v1173 = vsel %vm1171, %v1168, %v1169
        %v1174 = vsel %vm1171, %v1167, %v1168
        %v1175 = vsel %vm1171, %v1170, %v1167
        %vm1176 = vcmp.ge.s32.totalorder %v1148, 1
        %vm1177 = vcmp.ge.s32.totalorder %v1149, 1
        %v1178 = vsel %vm1176, %v1175, 0.0
        %v1179 = vsel %vm1177, %v1174, 0.0
        %v1180 = vsel %vm1176, %v1173, 0.0
        %v1181 = vsel %vm1177, %v1172, 0.0
        %v1182 = vpack.c.bf16 %v1179, %v1178
        %v1183 = vpack.c.bf16 %v1181, %v1180
        %v1184 = vpack.c.bf16 %v1144, %v1143
        %v1185 = vpack.c.bf16 %v1146, %v1145
        %v1186 = vld [vmem:[%s995] sm:$0xff]
        %v1187 = vld [vmem:[%s995 + $0x8] sm:$0xff]
        %v1188 = vld [vmem:[%s995 + $0x10] sm:$0xff]
        %v1189 = vld [vmem:[%s995 + $0x18] sm:$0xff]
        %v1190 = vld [vmem:[%s995 + $0x20] sm:$0xff]
        %v1191 = vld [vmem:[%s995 + $0x28] sm:$0xff]
        %v1192 = vld [vmem:[%s995 + $0x30] sm:$0xff]
        %v1193 = vld [vmem:[%s995 + $0x38] sm:$0xff]
        %v1194 = vld [vmem:[%s995 + $0x40] sm:$0xff]
        %v1195 = vld [vmem:[%s995 + $0x48] sm:$0xff]
        %v1196 = vld [vmem:[%s995 + $0x50] sm:$0xff]
        %v1197 = vld [vmem:[%s995 + $0x58] sm:$0xff]
        %v1198 = vld [vmem:[%s995 + $0x60] sm:$0xff]
        %v1199 = vld [vmem:[%s995 + $0x68] sm:$0xff]
        %v1200 = vld [vmem:[%s995 + $0x70] sm:$0xff]
        %v1201 = vld [vmem:[%s995 + $0x78] sm:$0xff]
        %v1202 = vld [vmem:[%s995 + $0x80] sm:$0xff]
        %v1203 = vld [vmem:[%s995 + $0x88] sm:$0xff]
        %v1204 = vld [vmem:[%s995 + $0x90] sm:$0xff]
        %v1205 = vld [vmem:[%s995 + $0x98] sm:$0xff]
        %v1206 = vld [vmem:[%s995 + $0xa0] sm:$0xff]
        %v1207 = vld [vmem:[%s995 + $0xa8] sm:$0xff]
        %v1208 = vld [vmem:[%s995 + $0xb0] sm:$0xff]
        %v1209 = vld [vmem:[%s995 + $0xb8] sm:$0xff]
        %v1210 = vld [vmem:[%s995 + $0xc0] sm:$0xff]
        %v1211 = vld [vmem:[%s995 + $0xc8] sm:$0xff]
        %v1212 = vld [vmem:[%s995 + $0xd0] sm:$0xff]
        %v1213 = vld [vmem:[%s995 + $0xd8] sm:$0xff]
        %v1214 = vld [vmem:[%s995 + $0xe0] sm:$0xff]
        %v1215 = vld [vmem:[%s995 + $0xe8] sm:$0xff]
        %v1216 = vld [vmem:[%s995 + $0xf0] sm:$0xff]
        %v1217 = vld [vmem:[%s995 + $0xf8] sm:$0xff]
        %v1218 = vld [vmem:[%s995 + $0x100] sm:$0xff]
        %v1219 = vld [vmem:[%s995 + $0x108] sm:$0xff]
        %v1220 = vld [vmem:[%s995 + $0x110] sm:$0xff]
        %v1221 = vld [vmem:[%s995 + $0x118] sm:$0xff]
        %v1222 = vld [vmem:[%s995 + $0x120] sm:$0xff]
        %v1223 = vld [vmem:[%s995 + $0x128] sm:$0xff]
        %v1224 = vld [vmem:[%s995 + $0x130] sm:$0xff]
        %v1225 = vld [vmem:[%s995 + $0x138] sm:$0xff]
        %v1226 = vld [vmem:[%s995 + $0x140] sm:$0xff]
        %v1227 = vld [vmem:[%s995 + $0x148] sm:$0xff]
        %v1228 = vld [vmem:[%s995 + $0x150] sm:$0xff]
        %v1229 = vld [vmem:[%s995 + $0x158] sm:$0xff]
        %v1230 = vld [vmem:[%s995 + $0x160] sm:$0xff]
        %v1231 = vld [vmem:[%s995 + $0x168] sm:$0xff]
        %v1232 = vld [vmem:[%s995 + $0x170] sm:$0xff]
        %v1233 = vld [vmem:[%s995 + $0x178] sm:$0xff]
        %v1234 = vld [vmem:[%s774] sm:$0x3]
        %v1236 = vlaneseq
        %v1237 = vshrl.u32 %v1236, 7
        %v1238 = vsub.s32 0, %v1237
        %v1239 = vrot.slane %v1234, %v1238
        %v1240 = vlaneseq
        %v1241 = vshrl.u32 %v1240, 7
        %v1242 = vsub.s32 1, %v1241
        %v1243 = vrot.slane %v1234, %v1242
        %v1294 = vunpack.c.l.b16 %v1186
        %v1295 = vunpack.c.h.b16 %v1186
        %v1296 = vunpack.c.l.b16 %v1187
        %v1297 = vunpack.c.h.b16 %v1187
        %v1298 = vunpack.c.l.b16 %v1188
        %v1299 = vunpack.c.h.b16 %v1188
        %v1300 = vunpack.c.l.b16 %v1189
        %v1301 = vunpack.c.h.b16 %v1189
        %v1302 = vunpack.c.l.b16 %v1190
        %v1303 = vunpack.c.h.b16 %v1190
        %v1304 = vunpack.c.l.b16 %v1191
        %v1305 = vunpack.c.h.b16 %v1191
        %v1306 = vunpack.c.l.b16 %v1192
        %v1307 = vunpack.c.h.b16 %v1192
        %v1308 = vunpack.c.l.b16 %v1193
        %v1309 = vunpack.c.h.b16 %v1193
        %v1310 = vunpack.c.l.b16 %v1194
        %v1311 = vunpack.c.h.b16 %v1194
        %v1312 = vunpack.c.l.b16 %v1195
        %v1313 = vunpack.c.h.b16 %v1195
        %v1314 = vunpack.c.l.b16 %v1196
        %v1315 = vunpack.c.h.b16 %v1196
        %v1316 = vunpack.c.l.b16 %v1197
        %v1317 = vunpack.c.h.b16 %v1197
        %v1318 = vunpack.c.l.b16 %v1198
        %v1319 = vunpack.c.h.b16 %v1198
        %v1320 = vunpack.c.l.b16 %v1199
        %v1321 = vunpack.c.h.b16 %v1199
        %v1322 = vunpack.c.l.b16 %v1200
        %v1323 = vunpack.c.h.b16 %v1200
        %v1324 = vunpack.c.l.b16 %v1201
        %v1325 = vunpack.c.h.b16 %v1201
        %v1326 = vunpack.c.l.b16 %v1202
        %v1327 = vunpack.c.h.b16 %v1202
        %v1328 = vunpack.c.l.b16 %v1203
        %v1329 = vunpack.c.h.b16 %v1203
        %v1330 = vunpack.c.l.b16 %v1204
        %v1331 = vunpack.c.h.b16 %v1204
        %v1332 = vunpack.c.l.b16 %v1205
        %v1333 = vunpack.c.h.b16 %v1205
        %v1334 = vunpack.c.l.b16 %v1206
        %v1335 = vunpack.c.h.b16 %v1206
        %v1336 = vunpack.c.l.b16 %v1207
        %v1337 = vunpack.c.h.b16 %v1207
        %v1338 = vunpack.c.l.b16 %v1208
        %v1339 = vunpack.c.h.b16 %v1208
        %v1340 = vunpack.c.l.b16 %v1209
        %v1341 = vunpack.c.h.b16 %v1209
        %v1342 = vunpack.c.l.b16 %v1210
        %v1343 = vunpack.c.h.b16 %v1210
        %v1344 = vunpack.c.l.b16 %v1211
        %v1345 = vunpack.c.h.b16 %v1211
        %v1346 = vunpack.c.l.b16 %v1212
        %v1347 = vunpack.c.h.b16 %v1212
        %v1348 = vunpack.c.l.b16 %v1213
        %v1349 = vunpack.c.h.b16 %v1213
        %v1350 = vunpack.c.l.b16 %v1214
        %v1351 = vunpack.c.h.b16 %v1214
        %v1352 = vunpack.c.l.b16 %v1215
        %v1353 = vunpack.c.h.b16 %v1215
        %v1354 = vunpack.c.l.b16 %v1216
        %v1355 = vunpack.c.h.b16 %v1216
        %v1356 = vunpack.c.l.b16 %v1217
        %v1357 = vunpack.c.h.b16 %v1217
        %v1358 = vunpack.c.l.b16 %v1218
        %v1359 = vunpack.c.h.b16 %v1218
        %v1360 = vunpack.c.l.b16 %v1219
        %v1361 = vunpack.c.h.b16 %v1219
        %v1362 = vunpack.c.l.b16 %v1220
        %v1363 = vunpack.c.h.b16 %v1220
        %v1364 = vunpack.c.l.b16 %v1221
        %v1365 = vunpack.c.h.b16 %v1221
        %v1366 = vunpack.c.l.b16 %v1222
        %v1367 = vunpack.c.h.b16 %v1222
        %v1368 = vunpack.c.l.b16 %v1223
        %v1369 = vunpack.c.h.b16 %v1223
        %v1370 = vunpack.c.l.b16 %v1224
        %v1371 = vunpack.c.h.b16 %v1224
        %v1372 = vunpack.c.l.b16 %v1225
        %v1373 = vunpack.c.h.b16 %v1225
        %v1374 = vunpack.c.l.b16 %v1226
        %v1375 = vunpack.c.h.b16 %v1226
        %v1376 = vunpack.c.l.b16 %v1227
        %v1377 = vunpack.c.h.b16 %v1227
        %v1378 = vunpack.c.l.b16 %v1228
        %v1379 = vunpack.c.h.b16 %v1228
        %v1380 = vunpack.c.l.b16 %v1229
        %v1381 = vunpack.c.h.b16 %v1229
        %v1382 = vunpack.c.l.b16 %v1230
        %v1383 = vunpack.c.h.b16 %v1230
        %v1384 = vunpack.c.l.b16 %v1231
        %v1385 = vunpack.c.h.b16 %v1231
        %v1386 = vunpack.c.l.b16 %v1232
        %v1387 = vunpack.c.h.b16 %v1232
        %v1388 = vunpack.c.l.b16 %v1233
        %v1389 = vunpack.c.h.b16 %v1233
        %v1390 = vpack.c.b16 %v1296, %v1294
        %v1391 = vpack.c.b16 %v1297, %v1295
        %v1392 = vpack.c.b16 %v1300, %v1298
        %v1393 = vpack.c.b16 %v1301, %v1299
        %v1394 = vpack.c.b16 %v1304, %v1302
        %v1395 = vpack.c.b16 %v1305, %v1303
        %v1396 = vpack.c.b16 %v1308, %v1306
        %v1397 = vpack.c.b16 %v1309, %v1307
        %v1398 = vpack.c.b16 %v1312, %v1310
        %v1399 = vpack.c.b16 %v1313, %v1311
        %v1400 = vpack.c.b16 %v1316, %v1314
        %v1401 = vpack.c.b16 %v1317, %v1315
        %v1402 = vpack.c.b16 %v1320, %v1318
        %v1403 = vpack.c.b16 %v1321, %v1319
        %v1404 = vpack.c.b16 %v1324, %v1322
        %v1405 = vpack.c.b16 %v1325, %v1323
        %v1406 = vpack.c.b16 %v1328, %v1326
        %v1407 = vpack.c.b16 %v1329, %v1327
        %v1408 = vpack.c.b16 %v1332, %v1330
        %v1409 = vpack.c.b16 %v1333, %v1331
        %v1410 = vpack.c.b16 %v1336, %v1334
        %v1411 = vpack.c.b16 %v1337, %v1335
        %v1412 = vpack.c.b16 %v1340, %v1338
        %v1413 = vpack.c.b16 %v1341, %v1339
        %v1414 = vpack.c.b16 %v1344, %v1342
        %v1415 = vpack.c.b16 %v1345, %v1343
        %v1416 = vpack.c.b16 %v1348, %v1346
        %v1417 = vpack.c.b16 %v1349, %v1347
        %v1418 = vpack.c.b16 %v1352, %v1350
        %v1419 = vpack.c.b16 %v1353, %v1351
        %v1420 = vpack.c.b16 %v1356, %v1354
        %v1421 = vpack.c.b16 %v1357, %v1355
        %v1422 = vpack.c.b16 %v1360, %v1358
        %v1423 = vpack.c.b16 %v1361, %v1359
        %v1424 = vpack.c.b16 %v1364, %v1362
        %v1425 = vpack.c.b16 %v1365, %v1363
        %v1426 = vpack.c.b16 %v1368, %v1366
        %v1427 = vpack.c.b16 %v1369, %v1367
        %v1428 = vpack.c.b16 %v1372, %v1370
        %v1429 = vpack.c.b16 %v1373, %v1371
        %v1430 = vpack.c.b16 %v1376, %v1374
        %v1431 = vpack.c.b16 %v1377, %v1375
        %v1432 = vpack.c.b16 %v1380, %v1378
        %v1433 = vpack.c.b16 %v1381, %v1379
        %v1434 = vpack.c.b16 %v1384, %v1382
        %v1435 = vpack.c.b16 %v1385, %v1383
        %v1436 = vpack.c.b16 %v1388, %v1386
        %v1437 = vpack.c.b16 %v1389, %v1387
        %1486 = vmatprep.subr.bf16.mxu0 %v1391
        %1487 = vmatpush1.bf16.msra.mxu0 %v1390
        %1488 = vmatprep.subr.bf16.mxu0 %v1393
        %1489 = vmatpush1.bf16.msra.mxu0 %v1392
        %1490 = vmatprep.subr.bf16.mxu0 %v1395
        %1491 = vmatpush1.bf16.msra.mxu0 %v1394
        %1492 = vmatprep.subr.bf16.mxu0 %v1397
        %1493 = vmatpush1.bf16.msra.mxu0 %v1396
        %1494 = vmatprep.subr.bf16.mxu0 %v1399
        %1495 = vmatpush1.bf16.msra.mxu0 %v1398
        %1496 = vmatprep.subr.bf16.mxu0 %v1401
        %1497 = vmatpush1.bf16.msra.mxu0 %v1400
        %1498 = vmatprep.subr.bf16.mxu0 %v1403
        %1499 = vmatpush1.bf16.msra.mxu0 %v1402
        %1500 = vmatprep.subr.bf16.mxu0 %v1405
        %1501 = vmatpush1.bf16.msra.mxu0 %v1404
        %1502 = vmatprep.subr.bf16.mxu0 %v1407
        %1503 = vmatpush1.bf16.msra.mxu0 %v1406
        %1504 = vmatprep.subr.bf16.mxu0 %v1409
        %1505 = vmatpush1.bf16.msra.mxu0 %v1408
        %1506 = vmatprep.subr.bf16.mxu0 %v1411
        %1507 = vmatpush1.bf16.msra.mxu0 %v1410
        %1508 = vmatprep.subr.bf16.mxu0 %v1413
        %1509 = vmatpush1.bf16.msra.mxu0 %v1412
        %1510 = vmatprep.subr.bf16.mxu0 %v1415
        %1511 = vmatpush1.bf16.msra.mxu0 %v1414
        %1512 = vmatprep.subr.bf16.mxu0 %v1417
        %1513 = vmatpush1.bf16.msra.mxu0 %v1416
        %1514 = vmatprep.subr.bf16.mxu0 %v1419
        %1515 = vmatpush1.bf16.msra.mxu0 %v1418
        %1516 = vmatprep.subr.bf16.mxu0 %v1421
        %1517 = vmatpush1.bf16.msra.mxu0 %v1420
        %1518 = vmatprep.mubr.bf16.mxu0 %v1182
        %1519 = vmatmul.mubr.bf16.gmra.mrb[0].mxu0 %v1165
        %v1520 = vpop.f32.mrb[0].mxu0
        %v1521 = vadd.f32 %v1239, %v1520
        %v1522 = vpop.f32.mrb[0].mxu0
        %v1523 = vadd.f32 %v1243, %v1522
        %v1524 = vpop.f32.mrb[0].mxu0
        %v1525 = vadd.f32 %v1239, %v1524
        %v1526 = vpop.f32.mrb[0].mxu0
        %v1527 = vadd.f32 %v1243, %v1526
        %1528 = vmatprep.mubr.bf16.mxu0 %v1183
        %1529 = vmatmul.mubr.bf16.gmra.mrb[0].mxu0 %v1166
        %v1530 = vpop.f32.mrb[0].mxu0
        %v1531 = vadd.f32 %v1239, %v1530
        %v1532 = vpop.f32.mrb[0].mxu0
        %v1533 = vadd.f32 %v1243, %v1532
        %v1534 = vpop.f32.mrb[0].mxu0
        %v1535 = vadd.f32 %v1239, %v1534
        %v1536 = vpop.f32.mrb[0].mxu0
        %v1537 = vadd.f32 %v1243, %v1536
        %1538 = vdwg.mxu0
        %1539 = vmatprep.subr.bf16.mxu0 %v1423
        %1540 = vmatpush1.bf16.msra.mxu0 %v1422
        %1541 = vmatprep.subr.bf16.mxu0 %v1425
        %1542 = vmatpush1.bf16.msra.mxu0 %v1424
        %1543 = vmatprep.subr.bf16.mxu0 %v1427
        %1544 = vmatpush1.bf16.msra.mxu0 %v1426
        %1545 = vmatprep.subr.bf16.mxu0 %v1429
        %1546 = vmatpush1.bf16.msra.mxu0 %v1428
        %1547 = vmatprep.subr.bf16.mxu0 %v1431
        %1548 = vmatpush1.bf16.msra.mxu0 %v1430
        %1549 = vmatprep.subr.bf16.mxu0 %v1433
        %1550 = vmatpush1.bf16.msra.mxu0 %v1432
        %1551 = vmatprep.subr.bf16.mxu0 %v1435
        %1552 = vmatpush1.bf16.msra.mxu0 %v1434
        %1553 = vmatprep.subr.bf16.mxu0 %v1437
        %1554 = vmatpush1.bf16.msra.mxu0 %v1436
        %1555 = vmatprep.subr.bf16.mxu0 0
        %1556 = vmatpush1.bf16.msra.mxu0 0
        %1557 = vmatprep.subr.bf16.mxu0 0
        %1558 = vmatpush1.bf16.msra.mxu0 0
        %1559 = vmatprep.subr.bf16.mxu0 0
        %1560 = vmatpush1.bf16.msra.mxu0 0
        %1561 = vmatprep.subr.bf16.mxu0 0
        %1562 = vmatpush1.bf16.msra.mxu0 0
        %1563 = vmatprep.subr.bf16.mxu0 0
        %1564 = vmatpush1.bf16.msra.mxu0 0
        %1565 = vmatprep.subr.bf16.mxu0 0
        %1566 = vmatpush1.bf16.msra.mxu0 0
        %1567 = vmatprep.subr.bf16.mxu0 0
        %1568 = vmatpush1.bf16.msra.mxu0 0
        %1569 = vmatprep.subr.bf16.mxu0 0
        %1570 = vmatpush1.bf16.msra.mxu0 0
        %1571 = vmatprep.mubr.bf16.mxu0 0
        %1572 = vmatmul.mubr.bf16.gmra.mrb[0].mxu0 %v1184
        %v1573 = vpop.f32.mrb[0].mxu0
        %v1574 = vadd.f32 %v1521, %v1573
        %v1575 = vpop.f32.mrb[0].mxu0
        %v1576 = vadd.f32 %v1523, %v1575
        %v1577 = vpop.f32.mrb[0].mxu0
        %v1578 = vadd.f32 %v1525, %v1577
        %v1579 = vpop.f32.mrb[0].mxu0
        %v1580 = vadd.f32 %v1527, %v1579
        %1581 = vmatprep.mubr.bf16.mxu0 0
        %1582 = vmatmul.mubr.bf16.gmra.mrb[0].mxu0 %v1185
        %v1583 = vpop.f32.mrb[0].mxu0
        %v1584 = vadd.f32 %v1531, %v1583
        %v1585 = vpop.f32.mrb[0].mxu0
        %v1586 = vadd.f32 %v1533, %v1585
        %v1587 = vpop.f32.mrb[0].mxu0
        %v1588 = vadd.f32 %v1535, %v1587
        %v1589 = vpop.f32.mrb[0].mxu0
        %v1590 = vadd.f32 %v1537, %v1589
        %1591 = vdwg.mxu0
        %v1592 = vxor.u32 %v1576, 2147483648
        %v1593 = vxor.u32 %v1580, 2147483648
        %v1594 = vxor.u32 %v1586, 2147483648
        %v1595 = vxor.u32 %v1590, 2147483648
        %v1596 = vmul.f32 %v1592, 1.442695
        %v1597 = vpow.pop %v1596
        %v1598 = vmul.f32 %v1593, 1.442695
        %v1599 = vpow.pop %v1598
        %v1600 = vmul.f32 %v1594, 1.442695
        %v1601 = vpow.pop %v1600
        %v1602 = vmul.f32 %v1595, 1.442695
        %v1603 = vpow.pop %v1602
        %v1604 = vadd.f32 %v1597, 1.0
        %v1605 = vadd.f32 %v1599, 1.0
        %v1606 = vadd.f32 %v1601, 1.0
        %v1607 = vadd.f32 %v1603, 1.0
        %v1608 = vrcp.pop %v1604
        %v1609 = vmul.f32 1.0, %v1608
        %v1610 = vrcp.pop %v1605
        %v1611 = vmul.f32 1.0, %v1610
        %v1612 = vrcp.pop %v1606
        %v1613 = vmul.f32 1.0, %v1612
        %v1614 = vrcp.pop %v1607
        %v1615 = vmul.f32 1.0, %v1614
        %v1616 = vmul.f32 %v1574, %v1609
        %v1617 = vmul.f32 %v1578, %v1611
        %v1618 = vmul.f32 %v1584, %v1613
        %v1619 = vmul.f32 %v1588, %v1615
        %v1620 = vpack.c.bf16 %v1617, %v1616
        %v1621 = vpack.c.bf16 %v1619, %v1618
        %v1622 = vld [vmem:[%s1000] sm:$0xff]
        %v1623 = vld [vmem:[%s1000 + $0x8] sm:$0xff]
        %v1624 = vld [vmem:[%s1000 + $0x10] sm:$0xff]
        %v1625 = vld [vmem:[%s1000 + $0x18] sm:$0xff]
        %v1626 = vld [vmem:[%s1000 + $0x20] sm:$0xff]
        %v1627 = vld [vmem:[%s1000 + $0x28] sm:$0xff]
        %v1628 = vld [vmem:[%s1000 + $0x30] sm:$0xff]
        %v1629 = vld [vmem:[%s1000 + $0x38] sm:$0xff]
        %v1630 = vld [vmem:[%s1000 + $0x40] sm:$0xff]
        %v1631 = vld [vmem:[%s1000 + $0x48] sm:$0xff]
        %v1632 = vld [vmem:[%s1000 + $0x50] sm:$0xff]
        %v1633 = vld [vmem:[%s1000 + $0x58] sm:$0xff]
        %v1634 = vld [vmem:[%s1000 + $0x60] sm:$0xff]
        %v1635 = vld [vmem:[%s1000 + $0x68] sm:$0xff]
        %v1636 = vld [vmem:[%s1000 + $0x70] sm:$0xff]
        %v1637 = vld [vmem:[%s1000 + $0x78] sm:$0xff]
        %v1638 = vld [vmem:[%s783] sm:$0x3]
        %v1640 = vlaneseq
        %v1641 = vshrl.u32 %v1640, 7
        %v1642 = vsub.s32 0, %v1641
        %v1643 = vrot.slane %v1638, %v1642
        %v1644 = vlaneseq
        %v1645 = vshrl.u32 %v1644, 7
        %v1646 = vsub.s32 1, %v1645
        %v1647 = vrot.slane %v1638, %v1646
        %v1666 = vunpack.c.l.b16 %v1622
        %v1667 = vunpack.c.h.b16 %v1622
        %v1668 = vunpack.c.l.b16 %v1623
        %v1669 = vunpack.c.h.b16 %v1623
        %v1670 = vunpack.c.l.b16 %v1624
        %v1671 = vunpack.c.h.b16 %v1624
        %v1672 = vunpack.c.l.b16 %v1625
        %v1673 = vunpack.c.h.b16 %v1625
        %v1674 = vunpack.c.l.b16 %v1626
        %v1675 = vunpack.c.h.b16 %v1626
        %v1676 = vunpack.c.l.b16 %v1627
        %v1677 = vunpack.c.h.b16 %v1627
        %v1678 = vunpack.c.l.b16 %v1628
        %v1679 = vunpack.c.h.b16 %v1628
        %v1680 = vunpack.c.l.b16 %v1629
        %v1681 = vunpack.c.h.b16 %v1629
        %v1682 = vunpack.c.l.b16 %v1630
        %v1683 = vunpack.c.h.b16 %v1630
        %v1684 = vunpack.c.l.b16 %v1631
        %v1685 = vunpack.c.h.b16 %v1631
        %v1686 = vunpack.c.l.b16 %v1632
        %v1687 = vunpack.c.h.b16 %v1632
        %v1688 = vunpack.c.l.b16 %v1633
        %v1689 = vunpack.c.h.b16 %v1633
        %v1690 = vunpack.c.l.b16 %v1634
        %v1691 = vunpack.c.h.b16 %v1634
        %v1692 = vunpack.c.l.b16 %v1635
        %v1693 = vunpack.c.h.b16 %v1635
        %v1694 = vunpack.c.l.b16 %v1636
        %v1695 = vunpack.c.h.b16 %v1636
        %v1696 = vunpack.c.l.b16 %v1637
        %v1697 = vunpack.c.h.b16 %v1637
        %v1698 = vpack.c.b16 %v1668, %v1666
        %v1699 = vpack.c.b16 %v1669, %v1667
        %v1700 = vpack.c.b16 %v1672, %v1670
        %v1701 = vpack.c.b16 %v1673, %v1671
        %v1702 = vpack.c.b16 %v1676, %v1674
        %v1703 = vpack.c.b16 %v1677, %v1675
        %v1704 = vpack.c.b16 %v1680, %v1678
        %v1705 = vpack.c.b16 %v1681, %v1679
        %v1706 = vpack.c.b16 %v1684, %v1682
        %v1707 = vpack.c.b16 %v1685, %v1683
        %v1708 = vpack.c.b16 %v1688, %v1686
        %v1709 = vpack.c.b16 %v1689, %v1687
        %v1710 = vpack.c.b16 %v1692, %v1690
        %v1711 = vpack.c.b16 %v1693, %v1691
        %v1712 = vpack.c.b16 %v1696, %v1694
        %v1713 = vpack.c.b16 %v1697, %v1695
        %1730 = vmatprep.subr.bf16.mxu0 %v1699
        %1731 = vmatpush1.bf16.msra.mxu0 %v1698
        %1732 = vmatprep.subr.bf16.mxu0 %v1701
        %1733 = vmatpush1.bf16.msra.mxu0 %v1700
        %1734 = vmatprep.subr.bf16.mxu0 %v1703
        %1735 = vmatpush1.bf16.msra.mxu0 %v1702
        %1736 = vmatprep.subr.bf16.mxu0 %v1705
        %1737 = vmatpush1.bf16.msra.mxu0 %v1704
        %1738 = vmatprep.subr.bf16.mxu0 %v1707
        %1739 = vmatpush1.bf16.msra.mxu0 %v1706
        %1740 = vmatprep.subr.bf16.mxu0 %v1709
        %1741 = vmatpush1.bf16.msra.mxu0 %v1708
        %1742 = vmatprep.subr.bf16.mxu0 %v1711
        %1743 = vmatpush1.bf16.msra.mxu0 %v1710
        %1744 = vmatprep.subr.bf16.mxu0 %v1713
        %1745 = vmatpush1.bf16.msra.mxu0 %v1712
        %1746 = vmatprep.subr.bf16.mxu0 0
        %1747 = vmatpush1.bf16.msra.mxu0 0
        %1748 = vmatprep.subr.bf16.mxu0 0
        %1749 = vmatpush1.bf16.msra.mxu0 0
        %1750 = vmatprep.subr.bf16.mxu0 0
        %1751 = vmatpush1.bf16.msra.mxu0 0
        %1752 = vmatprep.subr.bf16.mxu0 0
        %1753 = vmatpush1.bf16.msra.mxu0 0
        %1754 = vmatprep.subr.bf16.mxu0 0
        %1755 = vmatpush1.bf16.msra.mxu0 0
        %1756 = vmatprep.subr.bf16.mxu0 0
        %1757 = vmatpush1.bf16.msra.mxu0 0
        %1758 = vmatprep.subr.bf16.mxu0 0
        %1759 = vmatpush1.bf16.msra.mxu0 0
        %1760 = vmatprep.subr.bf16.mxu0 0
        %1761 = vmatpush1.bf16.msra.mxu0 0
        %1762 = vmatprep.mubr.bf16.mxu0 0
        %1763 = vmatmul.mubr.bf16.gmra.mrb[0].mxu0 %v1620
        %v1764 = vpop.f32.mrb[0].mxu0
        %v1765 = vadd.f32 %v1643, %v1764
        %v1766 = vpop.f32.mrb[0].mxu0
        %v1767 = vadd.f32 %v1647, %v1766
        %v1768 = vpop.f32.mrb[0].mxu0
        %v1769 = vadd.f32 %v1643, %v1768
        %v1770 = vpop.f32.mrb[0].mxu0
        %v1771 = vadd.f32 %v1647, %v1770
        %1772 = vmatprep.mubr.bf16.mxu0 0
        %1773 = vmatmul.mubr.bf16.gmra.mrb[0].mxu0 %v1621
        %v1774 = vpop.f32.mrb[0].mxu0
        %v1775 = vadd.f32 %v1643, %v1774
        %v1776 = vpop.f32.mrb[0].mxu0
        %v1777 = vadd.f32 %v1647, %v1776
        %v1778 = vpop.f32.mrb[0].mxu0
        %v1779 = vadd.f32 %v1643, %v1778
        %v1780 = vpop.f32.mrb[0].mxu0
        %v1781 = vadd.f32 %v1647, %v1780
        %1782 = vdwg.mxu0
        %v1783 = vadd.f32 %v1765, %v1009
        %v1784 = vadd.f32 %v1769, %v1010
        %v1785 = vadd.f32 %v1775, %v1011
        %v1786 = vadd.f32 %v1779, %v1012
        %v1787 = vmul.f32 %v1783, 0.70710677
        %v1788 = vmul.f32 %v1784, 0.70710677
        %v1789 = vmul.f32 %v1785, 0.70710677
        %v1790 = vmul.f32 %v1786, 0.70710677
        %v1791 = vpack.c.bf16 %v1788, %v1787
        %v1792 = vpack.c.bf16 %v1790, %v1789
        %v1793 = vadd.f32 %v1767, %v1009
        %v1794 = vadd.f32 %v1771, %v1010
        %v1795 = vadd.f32 %v1777, %v1011
        %v1796 = vadd.f32 %v1781, %v1012
        %v1797 = vmul.f32 %v1793, 0.70710677
        %v1798 = vmul.f32 %v1794, 0.70710677
        %v1799 = vmul.f32 %v1795, 0.70710677
        %v1800 = vmul.f32 %v1796, 0.70710677
        %v1801 = vpack.c.bf16 %v1798, %v1797
        %v1802 = vpack.c.bf16 %v1800, %v1799
        %v1803 = vld [vmem:[%s983] sm:$0xf]
        %v1804 = vld [vmem:[%s983 + $0x4] sm:$0xf]
        %v1805 = vld [vmem:[%s983 + $0x8] sm:$0xf]
        %v1806 = vld [vmem:[%s983 + $0xc] sm:$0xf]
        %v1807 = vld [vmem:[%s983 + $0x10] sm:$0xf]
        %v1808 = vld [vmem:[%s983 + $0x14] sm:$0xf]
        %v1809 = vld [vmem:[%s983 + $0x18] sm:$0xf]
        %v1810 = vld [vmem:[%s983 + $0x1c] sm:$0xf]
        %v1811 = vld [vmem:[%s983 + $0x20] sm:$0xf]
        %v1812 = vld [vmem:[%s983 + $0x24] sm:$0xf]
        %v1813 = vld [vmem:[%s983 + $0x28] sm:$0xf]
        %v1814 = vld [vmem:[%s983 + $0x2c] sm:$0xf]
        %v1815 = vld [vmem:[%s983 + $0x30] sm:$0xf]
        %v1816 = vld [vmem:[%s983 + $0x34] sm:$0xf]
        %v1817 = vld [vmem:[%s983 + $0x38] sm:$0xf]
        %v1818 = vld [vmem:[%s983 + $0x3c] sm:$0xf]
        %v1819 = vld [vmem:[%s983 + $0x40] sm:$0xf]
        %v1820 = vld [vmem:[%s983 + $0x44] sm:$0xf]
        %v1821 = vld [vmem:[%s983 + $0x48] sm:$0xf]
        %v1822 = vld [vmem:[%s983 + $0x4c] sm:$0xf]
        %v1823 = vld [vmem:[%s983 + $0x50] sm:$0xf]
        %v1824 = vld [vmem:[%s983 + $0x54] sm:$0xf]
        %v1825 = vld [vmem:[%s983 + $0x58] sm:$0xf]
        %v1826 = vld [vmem:[%s983 + $0x5c] sm:$0xf]
        %v1827 = vld [vmem:[%s983 + $0x60] sm:$0xf]
        %v1828 = vld [vmem:[%s983 + $0x64] sm:$0xf]
        %v1829 = vld [vmem:[%s983 + $0x68] sm:$0xf]
        %v1830 = vld [vmem:[%s983 + $0x6c] sm:$0xf]
        %v1831 = vld [vmem:[%s983 + $0x70] sm:$0xf]
        %v1832 = vld [vmem:[%s983 + $0x74] sm:$0xf]
        %v1833 = vld [vmem:[%s983 + $0x78] sm:$0xf]
        %v1834 = vld [vmem:[%s983 + $0x7c] sm:$0xf]
        %v1835 = vld [vmem:[%s989] sm:$0xf]
        %v1836 = vld [vmem:[%s989 + $0x4] sm:$0xf]
        %v1853 = vunpack.c.l.b16 %v1803
        %v1854 = vunpack.c.l.b16 %v1804
        %v1855 = vunpack.c.l.b16 %v1805
        %v1856 = vunpack.c.l.b16 %v1806
        %v1857 = vunpack.c.l.b16 %v1807
        %v1858 = vunpack.c.l.b16 %v1808
        %v1859 = vunpack.c.l.b16 %v1809
        %v1860 = vunpack.c.l.b16 %v1810
        %v1861 = vunpack.c.l.b16 %v1811
        %v1862 = vunpack.c.l.b16 %v1812
        %v1863 = vunpack.c.l.b16 %v1813
        %v1864 = vunpack.c.l.b16 %v1814
        %v1865 = vunpack.c.l.b16 %v1815
        %v1866 = vunpack.c.l.b16 %v1816
        %v1867 = vunpack.c.l.b16 %v1817
        %v1868 = vunpack.c.l.b16 %v1818
        %v1869 = vpack.c.b16 %v1854, %v1853
        %v1870 = vpack.c.b16 %v1856, %v1855
        %v1871 = vpack.c.b16 %v1858, %v1857
        %v1872 = vpack.c.b16 %v1860, %v1859
        %v1873 = vpack.c.b16 %v1862, %v1861
        %v1874 = vpack.c.b16 %v1864, %v1863
        %v1875 = vpack.c.b16 %v1866, %v1865
        %v1876 = vpack.c.b16 %v1868, %v1867
        %1885 = vmatprep.subr.bf16.mxu0 0
        %1886 = vmatpush1.bf16.msra.mxu0 %v1869
        %1887 = vmatprep.subr.bf16.mxu0 0
        %1888 = vmatpush1.bf16.msra.mxu0 %v1870
        %1889 = vmatprep.subr.bf16.mxu0 0
        %1890 = vmatpush1.bf16.msra.mxu0 %v1871
        %1891 = vmatprep.subr.bf16.mxu0 0
        %1892 = vmatpush1.bf16.msra.mxu0 %v1872
        %1893 = vmatprep.subr.bf16.mxu0 0
        %1894 = vmatpush1.bf16.msra.mxu0 %v1873
        %1895 = vmatprep.subr.bf16.mxu0 0
        %1896 = vmatpush1.bf16.msra.mxu0 %v1874
        %1897 = vmatprep.subr.bf16.mxu0 0
        %1898 = vmatpush1.bf16.msra.mxu0 %v1875
        %1899 = vmatprep.subr.bf16.mxu0 0
        %1900 = vmatpush1.bf16.msra.mxu0 %v1876
        %1901 = vmatprep.subr.bf16.mxu0 0
        %1902 = vmatpush1.bf16.msra.mxu0 0
        %1903 = vmatprep.subr.bf16.mxu0 0
        %1904 = vmatpush1.bf16.msra.mxu0 0
        %1905 = vmatprep.subr.bf16.mxu0 0
        %1906 = vmatpush1.bf16.msra.mxu0 0
        %1907 = vmatprep.subr.bf16.mxu0 0
        %1908 = vmatpush1.bf16.msra.mxu0 0
        %1909 = vmatprep.subr.bf16.mxu0 0
        %1910 = vmatpush1.bf16.msra.mxu0 0
        %1911 = vmatprep.subr.bf16.mxu0 0
        %1912 = vmatpush1.bf16.msra.mxu0 0
        %1913 = vmatprep.subr.bf16.mxu0 0
        %1914 = vmatpush1.bf16.msra.mxu0 0
        %1915 = vmatprep.subr.bf16.mxu0 0
        %1916 = vmatpush1.bf16.msra.mxu0 0
        %1917 = vmatprep.mubr.bf16.mxu0 0
        %1918 = vmatmul.mubr.bf16.gmra.mrb[0].mxu0 %v1791
        %v1919 = vpop.f32.mrb[0].mxu0
        %v1920 = vadd.f32 0.0, %v1919
        %v1921 = vpop.f32.mrb[0].mxu0
        %v1922 = vpop.f32.mrb[0].mxu0
        %v1923 = vadd.f32 0.0, %v1922
        %v1924 = vpop.f32.mrb[0].mxu0
        %1925 = vdwg.mxu0
        %v1942 = vunpack.c.l.b16 %v1819
        %v1943 = vunpack.c.l.b16 %v1820
        %v1944 = vunpack.c.l.b16 %v1821
        %v1945 = vunpack.c.l.b16 %v1822
        %v1946 = vunpack.c.l.b16 %v1823
        %v1947 = vunpack.c.l.b16 %v1824
        %v1948 = vunpack.c.l.b16 %v1825
        %v1949 = vunpack.c.l.b16 %v1826
        %v1950 = vunpack.c.l.b16 %v1827
        %v1951 = vunpack.c.l.b16 %v1828
        %v1952 = vunpack.c.l.b16 %v1829
        %v1953 = vunpack.c.l.b16 %v1830
        %v1954 = vunpack.c.l.b16 %v1831
        %v1955 = vunpack.c.l.b16 %v1832
        %v1956 = vunpack.c.l.b16 %v1833
        %v1957 = vunpack.c.l.b16 %v1834
        %v1958 = vpack.c.b16 %v1943, %v1942
        %v1959 = vpack.c.b16 %v1945, %v1944
        %v1960 = vpack.c.b16 %v1947, %v1946
        %v1961 = vpack.c.b16 %v1949, %v1948
        %v1962 = vpack.c.b16 %v1951, %v1950
        %v1963 = vpack.c.b16 %v1953, %v1952
        %v1964 = vpack.c.b16 %v1955, %v1954
        %v1965 = vpack.c.b16 %v1957, %v1956
        %1974 = vmatprep.subr.bf16.mxu0 0
        %1975 = vmatpush1.bf16.msra.mxu0 %v1958
        %1976 = vmatprep.subr.bf16.mxu0 0
        %1977 = vmatpush1.bf16.msra.mxu0 %v1959
        %1978 = vmatprep.subr.bf16.mxu0 0
        %1979 = vmatpush1.bf16.msra.mxu0 %v1960
        %1980 = vmatprep.subr.bf16.mxu0 0
        %1981 = vmatpush1.bf16.msra.mxu0 %v1961
        %1982 = vmatprep.subr.bf16.mxu0 0
        %1983 = vmatpush1.bf16.msra.mxu0 %v1962
        %1984 = vmatprep.subr.bf16.mxu0 0
        %1985 = vmatpush1.bf16.msra.mxu0 %v1963
        %1986 = vmatprep.subr.bf16.mxu0 0
        %1987 = vmatpush1.bf16.msra.mxu0 %v1964
        %1988 = vmatprep.subr.bf16.mxu0 0
        %1989 = vmatpush1.bf16.msra.mxu0 %v1965
        %1990 = vmatprep.subr.bf16.mxu0 0
        %1991 = vmatpush1.bf16.msra.mxu0 0
        %1992 = vmatprep.subr.bf16.mxu0 0
        %1993 = vmatpush1.bf16.msra.mxu0 0
        %1994 = vmatprep.subr.bf16.mxu0 0
        %1995 = vmatpush1.bf16.msra.mxu0 0
        %1996 = vmatprep.subr.bf16.mxu0 0
        %1997 = vmatpush1.bf16.msra.mxu0 0
        %1998 = vmatprep.subr.bf16.mxu0 0
        %1999 = vmatpush1.bf16.msra.mxu0 0
        %2000 = vmatprep.subr.bf16.mxu0 0
        %2001 = vmatpush1.bf16.msra.mxu0 0
        %2002 = vmatprep.subr.bf16.mxu0 0
        %2003 = vmatpush1.bf16.msra.mxu0 0
        %2004 = vmatprep.subr.bf16.mxu0 0
        %2005 = vmatpush1.bf16.msra.mxu0 0
        %2006 = vmatprep.mubr.bf16.mxu0 0
        %2007 = vmatmul.mubr.bf16.gmra.mrb[0].mxu0 %v1792
        %v2008 = vpop.f32.mrb[0].mxu0
        %v2009 = vadd.f32 0.0, %v2008
        %v2010 = vpop.f32.mrb[0].mxu0
        %v2011 = vpop.f32.mrb[0].mxu0
        %v2012 = vadd.f32 0.0, %v2011
        %v2013 = vpop.f32.mrb[0].mxu0
        %2014 = vdwg.mxu0
        %vm2015 = vcmask 64512
        %v2016 = vsel %vm2015, %v1920, -inf
        %2017 = vmax.xlane.f32.xlu0 %v2016
        %v2018 = vpop.xlane.xlu0 %2017
        %v2019 = vsel %vm2015, %v1923, -inf
        %2020 = vmax.xlane.f32.xlu0 %v2019
        %v2021 = vpop.xlane.xlu0 %2020
        %v2022 = vsel %vm2015, %v2009, -inf
        %2023 = vmax.xlane.f32.xlu0 %v2022
        %v2024 = vpop.xlane.xlu0 %2023
        %v2025 = vsel %vm2015, %v2012, -inf
        %2026 = vmax.xlane.f32.xlu0 %v2025
        %v2027 = vpop.xlane.xlu0 %2026
        %v2028 = vsub.f32 %v1920, %v2018
        %v2029 = vsub.f32 %v1923, %v2021
        %v2030 = vsub.f32 %v2009, %v2024
        %v2031 = vsub.f32 %v2012, %v2027
        %v2032 = vmul.f32 %v2028, 1.442695
        %v2033 = vpow.pop %v2032
        %v2034 = vmul.f32 %v2029, 1.442695
        %v2035 = vpow.pop %v2034
        %v2036 = vmul.f32 %v2030, 1.442695
        %v2037 = vpow.pop %v2036
        %v2038 = vmul.f32 %v2031, 1.442695
        %v2039 = vpow.pop %v2038
        %v2040 = vsel %vm2015, %v2033, 0.0
        %2041 = vadd.xlane.f32.xlu0 %v2040
        %v2042 = vpop.xlane.xlu0 %2041
        %v2043 = vsel %vm2015, %v2035, 0.0
        %2044 = vadd.xlane.f32.xlu0 %v2043
        %v2045 = vpop.xlane.xlu0 %2044
        %v2046 = vsel %vm2015, %v2037, 0.0
        %2047 = vadd.xlane.f32.xlu0 %v2046
        %v2048 = vpop.xlane.xlu0 %2047
        %v2049 = vsel %vm2015, %v2039, 0.0
        %2050 = vadd.xlane.f32.xlu0 %v2049
        %v2051 = vpop.xlane.xlu0 %2050
        %v2052 = vrcp.pop %v2042
        %v2053 = vrcp.pop %v2045
        %v2054 = vrcp.pop %v2048
        %v2055 = vrcp.pop %v2051
        %v2056 = vmul.f32 %v2033, %v2052
        %v2057 = vmul.f32 %v2035, %v2053
        %v2058 = vmul.f32 %v2037, %v2054
        %v2059 = vmul.f32 %v2039, %v2055
        %v2060 = vpack.c.bf16 %v2057, %v2056
        %v2061 = vpack.c.bf16 %v2059, %v2058
        %v2063 = vsel %vm2015, %v2060, 0
        %vm2065 = vcmask 1043456
        %v2067 = vsel %vm2065, %v1835, 0
        %2069 = vmatprep.subr.bf16.mxu0 0
        %2070 = vmatpush1.bf16.msra.mxu0 %v2067
        %2071 = vmatprep.subr.bf16.mxu0 0
        %2072 = vmatpush1.bf16.msra.mxu0 0
        %2073 = vmatprep.subr.bf16.mxu0 0
        %2074 = vmatpush1.bf16.msra.mxu0 0
        %2075 = vmatprep.subr.bf16.mxu0 0
        %2076 = vmatpush1.bf16.msra.mxu0 0
        %2077 = vmatprep.subr.bf16.mxu0 0
        %2078 = vmatpush1.bf16.msra.mxu0 0
        %2079 = vmatprep.subr.bf16.mxu0 0
        %2080 = vmatpush1.bf16.msra.mxu0 0
        %2081 = vmatprep.subr.bf16.mxu0 0
        %2082 = vmatpush1.bf16.msra.mxu0 0
        %2083 = vmatprep.subr.bf16.mxu0 0
        %2084 = vmatpush1.bf16.msra.mxu0 0
        %2085 = vmatprep.subr.bf16.mxu0 0
        %2086 = vmatpush1.bf16.msra.mxu0 0
        %2087 = vmatprep.subr.bf16.mxu0 0
        %2088 = vmatpush1.bf16.msra.mxu0 0
        %2089 = vmatprep.subr.bf16.mxu0 0
        %2090 = vmatpush1.bf16.msra.mxu0 0
        %2091 = vmatprep.subr.bf16.mxu0 0
        %2092 = vmatpush1.bf16.msra.mxu0 0
        %2093 = vmatprep.subr.bf16.mxu0 0
        %2094 = vmatpush1.bf16.msra.mxu0 0
        %2095 = vmatprep.subr.bf16.mxu0 0
        %2096 = vmatpush1.bf16.msra.mxu0 0
        %2097 = vmatprep.subr.bf16.mxu0 0
        %2098 = vmatpush1.bf16.msra.mxu0 0
        %2099 = vmatprep.subr.bf16.mxu0 0
        %2100 = vmatpush1.bf16.msra.mxu0 0
        %2101 = vmatprep.mubr.bf16.mxu0 0
        %2102 = vmatmul.mubr.bf16.gmra.mrb[0].mxu0 %v2063
        %v2103 = vpop.f32.mrb[0].mxu0
        %v2104 = vadd.f32 0.0, %v2103
        %v2105 = vpop.f32.mrb[0].mxu0
        %v2106 = vpop.f32.mrb[0].mxu0
        %v2107 = vadd.f32 0.0, %v2106
        %v2108 = vpop.f32.mrb[0].mxu0
        %2109 = vdwg.mxu0
        %v2111 = vsel %vm2015, %v2061, 0
        %v2114 = vsel %vm2065, %v1836, 0
        %2116 = vmatprep.subr.bf16.mxu0 0
        %2117 = vmatpush1.bf16.msra.mxu0 %v2114
        %2118 = vmatprep.subr.bf16.mxu0 0
        %2119 = vmatpush1.bf16.msra.mxu0 0
        %2120 = vmatprep.subr.bf16.mxu0 0
        %2121 = vmatpush1.bf16.msra.mxu0 0
        %2122 = vmatprep.subr.bf16.mxu0 0
        %2123 = vmatpush1.bf16.msra.mxu0 0
        %2124 = vmatprep.subr.bf16.mxu0 0
        %2125 = vmatpush1.bf16.msra.mxu0 0
        %2126 = vmatprep.subr.bf16.mxu0 0
        %2127 = vmatpush1.bf16.msra.mxu0 0
        %2128 = vmatprep.subr.bf16.mxu0 0
        %2129 = vmatpush1.bf16.msra.mxu0 0
        %2130 = vmatprep.subr.bf16.mxu0 0
        %2131 = vmatpush1.bf16.msra.mxu0 0
        %2132 = vmatprep.subr.bf16.mxu0 0
        %2133 = vmatpush1.bf16.msra.mxu0 0
        %2134 = vmatprep.subr.bf16.mxu0 0
        %2135 = vmatpush1.bf16.msra.mxu0 0
        %2136 = vmatprep.subr.bf16.mxu0 0
        %2137 = vmatpush1.bf16.msra.mxu0 0
        %2138 = vmatprep.subr.bf16.mxu0 0
        %2139 = vmatpush1.bf16.msra.mxu0 0
        %2140 = vmatprep.subr.bf16.mxu0 0
        %2141 = vmatpush1.bf16.msra.mxu0 0
        %2142 = vmatprep.subr.bf16.mxu0 0
        %2143 = vmatpush1.bf16.msra.mxu0 0
        %2144 = vmatprep.subr.bf16.mxu0 0
        %2145 = vmatpush1.bf16.msra.mxu0 0
        %2146 = vmatprep.subr.bf16.mxu0 0
        %2147 = vmatpush1.bf16.msra.mxu0 0
        %2148 = vmatprep.mubr.bf16.mxu0 0
        %2149 = vmatmul.mubr.bf16.gmra.mrb[0].mxu0 %v2111
        %v2150 = vpop.f32.mrb[0].mxu0
        %v2151 = vadd.f32 0.0, %v2150
        %v2152 = vpop.f32.mrb[0].mxu0
        %v2153 = vpop.f32.mrb[0].mxu0
        %v2154 = vadd.f32 0.0, %v2153
        %v2155 = vpop.f32.mrb[0].mxu0
        %2156 = vdwg.mxu0
        %v2157 = vmul.f32 %v2104, 2.828427
        %v2158 = vmul.f32 %v2107, 2.828427
        %v2159 = vmul.f32 %v2151, 2.828427
        %v2160 = vmul.f32 %v2154, 2.828427
        %v2161 = vld [vmem:[%s969] sm:$0xf]
        %v2162 = vld [vmem:[%s969 + $0x4] sm:$0xf]
        %v2163 = vld [vmem:[%s969 + $0x8] sm:$0xf]
        %v2164 = vld [vmem:[%s969 + $0xc] sm:$0xf]
        %v2165 = vld [vmem:[%s969 + $0x10] sm:$0xf]
        %v2166 = vld [vmem:[%s969 + $0x14] sm:$0xf]
        %v2167 = vld [vmem:[%s969 + $0x18] sm:$0xf]
        %v2168 = vld [vmem:[%s969 + $0x1c] sm:$0xf]
        %v2169 = vld [vmem:[%s969 + $0x20] sm:$0xf]
        %v2170 = vld [vmem:[%s969 + $0x24] sm:$0xf]
        %v2171 = vld [vmem:[%s969 + $0x28] sm:$0xf]
        %v2172 = vld [vmem:[%s969 + $0x2c] sm:$0xf]
        %v2173 = vld [vmem:[%s969 + $0x30] sm:$0xf]
        %v2174 = vld [vmem:[%s969 + $0x34] sm:$0xf]
        %v2175 = vld [vmem:[%s969 + $0x38] sm:$0xf]
        %v2176 = vld [vmem:[%s969 + $0x3c] sm:$0xf]
        %v2177 = vld [vmem:[%s969 + $0x40] sm:$0xf]
        %v2178 = vld [vmem:[%s969 + $0x44] sm:$0xf]
        %v2179 = vld [vmem:[%s969 + $0x48] sm:$0xf]
        %v2180 = vld [vmem:[%s969 + $0x4c] sm:$0xf]
        %v2181 = vld [vmem:[%s969 + $0x50] sm:$0xf]
        %v2182 = vld [vmem:[%s969 + $0x54] sm:$0xf]
        %v2183 = vld [vmem:[%s969 + $0x58] sm:$0xf]
        %v2184 = vld [vmem:[%s969 + $0x5c] sm:$0xf]
        %v2185 = vld [vmem:[%s969 + $0x60] sm:$0xf]
        %v2186 = vld [vmem:[%s969 + $0x64] sm:$0xf]
        %v2187 = vld [vmem:[%s969 + $0x68] sm:$0xf]
        %v2188 = vld [vmem:[%s969 + $0x6c] sm:$0xf]
        %v2189 = vld [vmem:[%s969 + $0x70] sm:$0xf]
        %v2190 = vld [vmem:[%s969 + $0x74] sm:$0xf]
        %v2191 = vld [vmem:[%s969 + $0x78] sm:$0xf]
        %v2192 = vld [vmem:[%s969 + $0x7c] sm:$0xf]
        %v2193 = vld [vmem:[%s976] sm:$0xf]
        %v2194 = vld [vmem:[%s976 + $0x4] sm:$0xf]
        %v2195 = vld [vmem:[%s976 + $0x8] sm:$0xf]
        %v2196 = vld [vmem:[%s976 + $0xc] sm:$0xf]
        %v2213 = vunpack.c.l.b16 %v2161
        %v2214 = vunpack.c.l.b16 %v2162
        %v2215 = vunpack.c.l.b16 %v2163
        %v2216 = vunpack.c.l.b16 %v2164
        %v2217 = vunpack.c.l.b16 %v2165
        %v2218 = vunpack.c.l.b16 %v2166
        %v2219 = vunpack.c.l.b16 %v2167
        %v2220 = vunpack.c.l.b16 %v2168
        %v2221 = vunpack.c.l.b16 %v2169
        %v2222 = vunpack.c.l.b16 %v2170
        %v2223 = vunpack.c.l.b16 %v2171
        %v2224 = vunpack.c.l.b16 %v2172
        %v2225 = vunpack.c.l.b16 %v2173
        %v2226 = vunpack.c.l.b16 %v2174
        %v2227 = vunpack.c.l.b16 %v2175
        %v2228 = vunpack.c.l.b16 %v2176
        %v2229 = vpack.c.b16 %v2214, %v2213
        %v2230 = vpack.c.b16 %v2216, %v2215
        %v2231 = vpack.c.b16 %v2218, %v2217
        %v2232 = vpack.c.b16 %v2220, %v2219
        %v2233 = vpack.c.b16 %v2222, %v2221
        %v2234 = vpack.c.b16 %v2224, %v2223
        %v2235 = vpack.c.b16 %v2226, %v2225
        %v2236 = vpack.c.b16 %v2228, %v2227
        %2245 = vmatprep.subr.bf16.mxu0 0
        %2246 = vmatpush1.bf16.msra.mxu0 %v2229
        %2247 = vmatprep.subr.bf16.mxu0 0
        %2248 = vmatpush1.bf16.msra.mxu0 %v2230
        %2249 = vmatprep.subr.bf16.mxu0 0
        %2250 = vmatpush1.bf16.msra.mxu0 %v2231
        %2251 = vmatprep.subr.bf16.mxu0 0
        %2252 = vmatpush1.bf16.msra.mxu0 %v2232
        %2253 = vmatprep.subr.bf16.mxu0 0
        %2254 = vmatpush1.bf16.msra.mxu0 %v2233
        %2255 = vmatprep.subr.bf16.mxu0 0
        %2256 = vmatpush1.bf16.msra.mxu0 %v2234
        %2257 = vmatprep.subr.bf16.mxu0 0
        %2258 = vmatpush1.bf16.msra.mxu0 %v2235
        %2259 = vmatprep.subr.bf16.mxu0 0
        %2260 = vmatpush1.bf16.msra.mxu0 %v2236
        %2261 = vmatprep.subr.bf16.mxu0 0
        %2262 = vmatpush1.bf16.msra.mxu0 0
        %2263 = vmatprep.subr.bf16.mxu0 0
        %2264 = vmatpush1.bf16.msra.mxu0 0
        %2265 = vmatprep.subr.bf16.mxu0 0
        %2266 = vmatpush1.bf16.msra.mxu0 0
        %2267 = vmatprep.subr.bf16.mxu0 0
        %2268 = vmatpush1.bf16.msra.mxu0 0
        %2269 = vmatprep.subr.bf16.mxu0 0
        %2270 = vmatpush1.bf16.msra.mxu0 0
        %2271 = vmatprep.subr.bf16.mxu0 0
        %2272 = vmatpush1.bf16.msra.mxu0 0
        %2273 = vmatprep.subr.bf16.mxu0 0
        %2274 = vmatpush1.bf16.msra.mxu0 0
        %2275 = vmatprep.subr.bf16.mxu0 0
        %2276 = vmatpush1.bf16.msra.mxu0 0
        %2277 = vmatprep.mubr.bf16.mxu0 0
        %2278 = vmatmul.mubr.bf16.gmra.mrb[0].mxu0 %v1801
        %v2279 = vpop.f32.mrb[0].mxu0
        %v2280 = vadd.f32 0.0, %v2279
        %v2281 = vpop.f32.mrb[0].mxu0
        %v2282 = vpop.f32.mrb[0].mxu0
        %v2283 = vadd.f32 0.0, %v2282
        %v2284 = vpop.f32.mrb[0].mxu0
        %2285 = vdwg.mxu0
        %v2302 = vunpack.c.l.b16 %v2177
        %v2303 = vunpack.c.l.b16 %v2178
        %v2304 = vunpack.c.l.b16 %v2179
        %v2305 = vunpack.c.l.b16 %v2180
        %v2306 = vunpack.c.l.b16 %v2181
        %v2307 = vunpack.c.l.b16 %v2182
        %v2308 = vunpack.c.l.b16 %v2183
        %v2309 = vunpack.c.l.b16 %v2184
        %v2310 = vunpack.c.l.b16 %v2185
        %v2311 = vunpack.c.l.b16 %v2186
        %v2312 = vunpack.c.l.b16 %v2187
        %v2313 = vunpack.c.l.b16 %v2188
        %v2314 = vunpack.c.l.b16 %v2189
        %v2315 = vunpack.c.l.b16 %v2190
        %v2316 = vunpack.c.l.b16 %v2191
        %v2317 = vunpack.c.l.b16 %v2192
        %v2318 = vpack.c.b16 %v2303, %v2302
        %v2319 = vpack.c.b16 %v2305, %v2304
        %v2320 = vpack.c.b16 %v2307, %v2306
        %v2321 = vpack.c.b16 %v2309, %v2308
        %v2322 = vpack.c.b16 %v2311, %v2310
        %v2323 = vpack.c.b16 %v2313, %v2312
        %v2324 = vpack.c.b16 %v2315, %v2314
        %v2325 = vpack.c.b16 %v2317, %v2316
        %2334 = vmatprep.subr.bf16.mxu0 0
        %2335 = vmatpush1.bf16.msra.mxu0 %v2318
        %2336 = vmatprep.subr.bf16.mxu0 0
        %2337 = vmatpush1.bf16.msra.mxu0 %v2319
        %2338 = vmatprep.subr.bf16.mxu0 0
        %2339 = vmatpush1.bf16.msra.mxu0 %v2320
        %2340 = vmatprep.subr.bf16.mxu0 0
        %2341 = vmatpush1.bf16.msra.mxu0 %v2321
        %2342 = vmatprep.subr.bf16.mxu0 0
        %2343 = vmatpush1.bf16.msra.mxu0 %v2322
        %2344 = vmatprep.subr.bf16.mxu0 0
        %2345 = vmatpush1.bf16.msra.mxu0 %v2323
        %2346 = vmatprep.subr.bf16.mxu0 0
        %2347 = vmatpush1.bf16.msra.mxu0 %v2324
        %2348 = vmatprep.subr.bf16.mxu0 0
        %2349 = vmatpush1.bf16.msra.mxu0 %v2325
        %2350 = vmatprep.subr.bf16.mxu0 0
        %2351 = vmatpush1.bf16.msra.mxu0 0
        %2352 = vmatprep.subr.bf16.mxu0 0
        %2353 = vmatpush1.bf16.msra.mxu0 0
        %2354 = vmatprep.subr.bf16.mxu0 0
        %2355 = vmatpush1.bf16.msra.mxu0 0
        %2356 = vmatprep.subr.bf16.mxu0 0
        %2357 = vmatpush1.bf16.msra.mxu0 0
        %2358 = vmatprep.subr.bf16.mxu0 0
        %2359 = vmatpush1.bf16.msra.mxu0 0
        %2360 = vmatprep.subr.bf16.mxu0 0
        %2361 = vmatpush1.bf16.msra.mxu0 0
        %2362 = vmatprep.subr.bf16.mxu0 0
        %2363 = vmatpush1.bf16.msra.mxu0 0
        %2364 = vmatprep.subr.bf16.mxu0 0
        %2365 = vmatpush1.bf16.msra.mxu0 0
        %2366 = vmatprep.mubr.bf16.mxu0 0
        %2367 = vmatmul.mubr.bf16.gmra.mrb[0].mxu0 %v1802
        %v2368 = vpop.f32.mrb[0].mxu0
        %v2369 = vadd.f32 0.0, %v2368
        %v2370 = vpop.f32.mrb[0].mxu0
        %v2371 = vpop.f32.mrb[0].mxu0
        %v2372 = vadd.f32 0.0, %v2371
        %v2373 = vpop.f32.mrb[0].mxu0
        %2374 = vdwg.mxu0
        %vm2375 = vcmask 130048
        %v2376 = vsel %vm2375, %v2280, -inf
        %2377 = vmax.xlane.f32.xlu0 %v2376
        %v2378 = vpop.xlane.xlu0 %2377
        %v2379 = vsel %vm2375, %v2283, -inf
        %2380 = vmax.xlane.f32.xlu0 %v2379
        %v2381 = vpop.xlane.xlu0 %2380
        %v2382 = vsel %vm2375, %v2369, -inf
        %2383 = vmax.xlane.f32.xlu0 %v2382
        %v2384 = vpop.xlane.xlu0 %2383
        %v2385 = vsel %vm2375, %v2372, -inf
        %2386 = vmax.xlane.f32.xlu0 %v2385
        %v2387 = vpop.xlane.xlu0 %2386
        %v2388 = vsub.f32 %v2280, %v2378
        %v2389 = vsub.f32 %v2283, %v2381
        %v2390 = vsub.f32 %v2369, %v2384
        %v2391 = vsub.f32 %v2372, %v2387
        %v2392 = vmul.f32 %v2388, 1.442695
        %v2393 = vpow.pop %v2392
        %v2394 = vmul.f32 %v2389, 1.442695
        %v2395 = vpow.pop %v2394
        %v2396 = vmul.f32 %v2390, 1.442695
        %v2397 = vpow.pop %v2396
        %v2398 = vmul.f32 %v2391, 1.442695
        %v2399 = vpow.pop %v2398
        %v2400 = vsel %vm2375, %v2393, 0.0
        %2401 = vadd.xlane.f32.xlu0 %v2400
        %v2402 = vpop.xlane.xlu0 %2401
        %v2403 = vsel %vm2375, %v2395, 0.0
        %2404 = vadd.xlane.f32.xlu0 %v2403
        %v2405 = vpop.xlane.xlu0 %2404
        %v2406 = vsel %vm2375, %v2397, 0.0
        %2407 = vadd.xlane.f32.xlu0 %v2406
        %v2408 = vpop.xlane.xlu0 %2407
        %v2409 = vsel %vm2375, %v2399, 0.0
        %2410 = vadd.xlane.f32.xlu0 %v2409
        %v2411 = vpop.xlane.xlu0 %2410
        %v2412 = vrcp.pop %v2402
        %v2413 = vrcp.pop %v2405
        %v2414 = vrcp.pop %v2408
        %v2415 = vrcp.pop %v2411
        %v2416 = vmul.f32 %v2393, %v2412
        %v2417 = vmul.f32 %v2395, %v2413
        %v2418 = vmul.f32 %v2397, %v2414
        %v2419 = vmul.f32 %v2399, %v2415
        %v2420 = vpack.c.bf16 %v2417, %v2416
        %v2421 = vpack.c.bf16 %v2419, %v2418
        %v2424 = vunpack.c.l.b16 %v2193
        %v2425 = vunpack.c.l.b16 %v2194
        %v2426 = vpack.c.b16 %v2425, %v2424
        %v2429 = vsel %vm2375, %v2420, 0
        %2431 = vmatprep.subr.bf16.mxu0 0
        %2432 = vmatpush1.bf16.msra.mxu0 %v2426
        %2433 = vmatprep.subr.bf16.mxu0 0
        %2434 = vmatpush1.bf16.msra.mxu0 0
        %2435 = vmatprep.subr.bf16.mxu0 0
        %2436 = vmatpush1.bf16.msra.mxu0 0
        %2437 = vmatprep.subr.bf16.mxu0 0
        %2438 = vmatpush1.bf16.msra.mxu0 0
        %2439 = vmatprep.subr.bf16.mxu0 0
        %2440 = vmatpush1.bf16.msra.mxu0 0
        %2441 = vmatprep.subr.bf16.mxu0 0
        %2442 = vmatpush1.bf16.msra.mxu0 0
        %2443 = vmatprep.subr.bf16.mxu0 0
        %2444 = vmatpush1.bf16.msra.mxu0 0
        %2445 = vmatprep.subr.bf16.mxu0 0
        %2446 = vmatpush1.bf16.msra.mxu0 0
        %2447 = vmatprep.subr.bf16.mxu0 0
        %2448 = vmatpush1.bf16.msra.mxu0 0
        %2449 = vmatprep.subr.bf16.mxu0 0
        %2450 = vmatpush1.bf16.msra.mxu0 0
        %2451 = vmatprep.subr.bf16.mxu0 0
        %2452 = vmatpush1.bf16.msra.mxu0 0
        %2453 = vmatprep.subr.bf16.mxu0 0
        %2454 = vmatpush1.bf16.msra.mxu0 0
        %2455 = vmatprep.subr.bf16.mxu0 0
        %2456 = vmatpush1.bf16.msra.mxu0 0
        %2457 = vmatprep.subr.bf16.mxu0 0
        %2458 = vmatpush1.bf16.msra.mxu0 0
        %2459 = vmatprep.subr.bf16.mxu0 0
        %2460 = vmatpush1.bf16.msra.mxu0 0
        %2461 = vmatprep.subr.bf16.mxu0 0
        %2462 = vmatpush1.bf16.msra.mxu0 0
        %2463 = vmatprep.mubr.bf16.mxu0 0
        %2464 = vmatmul.mubr.bf16.gmra.mrb[0].mxu0 %v2429
        %v2465 = vpop.f32.mrb[0].mxu0
        %v2466 = vadd.f32 0.0, %v2465
        %v2467 = vpop.f32.mrb[0].mxu0
        %v2468 = vpop.f32.mrb[0].mxu0
        %v2469 = vadd.f32 0.0, %v2468
        %v2470 = vpop.f32.mrb[0].mxu0
        %2471 = vdwg.mxu0
        %v2474 = vunpack.c.l.b16 %v2195
        %v2475 = vunpack.c.l.b16 %v2196
        %v2476 = vpack.c.b16 %v2475, %v2474
        %v2479 = vsel %vm2375, %v2421, 0
        %2481 = vmatprep.subr.bf16.mxu0 0
        %2482 = vmatpush1.bf16.msra.mxu0 %v2476
        %2483 = vmatprep.subr.bf16.mxu0 0
        %2484 = vmatpush1.bf16.msra.mxu0 0
        %2485 = vmatprep.subr.bf16.mxu0 0
        %2486 = vmatpush1.bf16.msra.mxu0 0
        %2487 = vmatprep.subr.bf16.mxu0 0
        %2488 = vmatpush1.bf16.msra.mxu0 0
        %2489 = vmatprep.subr.bf16.mxu0 0
        %2490 = vmatpush1.bf16.msra.mxu0 0
        %2491 = vmatprep.subr.bf16.mxu0 0
        %2492 = vmatpush1.bf16.msra.mxu0 0
        %2493 = vmatprep.subr.bf16.mxu0 0
        %2494 = vmatpush1.bf16.msra.mxu0 0
        %2495 = vmatprep.subr.bf16.mxu0 0
        %2496 = vmatpush1.bf16.msra.mxu0 0
        %2497 = vmatprep.subr.bf16.mxu0 0
        %2498 = vmatpush1.bf16.msra.mxu0 0
        %2499 = vmatprep.subr.bf16.mxu0 0
        %2500 = vmatpush1.bf16.msra.mxu0 0
        %2501 = vmatprep.subr.bf16.mxu0 0
        %2502 = vmatpush1.bf16.msra.mxu0 0
        %2503 = vmatprep.subr.bf16.mxu0 0
        %2504 = vmatpush1.bf16.msra.mxu0 0
        %2505 = vmatprep.subr.bf16.mxu0 0
        %2506 = vmatpush1.bf16.msra.mxu0 0
        %2507 = vmatprep.subr.bf16.mxu0 0
        %2508 = vmatpush1.bf16.msra.mxu0 0
        %2509 = vmatprep.subr.bf16.mxu0 0
        %2510 = vmatpush1.bf16.msra.mxu0 0
        %2511 = vmatprep.subr.bf16.mxu0 0
        %2512 = vmatpush1.bf16.msra.mxu0 0
        %2513 = vmatprep.mubr.bf16.mxu0 0
        %2514 = vmatmul.mubr.bf16.gmra.mrb[0].mxu0 %v2479
        %v2515 = vpop.f32.mrb[0].mxu0
        %v2516 = vadd.f32 0.0, %v2515
        %v2517 = vpop.f32.mrb[0].mxu0
        %v2518 = vpop.f32.mrb[0].mxu0
        %v2519 = vadd.f32 0.0, %v2518
        %v2520 = vpop.f32.mrb[0].mxu0
        %2521 = vdwg.mxu0
        %v2522 = vmul.f32 %v2466, 4.0
        %v2523 = vmul.f32 %v2469, 4.0
        %v2524 = vmul.f32 %v2516, 4.0
        %v2525 = vmul.f32 %v2519, 4.0
        %v2526 = vpack.c.bf16 %v2158, %v2157
        %v2527 = vpack.c.bf16 %v2160, %v2159
        %v2528 = vld [vmem:[%s792] sm:$0xf]
        %v2529 = vld [vmem:[%s792 + $0x4] sm:$0xf]
        %v2530 = vld [vmem:[%s792 + $0x8] sm:$0xf]
        %v2531 = vld [vmem:[%s792 + $0xc] sm:$0xf]
        %v2532 = vld [vmem:[%s792 + $0x10] sm:$0xf]
        %v2533 = vld [vmem:[%s792 + $0x14] sm:$0xf]
        %v2534 = vld [vmem:[%s792 + $0x18] sm:$0xf]
        %v2535 = vld [vmem:[%s792 + $0x1c] sm:$0xf]
        %v2536 = vld [vmem:[%s792 + $0x20] sm:$0xf]
        %v2537 = vld [vmem:[%s792 + $0x24] sm:$0xf]
        %v2538 = vld [vmem:[%s792 + $0x28] sm:$0xf]
        %v2539 = vld [vmem:[%s792 + $0x2c] sm:$0xf]
        %v2540 = vld [vmem:[%s792 + $0x30] sm:$0xf]
        %v2541 = vld [vmem:[%s792 + $0x34] sm:$0xf]
        %v2542 = vld [vmem:[%s792 + $0x38] sm:$0xf]
        %v2543 = vld [vmem:[%s792 + $0x3c] sm:$0xf]
        %v2544 = vld [vmem:[%s800] sm:$0x1]
        %v2546 = vlaneseq
        %v2547 = vshrl.u32 %v2546, 7
        %v2548 = vsub.s32 0, %v2547
        %v2549 = vrot.slane %v2544, %v2548
        %v2567 = vunpack.c.l.b16 %v2528
        %v2568 = vunpack.c.l.b16 %v2529
        %v2569 = vunpack.c.l.b16 %v2530
        %v2570 = vunpack.c.l.b16 %v2531
        %v2571 = vunpack.c.l.b16 %v2532
        %v2572 = vunpack.c.l.b16 %v2533
        %v2573 = vunpack.c.l.b16 %v2534
        %v2574 = vunpack.c.l.b16 %v2535
        %v2575 = vunpack.c.l.b16 %v2536
        %v2576 = vunpack.c.l.b16 %v2537
        %v2577 = vunpack.c.l.b16 %v2538
        %v2578 = vunpack.c.l.b16 %v2539
        %v2579 = vunpack.c.l.b16 %v2540
        %v2580 = vunpack.c.l.b16 %v2541
        %v2581 = vunpack.c.l.b16 %v2542
        %v2582 = vunpack.c.l.b16 %v2543
        %v2583 = vpack.c.b16 %v2568, %v2567
        %v2584 = vpack.c.b16 %v2570, %v2569
        %v2585 = vpack.c.b16 %v2572, %v2571
        %v2586 = vpack.c.b16 %v2574, %v2573
        %v2587 = vpack.c.b16 %v2576, %v2575
        %v2588 = vpack.c.b16 %v2578, %v2577
        %v2589 = vpack.c.b16 %v2580, %v2579
        %v2590 = vpack.c.b16 %v2582, %v2581
        %2599 = vmatprep.subr.bf16.mxu0 0
        %2600 = vmatpush1.bf16.msra.mxu0 %v2583
        %2601 = vmatprep.subr.bf16.mxu0 0
        %2602 = vmatpush1.bf16.msra.mxu0 %v2584
        %2603 = vmatprep.subr.bf16.mxu0 0
        %2604 = vmatpush1.bf16.msra.mxu0 %v2585
        %2605 = vmatprep.subr.bf16.mxu0 0
        %2606 = vmatpush1.bf16.msra.mxu0 %v2586
        %2607 = vmatprep.subr.bf16.mxu0 0
        %2608 = vmatpush1.bf16.msra.mxu0 %v2587
        %2609 = vmatprep.subr.bf16.mxu0 0
        %2610 = vmatpush1.bf16.msra.mxu0 %v2588
        %2611 = vmatprep.subr.bf16.mxu0 0
        %2612 = vmatpush1.bf16.msra.mxu0 %v2589
        %2613 = vmatprep.subr.bf16.mxu0 0
        %2614 = vmatpush1.bf16.msra.mxu0 %v2590
        %2615 = vmatprep.subr.bf16.mxu0 0
        %2616 = vmatpush1.bf16.msra.mxu0 0
        %2617 = vmatprep.subr.bf16.mxu0 0
        %2618 = vmatpush1.bf16.msra.mxu0 0
        %2619 = vmatprep.subr.bf16.mxu0 0
        %2620 = vmatpush1.bf16.msra.mxu0 0
        %2621 = vmatprep.subr.bf16.mxu0 0
        %2622 = vmatpush1.bf16.msra.mxu0 0
        %2623 = vmatprep.subr.bf16.mxu0 0
        %2624 = vmatpush1.bf16.msra.mxu0 0
        %2625 = vmatprep.subr.bf16.mxu0 0
        %2626 = vmatpush1.bf16.msra.mxu0 0
        %2627 = vmatprep.subr.bf16.mxu0 0
        %2628 = vmatpush1.bf16.msra.mxu0 0
        %2629 = vmatprep.subr.bf16.mxu0 0
        %2630 = vmatpush1.bf16.msra.mxu0 0
        %2631 = vmatprep.mubr.bf16.mxu0 0
        %2632 = vmatmul.mubr.bf16.gmra.mrb[0].mxu0 %v2526
        %v2633 = vpop.f32.mrb[0].mxu0
        %v2634 = vadd.f32 %v2549, %v2633
        %v2635 = vpop.f32.mrb[0].mxu0
        %v2636 = vpop.f32.mrb[0].mxu0
        %v2637 = vadd.f32 %v2549, %v2636
        %v2638 = vpop.f32.mrb[0].mxu0
        %2639 = vmatprep.mubr.bf16.mxu0 0
        %2640 = vmatmul.mubr.bf16.gmra.mrb[0].mxu0 %v2527
        %v2641 = vpop.f32.mrb[0].mxu0
        %v2642 = vadd.f32 %v2549, %v2641
        %v2643 = vpop.f32.mrb[0].mxu0
        %v2644 = vpop.f32.mrb[0].mxu0
        %v2645 = vadd.f32 %v2549, %v2644
        %v2646 = vpop.f32.mrb[0].mxu0
        %2647 = vdwg.mxu0
        %v2648 = vpack.c.bf16 %v2523, %v2522
        %v2649 = vpack.c.bf16 %v2525, %v2524
        %v2650 = vld [vmem:[%s809] sm:$0xf]
        %v2651 = vld [vmem:[%s809 + $0x4] sm:$0xf]
        %v2652 = vld [vmem:[%s809 + $0x8] sm:$0xf]
        %v2653 = vld [vmem:[%s809 + $0xc] sm:$0xf]
        %v2654 = vld [vmem:[%s809 + $0x10] sm:$0xf]
        %v2655 = vld [vmem:[%s809 + $0x14] sm:$0xf]
        %v2656 = vld [vmem:[%s809 + $0x18] sm:$0xf]
        %v2657 = vld [vmem:[%s809 + $0x1c] sm:$0xf]
        %v2658 = vld [vmem:[%s809 + $0x20] sm:$0xf]
        %v2659 = vld [vmem:[%s809 + $0x24] sm:$0xf]
        %v2660 = vld [vmem:[%s809 + $0x28] sm:$0xf]
        %v2661 = vld [vmem:[%s809 + $0x2c] sm:$0xf]
        %v2662 = vld [vmem:[%s809 + $0x30] sm:$0xf]
        %v2663 = vld [vmem:[%s809 + $0x34] sm:$0xf]
        %v2664 = vld [vmem:[%s809 + $0x38] sm:$0xf]
        %v2665 = vld [vmem:[%s809 + $0x3c] sm:$0xf]
        %v2666 = vld [vmem:[%s817] sm:$0x1]
        %v2668 = vlaneseq
        %v2669 = vshrl.u32 %v2668, 7
        %v2670 = vsub.s32 0, %v2669
        %v2671 = vrot.slane %v2666, %v2670
        %v2689 = vunpack.c.l.b16 %v2650
        %v2690 = vunpack.c.l.b16 %v2651
        %v2691 = vunpack.c.l.b16 %v2652
        %v2692 = vunpack.c.l.b16 %v2653
        %v2693 = vunpack.c.l.b16 %v2654
        %v2694 = vunpack.c.l.b16 %v2655
        %v2695 = vunpack.c.l.b16 %v2656
        %v2696 = vunpack.c.l.b16 %v2657
        %v2697 = vunpack.c.l.b16 %v2658
        %v2698 = vunpack.c.l.b16 %v2659
        %v2699 = vunpack.c.l.b16 %v2660
        %v2700 = vunpack.c.l.b16 %v2661
        %v2701 = vunpack.c.l.b16 %v2662
        %v2702 = vunpack.c.l.b16 %v2663
        %v2703 = vunpack.c.l.b16 %v2664
        %v2704 = vunpack.c.l.b16 %v2665
        %v2705 = vpack.c.b16 %v2690, %v2689
        %v2706 = vpack.c.b16 %v2692, %v2691
        %v2707 = vpack.c.b16 %v2694, %v2693
        %v2708 = vpack.c.b16 %v2696, %v2695
        %v2709 = vpack.c.b16 %v2698, %v2697
        %v2710 = vpack.c.b16 %v2700, %v2699
        %v2711 = vpack.c.b16 %v2702, %v2701
        %v2712 = vpack.c.b16 %v2704, %v2703
        %2721 = vmatprep.subr.bf16.mxu0 0
        %2722 = vmatpush1.bf16.msra.mxu0 %v2705
        %2723 = vmatprep.subr.bf16.mxu0 0
        %2724 = vmatpush1.bf16.msra.mxu0 %v2706
        %2725 = vmatprep.subr.bf16.mxu0 0
        %2726 = vmatpush1.bf16.msra.mxu0 %v2707
        %2727 = vmatprep.subr.bf16.mxu0 0
        %2728 = vmatpush1.bf16.msra.mxu0 %v2708
        %2729 = vmatprep.subr.bf16.mxu0 0
        %2730 = vmatpush1.bf16.msra.mxu0 %v2709
        %2731 = vmatprep.subr.bf16.mxu0 0
        %2732 = vmatpush1.bf16.msra.mxu0 %v2710
        %2733 = vmatprep.subr.bf16.mxu0 0
        %2734 = vmatpush1.bf16.msra.mxu0 %v2711
        %2735 = vmatprep.subr.bf16.mxu0 0
        %2736 = vmatpush1.bf16.msra.mxu0 %v2712
        %2737 = vmatprep.subr.bf16.mxu0 0
        %2738 = vmatpush1.bf16.msra.mxu0 0
        %2739 = vmatprep.subr.bf16.mxu0 0
        %2740 = vmatpush1.bf16.msra.mxu0 0
        %2741 = vmatprep.subr.bf16.mxu0 0
        %2742 = vmatpush1.bf16.msra.mxu0 0
        %2743 = vmatprep.subr.bf16.mxu0 0
        %2744 = vmatpush1.bf16.msra.mxu0 0
        %2745 = vmatprep.subr.bf16.mxu0 0
        %2746 = vmatpush1.bf16.msra.mxu0 0
        %2747 = vmatprep.subr.bf16.mxu0 0
        %2748 = vmatpush1.bf16.msra.mxu0 0
        %2749 = vmatprep.subr.bf16.mxu0 0
        %2750 = vmatpush1.bf16.msra.mxu0 0
        %2751 = vmatprep.subr.bf16.mxu0 0
        %2752 = vmatpush1.bf16.msra.mxu0 0
        %2753 = vmatprep.mubr.bf16.mxu0 0
        %2754 = vmatmul.mubr.bf16.gmra.mrb[0].mxu0 %v2648
        %v2755 = vpop.f32.mrb[0].mxu0
        %v2756 = vadd.f32 %v2671, %v2755
        %v2757 = vpop.f32.mrb[0].mxu0
        %v2758 = vpop.f32.mrb[0].mxu0
        %v2759 = vadd.f32 %v2671, %v2758
        %v2760 = vpop.f32.mrb[0].mxu0
        %2761 = vmatprep.mubr.bf16.mxu0 0
        %2762 = vmatmul.mubr.bf16.gmra.mrb[0].mxu0 %v2649
        %v2763 = vpop.f32.mrb[0].mxu0
        %v2764 = vadd.f32 %v2671, %v2763
        %v2765 = vpop.f32.mrb[0].mxu0
        %v2766 = vpop.f32.mrb[0].mxu0
        %v2767 = vadd.f32 %v2671, %v2766
        %v2768 = vpop.f32.mrb[0].mxu0
        %2769 = vdwg.mxu0
        %v2770 = vpack.c.bf16 %v2759, %v2756
        %v2771 = vpack.c.bf16 %v2767, %v2764
        %v2772 = vld [vmem:[%s826] sm:$0xf]
        %v2773 = vld [vmem:[%s826 + $0x4] sm:$0xf]
        %v2774 = vld [vmem:[%s826 + $0x8] sm:$0xf]
        %v2775 = vld [vmem:[%s826 + $0xc] sm:$0xf]
        %v2776 = vld [vmem:[%s826 + $0x10] sm:$0xf]
        %v2777 = vld [vmem:[%s826 + $0x14] sm:$0xf]
        %v2778 = vld [vmem:[%s826 + $0x18] sm:$0xf]
        %v2779 = vld [vmem:[%s826 + $0x1c] sm:$0xf]
        %v2780 = vld [vmem:[%s826 + $0x20] sm:$0xf]
        %v2781 = vld [vmem:[%s826 + $0x24] sm:$0xf]
        %v2782 = vld [vmem:[%s826 + $0x28] sm:$0xf]
        %v2783 = vld [vmem:[%s826 + $0x2c] sm:$0xf]
        %v2784 = vld [vmem:[%s826 + $0x30] sm:$0xf]
        %v2785 = vld [vmem:[%s826 + $0x34] sm:$0xf]
        %v2786 = vld [vmem:[%s826 + $0x38] sm:$0xf]
        %v2787 = vld [vmem:[%s826 + $0x3c] sm:$0xf]
        %v2788 = vld [vmem:[%s826 + $0x40] sm:$0xf]
        %v2789 = vld [vmem:[%s826 + $0x44] sm:$0xf]
        %v2790 = vld [vmem:[%s826 + $0x48] sm:$0xf]
        %v2791 = vld [vmem:[%s826 + $0x4c] sm:$0xf]
        %v2792 = vld [vmem:[%s826 + $0x50] sm:$0xf]
        %v2793 = vld [vmem:[%s826 + $0x54] sm:$0xf]
        %v2794 = vld [vmem:[%s826 + $0x58] sm:$0xf]
        %v2795 = vld [vmem:[%s826 + $0x5c] sm:$0xf]
        %v2796 = vld [vmem:[%s826 + $0x60] sm:$0xf]
        %v2797 = vld [vmem:[%s826 + $0x64] sm:$0xf]
        %v2798 = vld [vmem:[%s826 + $0x68] sm:$0xf]
        %v2799 = vld [vmem:[%s826 + $0x6c] sm:$0xf]
        %v2800 = vld [vmem:[%s826 + $0x70] sm:$0xf]
        %v2801 = vld [vmem:[%s826 + $0x74] sm:$0xf]
        %v2802 = vld [vmem:[%s826 + $0x78] sm:$0xf]
        %v2803 = vld [vmem:[%s826 + $0x7c] sm:$0xf]
        %v2804 = vld [vmem:[%s834] sm:$0x1]
        %v2806 = vlaneseq
        %v2807 = vshrl.u32 %v2806, 7
        %v2808 = vsub.s32 0, %v2807
        %v2809 = vrot.slane %v2804, %v2808
        %v2843 = vunpack.c.l.b16 %v2772
        %v2844 = vunpack.c.l.b16 %v2773
        %v2845 = vunpack.c.l.b16 %v2774
        %v2846 = vunpack.c.l.b16 %v2775
        %v2847 = vunpack.c.l.b16 %v2776
        %v2848 = vunpack.c.l.b16 %v2777
        %v2849 = vunpack.c.l.b16 %v2778
        %v2850 = vunpack.c.l.b16 %v2779
        %v2851 = vunpack.c.l.b16 %v2780
        %v2852 = vunpack.c.l.b16 %v2781
        %v2853 = vunpack.c.l.b16 %v2782
        %v2854 = vunpack.c.l.b16 %v2783
        %v2855 = vunpack.c.l.b16 %v2784
        %v2856 = vunpack.c.l.b16 %v2785
        %v2857 = vunpack.c.l.b16 %v2786
        %v2858 = vunpack.c.l.b16 %v2787
        %v2859 = vunpack.c.l.b16 %v2788
        %v2860 = vunpack.c.l.b16 %v2789
        %v2861 = vunpack.c.l.b16 %v2790
        %v2862 = vunpack.c.l.b16 %v2791
        %v2863 = vunpack.c.l.b16 %v2792
        %v2864 = vunpack.c.l.b16 %v2793
        %v2865 = vunpack.c.l.b16 %v2794
        %v2866 = vunpack.c.l.b16 %v2795
        %v2867 = vunpack.c.l.b16 %v2796
        %v2868 = vunpack.c.l.b16 %v2797
        %v2869 = vunpack.c.l.b16 %v2798
        %v2870 = vunpack.c.l.b16 %v2799
        %v2871 = vunpack.c.l.b16 %v2800
        %v2872 = vunpack.c.l.b16 %v2801
        %v2873 = vunpack.c.l.b16 %v2802
        %v2874 = vunpack.c.l.b16 %v2803
        %v2875 = vpack.c.b16 %v2844, %v2843
        %v2876 = vpack.c.b16 %v2846, %v2845
        %v2877 = vpack.c.b16 %v2848, %v2847
        %v2878 = vpack.c.b16 %v2850, %v2849
        %v2879 = vpack.c.b16 %v2852, %v2851
        %v2880 = vpack.c.b16 %v2854, %v2853
        %v2881 = vpack.c.b16 %v2856, %v2855
        %v2882 = vpack.c.b16 %v2858, %v2857
        %v2883 = vpack.c.b16 %v2860, %v2859
        %v2884 = vpack.c.b16 %v2862, %v2861
        %v2885 = vpack.c.b16 %v2864, %v2863
        %v2886 = vpack.c.b16 %v2866, %v2865
        %v2887 = vpack.c.b16 %v2868, %v2867
        %v2888 = vpack.c.b16 %v2870, %v2869
        %v2889 = vpack.c.b16 %v2872, %v2871
        %v2890 = vpack.c.b16 %v2874, %v2873
        %2907 = vmatprep.subr.bf16.mxu0 0
        %2908 = vmatpush1.bf16.msra.mxu0 %v2875
        %2909 = vmatprep.subr.bf16.mxu0 0
        %2910 = vmatpush1.bf16.msra.mxu0 %v2876
        %2911 = vmatprep.subr.bf16.mxu0 0
        %2912 = vmatpush1.bf16.msra.mxu0 %v2877
        %2913 = vmatprep.subr.bf16.mxu0 0
        %2914 = vmatpush1.bf16.msra.mxu0 %v2878
        %2915 = vmatprep.subr.bf16.mxu0 0
        %2916 = vmatpush1.bf16.msra.mxu0 %v2879
        %2917 = vmatprep.subr.bf16.mxu0 0
        %2918 = vmatpush1.bf16.msra.mxu0 %v2880
        %2919 = vmatprep.subr.bf16.mxu0 0
        %2920 = vmatpush1.bf16.msra.mxu0 %v2881
        %2921 = vmatprep.subr.bf16.mxu0 0
        %2922 = vmatpush1.bf16.msra.mxu0 %v2882
        %2923 = vmatprep.subr.bf16.mxu0 0
        %2924 = vmatpush1.bf16.msra.mxu0 %v2883
        %2925 = vmatprep.subr.bf16.mxu0 0
        %2926 = vmatpush1.bf16.msra.mxu0 %v2884
        %2927 = vmatprep.subr.bf16.mxu0 0
        %2928 = vmatpush1.bf16.msra.mxu0 %v2885
        %2929 = vmatprep.subr.bf16.mxu0 0
        %2930 = vmatpush1.bf16.msra.mxu0 %v2886
        %2931 = vmatprep.subr.bf16.mxu0 0
        %2932 = vmatpush1.bf16.msra.mxu0 %v2887
        %2933 = vmatprep.subr.bf16.mxu0 0
        %2934 = vmatpush1.bf16.msra.mxu0 %v2888
        %2935 = vmatprep.subr.bf16.mxu0 0
        %2936 = vmatpush1.bf16.msra.mxu0 %v2889
        %2937 = vmatprep.subr.bf16.mxu0 0
        %2938 = vmatpush1.bf16.msra.mxu0 %v2890
        %2939 = vmatprep.mubr.bf16.mxu0 %v2770
        %2940 = vmatmul.mubr.bf16.gmra.mrb[0].mxu0 %v1620
        %v2941 = vpop.f32.mrb[0].mxu0
        %v2942 = vadd.f32 %v2809, %v2941
        %v2943 = vpop.f32.mrb[0].mxu0
        %v2944 = vpop.f32.mrb[0].mxu0
        %v2945 = vadd.f32 %v2809, %v2944
        %v2946 = vpop.f32.mrb[0].mxu0
        %2947 = vmatprep.mubr.bf16.mxu0 %v2771
        %2948 = vmatmul.mubr.bf16.gmra.mrb[0].mxu0 %v1621
        %v2949 = vpop.f32.mrb[0].mxu0
        %v2950 = vadd.f32 %v2809, %v2949
        %v2951 = vpop.f32.mrb[0].mxu0
        %v2952 = vpop.f32.mrb[0].mxu0
        %v2953 = vadd.f32 %v2809, %v2952
        %v2954 = vpop.f32.mrb[0].mxu0
        %2955 = vdwg.mxu0
        %v2956 = vxor.u32 %v2942, 2147483648
        %v2957 = vxor.u32 %v2945, 2147483648
        %v2958 = vxor.u32 %v2950, 2147483648
        %v2959 = vxor.u32 %v2953, 2147483648
        %v2960 = vmul.f32 %v2956, 1.442695
        %v2961 = vpow.pop %v2960
        %v2962 = vmul.f32 %v2957, 1.442695
        %v2963 = vpow.pop %v2962
        %v2964 = vmul.f32 %v2958, 1.442695
        %v2965 = vpow.pop %v2964
        %v2966 = vmul.f32 %v2959, 1.442695
        %v2967 = vpow.pop %v2966
        %v2968 = vadd.f32 %v2961, 1.0
        %v2969 = vadd.f32 %v2963, 1.0
        %v2970 = vadd.f32 %v2965, 1.0
        %v2971 = vadd.f32 %v2967, 1.0
        %v2972 = vrcp.pop %v2968
        %v2973 = vmul.f32 1.0, %v2972
        %v2974 = vrcp.pop %v2969
        %v2975 = vmul.f32 1.0, %v2974
        %v2976 = vrcp.pop %v2970
        %v2977 = vmul.f32 1.0, %v2976
        %v2978 = vrcp.pop %v2971
        %v2979 = vmul.f32 1.0, %v2978
        %v2980 = vadd.f32 %v1616, %v2756
        %v2981 = vadd.f32 %v1617, %v2759
        %v2982 = vadd.f32 %v1618, %v2764
        %v2983 = vadd.f32 %v1619, %v2767
        %v2984 = vmul.f32 %v2980, 0.70710677
        %v2985 = vmul.f32 %v2981, 0.70710677
        %v2986 = vmul.f32 %v2982, 0.70710677
        %v2987 = vmul.f32 %v2983, 0.70710677
        %v2988 = vmul.f32 %v2973, %v2634
        %v2989 = vmul.f32 %v2975, %v2637
        %v2990 = vmul.f32 %v2977, %v2642
        %v2991 = vmul.f32 %v2979, %v2645
        %v2992 = vadd.f32 %v2984, %v2988
        %v2993 = vadd.f32 %v2985, %v2989
        %v2994 = vadd.f32 %v2986, %v2990
        %v2995 = vadd.f32 %v2987, %v2991
        %v2996 = vmul.f32 %v2992, 0.70710677
        %v2997 = vmul.f32 %v2993, 0.70710677
        %v2998 = vmul.f32 %v2994, 0.70710677
        %v2999 = vmul.f32 %v2995, 0.70710677
        %v3000 = vadd.f32 %v2996, %v1143
        %v3001 = vadd.f32 %v2997, %v1144
        %v3002 = vadd.f32 %v2998, %v1145
        %v3003 = vadd.f32 %v2999, %v1146
        %v3004 = vmul.f32 %v3000, 0.70710677
        %v3005 = vmul.f32 %v3001, 0.70710677
        %v3006 = vmul.f32 %v3002, 0.70710677
        %v3007 = vmul.f32 %v3003, 0.70710677
        %3008 = vst [vmem:[%s1006] sm:$0xff] %v3004
        %3009 = vst [vmem:[%s1006 + $0x8] sm:$0xff] %v3005
        %3010 = vst [vmem:[%s1006 + $0x10] sm:$0xff] %v3006
        %3011 = vst [vmem:[%s1006 + $0x18] sm:$0xff] %v3007
        %s3012 = smul.u32 2, %s34
        %p3013 = scmp.lt.s32.totalorder %s3012, 1
        %s3014 = scalar_select %p3013, %s3012, 1
        %s3015 = smul.addr %s3014, 2
        %s3016 = smul.addr %s3015, 8
        %s3017 = scalar_lea.vmem %s17, %s3016
        // Predicated region
        $region133: #{conv_decoder_forward.3} parent=87 // pred_check
          %p3018 = pneg %p492
        $region134: #{conv_decoder_forward.3} parent=87 // pred_check_branch
          %3020 = sbr.rel (%p3018) target = $region136
        $region135: #{conv_decoder_forward.3} parent=87 // pred_region
          %s3021 = smul.u32 2, %s34
        $region136: #{conv_decoder_forward.3} parent=87 // pred_fallthru
          _
        // Predicated region
        $region137: #{conv_decoder_forward.3} parent=87 // pred_check
          %p3022 = pneg %p492
        $region138: #{conv_decoder_forward.3} parent=87 // pred_check_branch
          %3024 = sbr.rel (%p3022) target = $region140
        $region139: #{conv_decoder_forward.3} parent=87 // pred_region
          %s3025 = smul.u32 2, %s34
          %p3026 = scmp.lt.s32.totalorder %s3025, 1
          %s3027 = scalar_select %p3026, %s3025, 1
          %s3028 = smul.addr %s3027, 2
          %s3029 = smul.addr %s3028, 8
          %s3030 = scalar_lea.vmem %s17, %s3029
        $region140: #{conv_decoder_forward.3} parent=87 // pred_fallthru
          _
      $region88: #{conv_decoder_forward.3} parent=5 // pred_fallthru
        _
      %p3031 = scmp.le.s32.totalorder 2, %s25
      // Predicated region
      $region141: #{conv_decoder_forward.3} parent=5 // pred_check
        %p3032 = pneg %p3031
      $region142: #{conv_decoder_forward.3} parent=5 // pred_check_branch
        %3034 = sbr.rel (%p3032) target = $region144
      $region143: #{conv_decoder_forward.3} parent=5 // pred_region
        %s3035 = ssub.s32 %s25, 2
      $region144: #{conv_decoder_forward.3} parent=5 // pred_fallthru
        _
    $region6: #{conv_decoder_forward.3} parent=1 // loop_footer
      %s29 = sadd.s32 1, %s25
    $region7: #{conv_decoder_forward.3} parent=1 // loop_footer_branch
      %24 = sbr.rel target = $region3
    $region8: #{conv_decoder_forward.3} parent=1 // loop_exit
      _
    %3036 = vsyncpa [#allocation3], 1
    %s3037 = scalar_lea.sflag [#allocation3], 1
    %3038 = vsyncpa %s3037, 1
    %3039 = vsyncpa [#allocation5], 1

</llo_original>
